<compile_context>
chip_gen: v7x
topology: tpu7x:2x2x1
jax: 0.10.0
libtpu: 0.0.40
codegen_flags: <defaults>
</compile_context>

<pallas_src>
import math
from functools import partial

import jax
import jax.numpy as jnp
from jax.experimental import pallas as pl
from jax.experimental.pallas import tpu as pltpu

# ----------------------------- config ---------------------------------------
NUM_TOKENS  = 256   # enc_num_tokens == dec_num_tokens
MAX_SEQ_LEN = 32    # enc_max_seq_len == dec_max_seq_len
DIM         = 64    # model dim
HEADS       = 2
DIM_HEAD    = 32
FF_MULT     = 4
ENC_DEPTH   = 1
DEC_DEPTH   = 1
LN_EPS      = 1e-5
NEG_INF     = float(-jnp.finfo(jnp.float32).max)   # max_neg_value()

INNER_ATTN = HEADS * DIM_HEAD      # 64
INNER_FF   = DIM * FF_MULT         # 256
ATTN_SCALE = DIM_HEAD ** -0.5

VMEM_SPEC = pl.BlockSpec(memory_space=pltpu.MemorySpace.VMEM)


# --------------------- in-kernel helpers (values, not refs) -------------------
def _ln(x, g):
    """Bias-less LayerNorm with learned gamma (f32 math)."""
    mu = jnp.mean(x, axis=-1, keepdims=True)
    var = jnp.mean(jnp.square(x - mu), axis=-1, keepdims=True)
    return (x - mu) * jax.lax.rsqrt(var + LN_EPS) * g


def _mm(a, b):
    """MXU matmul: bf16 operands, f32 accumulation."""
    return jnp.dot(a.astype(jnp.bfloat16), b.astype(jnp.bfloat16),
                   preferred_element_type=jnp.float32)


def _mha(q, k, v, *, B, Nq, Nk, causal):
    """Multi-head attention on flat slabs.

    q: (B*Nq, H*Dh), k/v: (B*Nk, H*Dh) f32 values.  Batch and head loops are
    statically unrolled inside the fused kernel (B*H = 4 tiny matmuls) so there
    is no per-head grid step and no HBM round-trip of Q/K/V.
    """
    out_rows = []
    for b in range(B):
        qb = q[b * Nq:(b + 1) * Nq]
        kb = k[b * Nk:(b + 1) * Nk]
        vb = v[b * Nk:(b + 1) * Nk]
        head_outs = []
        for h in range(HEADS):
            sl = slice(h * DIM_HEAD, (h + 1) * DIM_HEAD)
            qs, ks, vs = qb[:, sl], kb[:, sl], vb[:, sl]
            s = jax.lax.dot_general(
                qs.astype(jnp.bfloat16), ks.astype(jnp.bfloat16),
                (((1,), (1,)), ((), ())),
                preferred_element_type=jnp.float32,
            ) * ATTN_SCALE
            if causal:
                qi = jax.lax.broadcasted_iota(jnp.int32, (Nq, Nk), 0)
                kj = jax.lax.broadcasted_iota(jnp.int32, (Nq, Nk), 1)
                s = jnp.where(kj <= qi, s, NEG_INF)
            s = s - jnp.max(s, axis=-1, keepdims=True)
            p = jnp.exp(s)
            p = p * pl.reciprocal(jnp.sum(p, axis=-1, keepdims=True), approx=True)
            head_outs.append(
                jnp.dot(p.astype(jnp.bfloat16), vs.astype(jnp.bfloat16),
                        preferred_element_type=jnp.float32))
        out_rows.append(jnp.concatenate(head_outs, axis=-1))   # (Nq, H*Dh)
    return jnp.concatenate(out_rows, axis=0)                   # (B*Nq, H*Dh)


def _ff(x, w1, b1, w2, b2):
    # TODO(synk): torch nn.GELU() is the exact erf-GELU; tanh approximation used
    # here for a guaranteed TPU/Mosaic (EUP tanh) lowering.
    h = jax.nn.gelu(_mm(x, w1) + b1, approximate=True)
    return _mm(h, w2) + b2


# ----------------------------- fused Pallas kernels ---------------------------
def _encoder_kernel(*refs, depth, B, N):
    # refs = [x, (attn_g, wqkv, wo, ff_g, w1, b1, w2, b2) * depth, final_g, out]
    x_ref, out_ref = refs[0], refs[-1]
    x = x_ref[...].astype(jnp.float32)                # (B*N, D) activation slab
    i = 1
    for _ in range(depth):
        attn_g, wqkv, wo, ff_g, w1, b1, w2, b2 = (r[...] for r in refs[i:i + 8])
        i += 8
        h = _ln(x, attn_g)
        qkv = _mm(h, wqkv)                            # fused QKV: (B*N, 3*H*Dh)
        q = qkv[:, :INNER_ATTN]
        k = qkv[:, INNER_ATTN:2 * INNER_ATTN]
        v = qkv[:, 2 * INNER_ATTN:]
        x = x + _mm(_mha(q, k, v, B=B, Nq=N, Nk=N, causal=False), wo)
        x = x + _ff(_ln(x, ff_g), w1, b1, w2, b2)
    final_g = refs[i][...]
    out_ref[...] = _ln(x, final_g).astype(out_ref.dtype)


def _decoder_kernel(*refs, depth, B, N, M):
    # refs = [x, ctx, (self_g, self_wqkv, self_wo, cross_g, cross_wq, cross_wkv,
    #                  cross_wo, ff_g, w1, b1, w2, b2) * depth,
    #         final_g, to_logits_w, out]
    x_ref, ctx_ref, out_ref = refs[0], refs[1], refs[-1]
    x = x_ref[...].astype(jnp.float32)                # (B*N, D)
    ctx = ctx_ref[...].astype(jnp.float32)            # (B*M, D)
    i = 2
    for _ in range(depth):
        (self_g, self_wqkv, self_wo,
         cross_g, cross_wq, cross_wkv, cross_wo,
         ff_g, w1, b1, w2, b2) = (r[...] for r in refs[i:i + 12])
        i += 12
        # causal self-attention
        h = _ln(x, self_g)
        qkv = _mm(h, self_wqkv)
        q = qkv[:, :INNER_ATTN]
        k = qkv[:, INNER_ATTN:2 * INNER_ATTN]
        v = qkv[:, 2 * INNER_ATTN:]
        x = x + _mm(_mha(q, k, v, B=B, Nq=N, Nk=N, causal=True), self_wo)
        # cross-attention over the encoder context (fused KV projection)
        h = _ln(x, cross_g)
        q = _mm(h, cross_wq)
        kv = _mm(ctx, cross_wkv)
        k, v = kv[:, :INNER_ATTN], kv[:, INNER_ATTN:]
        x = x + _mm(_mha(q, k, v, B=B, Nq=N, Nk=M, causal=False), cross_wo)
        # feed-forward
        x = x + _ff(_ln(x, ff_g), w1, b1, w2, b2)
    final_g, logits_w = refs[i][...], refs[i + 1][...]
    # lane-dense (B*N, 256) logits store
    out_ref[...] = _mm(_ln(x, final_g), logits_w).astype(out_ref.dtype)


# ----------------------------- model forward ---------------------------------
def transformer_embed(tokens, p):
    n = tokens.shape[1]
    tok = p["tok_emb"][tokens]                       # (B, N, D) gather (JAX glue)
    pos = p["pos_emb"][:n] * (DIM ** -0.5)           # AbsolutePositionalEmbedding scale
    return tok + pos[None]


def encoder_forward(p, src):
    B, N = src.shape
    x = transformer_embed(src, p).reshape(B * N, DIM)
    inputs = [x]
    for lp in p["layers"]:
        inputs += [lp["attn_norm_g"].reshape(1, DIM),
                   lp["attn"]["wqkv"], lp["attn"]["wo"],
                   lp["ff_norm_g"].reshape(1, DIM),
                   lp["ff"]["w1"], lp["ff"]["b1"].reshape(1, INNER_FF),
                   lp["ff"]["w2"], lp["ff"]["b2"].reshape(1, DIM)]
    inputs.append(p["final_norm_g"].reshape(1, DIM))
    return pl.pallas_call(
        partial(_encoder_kernel, depth=len(p["layers"]), B=B, N=N),
        in_specs=[VMEM_SPEC] * len(inputs),
        out_specs=VMEM_SPEC,
        out_shape=jax.ShapeDtypeStruct((B * N, DIM), jnp.float32),
    )(*inputs)                                       # (B*N, D) context slab


def decoder_forward(p, tgt_inp, context_slab, ctx_len):
    B, N = tgt_inp.shape
    x = transformer_embed(tgt_inp, p).reshape(B * N, DIM)
    inputs = [x, context_slab]
    for lp in p["layers"]:
        inputs += [lp["self_norm_g"].reshape(1, DIM),
                   lp["self_attn"]["wqkv"], lp["self_attn"]["wo"],
                   lp["cross_norm_g"].reshape(1, DIM),
                   lp["cross_attn"]["wq"], lp["cross_attn"]["wkv"],
                   lp["cross_attn"]["wo"],
                   lp["ff_norm_g"].reshape(1, DIM),
                   lp["ff"]["w1"], lp["ff"]["b1"].reshape(1, INNER_FF),
                   lp["ff"]["w2"], lp["ff"]["b2"].reshape(1, DIM)]
    inputs += [p["final_norm_g"].reshape(1, DIM), p["to_logits_w"]]
    logits = pl.pallas_call(
        partial(_decoder_kernel, depth=len(p["layers"]), B=B, N=N, M=ctx_len),
        in_specs=[VMEM_SPEC] * len(inputs),
        out_specs=VMEM_SPEC,
        out_shape=jax.ShapeDtypeStruct((B * N, NUM_TOKENS), jnp.float32),
    )(*inputs)
    return logits.reshape(B, N, NUM_TOKENS)


def xtransformer_forward(params, src, tgt):
    enc_out = encoder_forward(params["enc"], src)               # (B*Ns, D)
    # AutoregressiveWrapper: shift, predict next token, cross-entropy loss
    inp, target = tgt[:, :-1], tgt[:, 1:]
    logits = decoder_forward(params["dec"], inp, enc_out, ctx_len=src.shape[1])
    logp = jax.nn.log_softmax(logits, axis=-1)
    tgt_idx = jnp.clip(target, 0, NUM_TOKENS - 1)
    nll = -jnp.take_along_axis(logp, tgt_idx[..., None], axis=-1)[..., 0]
    valid = (target != -100).astype(jnp.float32)                # ignore_index=-100
    return jnp.sum(nll * valid) / jnp.maximum(jnp.sum(valid), 1.0)


# ----------------------------- deterministic init -----------------------------
def init_params(key):
    state = {"k": key}

    def nxt():
        state["k"], sub = jax.random.split(state["k"])
        return sub

    def normal(shape, std):
        return jax.random.normal(nxt(), shape, jnp.float32) * std

    def self_attn_p():
        return dict(
            wqkv=normal((DIM, 3 * INNER_ATTN), DIM ** -0.5),     # fused Q,K,V
            wo=normal((INNER_ATTN, DIM), INNER_ATTN ** -0.5),
        )

    def cross_attn_p():
        return dict(
            wq=normal((DIM, INNER_ATTN), DIM ** -0.5),
            wkv=normal((DIM, 2 * INNER_ATTN), DIM ** -0.5),      # fused K,V
            wo=normal((INNER_ATTN, DIM), INNER_ATTN ** -0.5),
        )

    def ff_p():
        return dict(
            w1=normal((DIM, INNER_FF), DIM ** -0.5), b1=jnp.zeros((INNER_FF,), jnp.float32),
            w2=normal((INNER_FF, DIM), INNER_FF ** -0.5), b2=jnp.zeros((DIM,), jnp.float32),
        )

    def enc_layer():
        return dict(attn_norm_g=jnp.ones((DIM,)), attn=self_attn_p(),
                    ff_norm_g=jnp.ones((DIM,)), ff=ff_p())

    def dec_layer():
        return dict(self_norm_g=jnp.ones((DIM,)), self_attn=self_attn_p(),
                    cross_norm_g=jnp.ones((DIM,)), cross_attn=cross_attn_p(),
                    ff_norm_g=jnp.ones((DIM,)), ff=ff_p())

    enc = dict(
        tok_emb=normal((NUM_TOKENS, DIM), math.sqrt(2.0 / DIM)),  # kaiming_normal-like
        pos_emb=normal((MAX_SEQ_LEN, DIM), 1.0),
        layers=[enc_layer() for _ in range(ENC_DEPTH)],
        final_norm_g=jnp.ones((DIM,)),
    )
    dec = dict(
        tok_emb=normal((NUM_TOKENS, DIM), math.sqrt(2.0 / DIM)),
        pos_emb=normal((MAX_SEQ_LEN, DIM), 1.0),
        layers=[dec_layer() for _ in range(DEC_DEPTH)],
        final_norm_g=jnp.ones((DIM,)),
        to_logits_w=normal((DIM, NUM_TOKENS), DIM ** -0.5),       # LinearNoBias
    )
    return dict(enc=enc, dec=dec)


# ----------------------------- main -------------------------------------------
if __name__ == "__main__":
    root = jax.random.PRNGKey(0)
    pkey, skey, tkey = jax.random.split(root, 3)

    params = init_params(pkey)
    src = jax.random.randint(skey, (2, 8), 0, NUM_TOKENS, dtype=jnp.int32)   # encoder tokens
    tgt = jax.random.randint(tkey, (2, 9), 0, NUM_TOKENS, dtype=jnp.int32)   # decoder tokens

    loss = jax.jit(xtransformer_forward)(params, src, tgt)
    jax.block_until_ready(loss)
    assert loss.shape == () and jnp.isfinite(loss)
    print("KERNEL_OK")
</pallas_src>

<mosaic_0001>
module attributes {stable_mosaic.version = 11 : i64} {
  func.func @_encoder_kernel(%arg0: memref<16x64xf32, #tpu.memory_space<vmem>>, %arg1: memref<1x64xf32, #tpu.memory_space<vmem>>, %arg2: memref<64x192xf32, #tpu.memory_space<vmem>>, %arg3: memref<64x64xf32, #tpu.memory_space<vmem>>, %arg4: memref<1x64xf32, #tpu.memory_space<vmem>>, %arg5: memref<64x256xf32, #tpu.memory_space<vmem>>, %arg6: memref<1x256xf32, #tpu.memory_space<vmem>>, %arg7: memref<256x64xf32, #tpu.memory_space<vmem>>, %arg8: memref<1x64xf32, #tpu.memory_space<vmem>>, %arg9: memref<1x64xf32, #tpu.memory_space<vmem>>, %arg10: memref<16x64xf32, #tpu.memory_space<vmem>>) attributes {dimension_semantics = [], scalar_prefetch = 0 : i64, scratch_operands = 0 : i64, tpu.core_type = #tpu.core_type<tc>} {
    %c0 = arith.constant 0 : index
    %c0_0 = arith.constant 0 : index
    %0 = vector.load %arg0[%c0, %c0_0] : memref<16x64xf32, #tpu.memory_space<vmem>>, vector<16x64xf32>
    %c0_1 = arith.constant 0 : index
    %c0_2 = arith.constant 0 : index
    %1 = vector.load %arg1[%c0_1, %c0_2] : memref<1x64xf32, #tpu.memory_space<vmem>>, vector<1x64xf32>
    %c0_3 = arith.constant 0 : index
    %c0_4 = arith.constant 0 : index
    %2 = vector.load %arg2[%c0_3, %c0_4] : memref<64x192xf32, #tpu.memory_space<vmem>>, vector<64x192xf32>
    %c0_5 = arith.constant 0 : index
    %c0_6 = arith.constant 0 : index
    %3 = vector.load %arg3[%c0_5, %c0_6] : memref<64x64xf32, #tpu.memory_space<vmem>>, vector<64x64xf32>
    %c0_7 = arith.constant 0 : index
    %c0_8 = arith.constant 0 : index
    %4 = vector.load %arg4[%c0_7, %c0_8] : memref<1x64xf32, #tpu.memory_space<vmem>>, vector<1x64xf32>
    %c0_9 = arith.constant 0 : index
    %c0_10 = arith.constant 0 : index
    %5 = vector.load %arg5[%c0_9, %c0_10] : memref<64x256xf32, #tpu.memory_space<vmem>>, vector<64x256xf32>
    %c0_11 = arith.constant 0 : index
    %c0_12 = arith.constant 0 : index
    %6 = vector.load %arg6[%c0_11, %c0_12] : memref<1x256xf32, #tpu.memory_space<vmem>>, vector<1x256xf32>
    %c0_13 = arith.constant 0 : index
    %c0_14 = arith.constant 0 : index
    %7 = vector.load %arg7[%c0_13, %c0_14] : memref<256x64xf32, #tpu.memory_space<vmem>>, vector<256x64xf32>
    %c0_15 = arith.constant 0 : index
    %c0_16 = arith.constant 0 : index
    %8 = vector.load %arg8[%c0_15, %c0_16] : memref<1x64xf32, #tpu.memory_space<vmem>>, vector<1x64xf32>
    %cst = arith.constant dense<0.000000e+00> : vector<16xf32>
    %9 = vector.multi_reduction <add>, %0, %cst [1] : vector<16x64xf32> to vector<16xf32>
    %10 = vector.shape_cast %9 : vector<16xf32> to vector<16x1xf32>
    %cst_17 = arith.constant 6.400000e+01 : f32
    %11 = vector.broadcast %cst_17 : f32 to vector<16x1xf32>
    %12 = arith.divf %10, %11 : vector<16x1xf32>
    %13 = vector.broadcast %12 : vector<16x1xf32> to vector<16x64xf32>
    %14 = arith.subf %0, %13 : vector<16x64xf32>
    %15 = arith.mulf %14, %14 : vector<16x64xf32>
    %cst_18 = arith.constant dense<0.000000e+00> : vector<16xf32>
    %16 = vector.multi_reduction <add>, %15, %cst_18 [1] : vector<16x64xf32> to vector<16xf32>
    %17 = vector.shape_cast %16 : vector<16xf32> to vector<16x1xf32>
    %cst_19 = arith.constant 6.400000e+01 : f32
    %18 = vector.broadcast %cst_19 : f32 to vector<16x1xf32>
    %19 = arith.divf %17, %18 : vector<16x1xf32>
    %20 = vector.broadcast %12 : vector<16x1xf32> to vector<16x64xf32>
    %21 = arith.subf %0, %20 : vector<16x64xf32>
    %cst_20 = arith.constant 9.99999974E-6 : f32
    %22 = vector.broadcast %cst_20 : f32 to vector<16x1xf32>
    %23 = arith.addf %19, %22 : vector<16x1xf32>
    %24 = math.rsqrt %23 : vector<16x1xf32>
    %25 = vector.broadcast %24 : vector<16x1xf32> to vector<16x64xf32>
    %26 = arith.mulf %21, %25 : vector<16x64xf32>
    %27 = vector.broadcast %1 : vector<1x64xf32> to vector<16x64xf32>
    %28 = arith.mulf %26, %27 : vector<16x64xf32>
    %29 = arith.truncf %28 : vector<16x64xf32> to vector<16x64xbf16>
    %30 = arith.truncf %2 : vector<64x192xf32> to vector<64x192xbf16>
    %cst_21 = arith.constant dense<0.000000e+00> : vector<16x192xf32>
    %31 = tpu.matmul %29, %30, %cst_21 {dimension_numbers = #tpu.dot_dimension_numbers<[1], [0], [0], [1], [0, 0, 1, 1], [], []>} : vector<16x64xbf16>, vector<64x192xbf16>, vector<16x192xf32> -> vector<16x192xf32>
    %32 = vector.extract_strided_slice %31 {offsets = [0, 0], sizes = [16, 64], strides = [1, 1]} : vector<16x192xf32> to vector<16x64xf32>
    %33 = vector.extract_strided_slice %31 {offsets = [0, 64], sizes = [16, 64], strides = [1, 1]} : vector<16x192xf32> to vector<16x64xf32>
    %34 = vector.extract_strided_slice %31 {offsets = [0, 128], sizes = [16, 64], strides = [1, 1]} : vector<16x192xf32> to vector<16x64xf32>
    %35 = vector.extract_strided_slice %32 {offsets = [0, 0], sizes = [8, 64], strides = [1, 1]} : vector<16x64xf32> to vector<8x64xf32>
    %36 = vector.extract_strided_slice %33 {offsets = [0, 0], sizes = [8, 64], strides = [1, 1]} : vector<16x64xf32> to vector<8x64xf32>
    %37 = vector.extract_strided_slice %34 {offsets = [0, 0], sizes = [8, 64], strides = [1, 1]} : vector<16x64xf32> to vector<8x64xf32>
    %38 = vector.extract_strided_slice %35 {offsets = [0, 0], sizes = [8, 32], strides = [1, 1]} : vector<8x64xf32> to vector<8x32xf32>
    %39 = vector.extract_strided_slice %36 {offsets = [0, 0], sizes = [8, 32], strides = [1, 1]} : vector<8x64xf32> to vector<8x32xf32>
    %40 = vector.extract_strided_slice %37 {offsets = [0, 0], sizes = [8, 32], strides = [1, 1]} : vector<8x64xf32> to vector<8x32xf32>
    %41 = arith.truncf %38 : vector<8x32xf32> to vector<8x32xbf16>
    %42 = arith.truncf %39 : vector<8x32xf32> to vector<8x32xbf16>
    %cst_22 = arith.constant dense<0.000000e+00> : vector<8x8xf32>
    %43 = tpu.matmul %41, %42, %cst_22 {dimension_numbers = #tpu.dot_dimension_numbers<[1], [1], [0], [0], [0, 0, 1, 0], [], []>} : vector<8x32xbf16>, vector<8x32xbf16>, vector<8x8xf32> -> vector<8x8xf32>
    %cst_23 = arith.constant 0.176776692 : f32
    %44 = vector.broadcast %cst_23 : f32 to vector<8x8xf32>
    %45 = arith.mulf %43, %44 : vector<8x8xf32>
    %cst_24 = arith.constant dense<0xFF800000> : vector<8xf32>
    %46 = vector.multi_reduction <maximumf>, %45, %cst_24 [1] : vector<8x8xf32> to vector<8xf32>
    %47 = vector.shape_cast %46 : vector<8xf32> to vector<8x1xf32>
    %48 = vector.broadcast %47 : vector<8x1xf32> to vector<8x8xf32>
    %49 = arith.subf %45, %48 : vector<8x8xf32>
    %50 = math.exp %49 : vector<8x8xf32>
    %cst_25 = arith.constant dense<0.000000e+00> : vector<8xf32>
    %51 = vector.multi_reduction <add>, %50, %cst_25 [1] : vector<8x8xf32> to vector<8xf32>
    %52 = vector.shape_cast %51 : vector<8xf32> to vector<8x1xf32>
    %53 = tpu.reciprocal %52 {approx = true} : vector<8x1xf32> -> vector<8x1xf32>
    %54 = vector.broadcast %53 : vector<8x1xf32> to vector<8x8xf32>
    %55 = arith.mulf %50, %54 : vector<8x8xf32>
    %56 = arith.truncf %55 : vector<8x8xf32> to vector<8x8xbf16>
    %57 = arith.truncf %40 : vector<8x32xf32> to vector<8x32xbf16>
    %cst_26 = arith.constant dense<0.000000e+00> : vector<8x32xf32>
    %58 = tpu.matmul %56, %57, %cst_26 {dimension_numbers = #tpu.dot_dimension_numbers<[1], [0], [0], [1], [0, 0, 1, 1], [], []>} : vector<8x8xbf16>, vector<8x32xbf16>, vector<8x32xf32> -> vector<8x32xf32>
    %59 = vector.extract_strided_slice %35 {offsets = [0, 32], sizes = [8, 32], strides = [1, 1]} : vector<8x64xf32> to vector<8x32xf32>
    %60 = vector.extract_strided_slice %36 {offsets = [0, 32], sizes = [8, 32], strides = [1, 1]} : vector<8x64xf32> to vector<8x32xf32>
    %61 = vector.extract_strided_slice %37 {offsets = [0, 32], sizes = [8, 32], strides = [1, 1]} : vector<8x64xf32> to vector<8x32xf32>
    %62 = arith.truncf %59 : vector<8x32xf32> to vector<8x32xbf16>
    %63 = arith.truncf %60 : vector<8x32xf32> to vector<8x32xbf16>
    %cst_27 = arith.constant dense<0.000000e+00> : vector<8x8xf32>
    %64 = tpu.matmul %62, %63, %cst_27 {dimension_numbers = #tpu.dot_dimension_numbers<[1], [1], [0], [0], [0, 0, 1, 0], [], []>} : vector<8x32xbf16>, vector<8x32xbf16>, vector<8x8xf32> -> vector<8x8xf32>
    %cst_28 = arith.constant 0.176776692 : f32
    %65 = vector.broadcast %cst_28 : f32 to vector<8x8xf32>
    %66 = arith.mulf %64, %65 : vector<8x8xf32>
    %cst_29 = arith.constant dense<0xFF800000> : vector<8xf32>
    %67 = vector.multi_reduction <maximumf>, %66, %cst_29 [1] : vector<8x8xf32> to vector<8xf32>
    %68 = vector.shape_cast %67 : vector<8xf32> to vector<8x1xf32>
    %69 = vector.broadcast %68 : vector<8x1xf32> to vector<8x8xf32>
    %70 = arith.subf %66, %69 : vector<8x8xf32>
    %71 = math.exp %70 : vector<8x8xf32>
    %cst_30 = arith.constant dense<0.000000e+00> : vector<8xf32>
    %72 = vector.multi_reduction <add>, %71, %cst_30 [1] : vector<8x8xf32> to vector<8xf32>
    %73 = vector.shape_cast %72 : vector<8xf32> to vector<8x1xf32>
    %74 = tpu.reciprocal %73 {approx = true} : vector<8x1xf32> -> vector<8x1xf32>
    %75 = vector.broadcast %74 : vector<8x1xf32> to vector<8x8xf32>
    %76 = arith.mulf %71, %75 : vector<8x8xf32>
    %77 = arith.truncf %76 : vector<8x8xf32> to vector<8x8xbf16>
    %78 = arith.truncf %61 : vector<8x32xf32> to vector<8x32xbf16>
    %cst_31 = arith.constant dense<0.000000e+00> : vector<8x32xf32>
    %79 = tpu.matmul %77, %78, %cst_31 {dimension_numbers = #tpu.dot_dimension_numbers<[1], [0], [0], [1], [0, 0, 1, 1], [], []>} : vector<8x8xbf16>, vector<8x32xbf16>, vector<8x32xf32> -> vector<8x32xf32>
    %80 = tpu.concatenate %58, %79 in 1 : vector<8x32xf32>, vector<8x32xf32> -> vector<8x64xf32>
    %81 = vector.extract_strided_slice %32 {offsets = [8, 0], sizes = [8, 64], strides = [1, 1]} : vector<16x64xf32> to vector<8x64xf32>
    %82 = vector.extract_strided_slice %33 {offsets = [8, 0], sizes = [8, 64], strides = [1, 1]} : vector<16x64xf32> to vector<8x64xf32>
    %83 = vector.extract_strided_slice %34 {offsets = [8, 0], sizes = [8, 64], strides = [1, 1]} : vector<16x64xf32> to vector<8x64xf32>
    %84 = vector.extract_strided_slice %81 {offsets = [0, 0], sizes = [8, 32], strides = [1, 1]} : vector<8x64xf32> to vector<8x32xf32>
    %85 = vector.extract_strided_slice %82 {offsets = [0, 0], sizes = [8, 32], strides = [1, 1]} : vector<8x64xf32> to vector<8x32xf32>
    %86 = vector.extract_strided_slice %83 {offsets = [0, 0], sizes = [8, 32], strides = [1, 1]} : vector<8x64xf32> to vector<8x32xf32>
    %87 = arith.truncf %84 : vector<8x32xf32> to vector<8x32xbf16>
    %88 = arith.truncf %85 : vector<8x32xf32> to vector<8x32xbf16>
    %cst_32 = arith.constant dense<0.000000e+00> : vector<8x8xf32>
    %89 = tpu.matmul %87, %88, %cst_32 {dimension_numbers = #tpu.dot_dimension_numbers<[1], [1], [0], [0], [0, 0, 1, 0], [], []>} : vector<8x32xbf16>, vector<8x32xbf16>, vector<8x8xf32> -> vector<8x8xf32>
    %cst_33 = arith.constant 0.176776692 : f32
    %90 = vector.broadcast %cst_33 : f32 to vector<8x8xf32>
    %91 = arith.mulf %89, %90 : vector<8x8xf32>
    %cst_34 = arith.constant dense<0xFF800000> : vector<8xf32>
    %92 = vector.multi_reduction <maximumf>, %91, %cst_34 [1] : vector<8x8xf32> to vector<8xf32>
    %93 = vector.shape_cast %92 : vector<8xf32> to vector<8x1xf32>
    %94 = vector.broadcast %93 : vector<8x1xf32> to vector<8x8xf32>
    %95 = arith.subf %91, %94 : vector<8x8xf32>
    %96 = math.exp %95 : vector<8x8xf32>
    %cst_35 = arith.constant dense<0.000000e+00> : vector<8xf32>
    %97 = vector.multi_reduction <add>, %96, %cst_35 [1] : vector<8x8xf32> to vector<8xf32>
    %98 = vector.shape_cast %97 : vector<8xf32> to vector<8x1xf32>
    %99 = tpu.reciprocal %98 {approx = true} : vector<8x1xf32> -> vector<8x1xf32>
    %100 = vector.broadcast %99 : vector<8x1xf32> to vector<8x8xf32>
    %101 = arith.mulf %96, %100 : vector<8x8xf32>
    %102 = arith.truncf %101 : vector<8x8xf32> to vector<8x8xbf16>
    %103 = arith.truncf %86 : vector<8x32xf32> to vector<8x32xbf16>
    %cst_36 = arith.constant dense<0.000000e+00> : vector<8x32xf32>
    %104 = tpu.matmul %102, %103, %cst_36 {dimension_numbers = #tpu.dot_dimension_numbers<[1], [0], [0], [1], [0, 0, 1, 1], [], []>} : vector<8x8xbf16>, vector<8x32xbf16>, vector<8x32xf32> -> vector<8x32xf32>
    %105 = vector.extract_strided_slice %81 {offsets = [0, 32], sizes = [8, 32], strides = [1, 1]} : vector<8x64xf32> to vector<8x32xf32>
    %106 = vector.extract_strided_slice %82 {offsets = [0, 32], sizes = [8, 32], strides = [1, 1]} : vector<8x64xf32> to vector<8x32xf32>
    %107 = vector.extract_strided_slice %83 {offsets = [0, 32], sizes = [8, 32], strides = [1, 1]} : vector<8x64xf32> to vector<8x32xf32>
    %108 = arith.truncf %105 : vector<8x32xf32> to vector<8x32xbf16>
    %109 = arith.truncf %106 : vector<8x32xf32> to vector<8x32xbf16>
    %cst_37 = arith.constant dense<0.000000e+00> : vector<8x8xf32>
    %110 = tpu.matmul %108, %109, %cst_37 {dimension_numbers = #tpu.dot_dimension_numbers<[1], [1], [0], [0], [0, 0, 1, 0], [], []>} : vector<8x32xbf16>, vector<8x32xbf16>, vector<8x8xf32> -> vector<8x8xf32>
    %cst_38 = arith.constant 0.176776692 : f32
    %111 = vector.broadcast %cst_38 : f32 to vector<8x8xf32>
    %112 = arith.mulf %110, %111 : vector<8x8xf32>
    %cst_39 = arith.constant dense<0xFF800000> : vector<8xf32>
    %113 = vector.multi_reduction <maximumf>, %112, %cst_39 [1] : vector<8x8xf32> to vector<8xf32>
    %114 = vector.shape_cast %113 : vector<8xf32> to vector<8x1xf32>
    %115 = vector.broadcast %114 : vector<8x1xf32> to vector<8x8xf32>
    %116 = arith.subf %112, %115 : vector<8x8xf32>
    %117 = math.exp %116 : vector<8x8xf32>
    %cst_40 = arith.constant dense<0.000000e+00> : vector<8xf32>
    %118 = vector.multi_reduction <add>, %117, %cst_40 [1] : vector<8x8xf32> to vector<8xf32>
    %119 = vector.shape_cast %118 : vector<8xf32> to vector<8x1xf32>
    %120 = tpu.reciprocal %119 {approx = true} : vector<8x1xf32> -> vector<8x1xf32>
    %121 = vector.broadcast %120 : vector<8x1xf32> to vector<8x8xf32>
    %122 = arith.mulf %117, %121 : vector<8x8xf32>
    %123 = arith.truncf %122 : vector<8x8xf32> to vector<8x8xbf16>
    %124 = arith.truncf %107 : vector<8x32xf32> to vector<8x32xbf16>
    %cst_41 = arith.constant dense<0.000000e+00> : vector<8x32xf32>
    %125 = tpu.matmul %123, %124, %cst_41 {dimension_numbers = #tpu.dot_dimension_numbers<[1], [0], [0], [1], [0, 0, 1, 1], [], []>} : vector<8x8xbf16>, vector<8x32xbf16>, vector<8x32xf32> -> vector<8x32xf32>
    %126 = tpu.concatenate %104, %125 in 1 : vector<8x32xf32>, vector<8x32xf32> -> vector<8x64xf32>
    %127 = tpu.concatenate %80, %126 in 0 : vector<8x64xf32>, vector<8x64xf32> -> vector<16x64xf32>
    %128 = arith.truncf %127 : vector<16x64xf32> to vector<16x64xbf16>
    %129 = arith.truncf %3 : vector<64x64xf32> to vector<64x64xbf16>
    %cst_42 = arith.constant dense<0.000000e+00> : vector<16x64xf32>
    %130 = tpu.matmul %128, %129, %cst_42 {dimension_numbers = #tpu.dot_dimension_numbers<[1], [0], [0], [1], [0, 0, 1, 1], [], []>} : vector<16x64xbf16>, vector<64x64xbf16>, vector<16x64xf32> -> vector<16x64xf32>
    %131 = arith.addf %0, %130 : vector<16x64xf32>
    %cst_43 = arith.constant dense<0.000000e+00> : vector<16xf32>
    %132 = vector.multi_reduction <add>, %131, %cst_43 [1] : vector<16x64xf32> to vector<16xf32>
    %133 = vector.shape_cast %132 : vector<16xf32> to vector<16x1xf32>
    %cst_44 = arith.constant 6.400000e+01 : f32
    %134 = vector.broadcast %cst_44 : f32 to vector<16x1xf32>
    %135 = arith.divf %133, %134 : vector<16x1xf32>
    %136 = vector.broadcast %135 : vector<16x1xf32> to vector<16x64xf32>
    %137 = arith.subf %131, %136 : vector<16x64xf32>
    %138 = arith.mulf %137, %137 : vector<16x64xf32>
    %cst_45 = arith.constant dense<0.000000e+00> : vector<16xf32>
    %139 = vector.multi_reduction <add>, %138, %cst_45 [1] : vector<16x64xf32> to vector<16xf32>
    %140 = vector.shape_cast %139 : vector<16xf32> to vector<16x1xf32>
    %cst_46 = arith.constant 6.400000e+01 : f32
    %141 = vector.broadcast %cst_46 : f32 to vector<16x1xf32>
    %142 = arith.divf %140, %141 : vector<16x1xf32>
    %143 = vector.broadcast %135 : vector<16x1xf32> to vector<16x64xf32>
    %144 = arith.subf %131, %143 : vector<16x64xf32>
    %cst_47 = arith.constant 9.99999974E-6 : f32
    %145 = vector.broadcast %cst_47 : f32 to vector<16x1xf32>
    %146 = arith.addf %142, %145 : vector<16x1xf32>
    %147 = math.rsqrt %146 : vector<16x1xf32>
    %148 = vector.broadcast %147 : vector<16x1xf32> to vector<16x64xf32>
    %149 = arith.mulf %144, %148 : vector<16x64xf32>
    %150 = vector.broadcast %4 : vector<1x64xf32> to vector<16x64xf32>
    %151 = arith.mulf %149, %150 : vector<16x64xf32>
    %152 = arith.truncf %151 : vector<16x64xf32> to vector<16x64xbf16>
    %153 = arith.truncf %5 : vector<64x256xf32> to vector<64x256xbf16>
    %cst_48 = arith.constant dense<0.000000e+00> : vector<16x256xf32>
    %154 = tpu.matmul %152, %153, %cst_48 {dimension_numbers = #tpu.dot_dimension_numbers<[1], [0], [0], [1], [0, 0, 1, 1], [], []>} : vector<16x64xbf16>, vector<64x256xbf16>, vector<16x256xf32> -> vector<16x256xf32>
    %155 = vector.broadcast %6 : vector<1x256xf32> to vector<16x256xf32>
    %156 = arith.addf %154, %155 : vector<16x256xf32>
    %157 = arith.mulf %156, %156 : vector<16x256xf32>
    %158 = arith.mulf %156, %157 : vector<16x256xf32>
    %cst_49 = arith.constant 4.471500e-02 : f32
    %159 = vector.broadcast %cst_49 : f32 to vector<16x256xf32>
    %160 = arith.mulf %159, %158 : vector<16x256xf32>
    %161 = arith.addf %156, %160 : vector<16x256xf32>
    %cst_50 = arith.constant 0.797884583 : f32
    %162 = vector.broadcast %cst_50 : f32 to vector<16x256xf32>
    %163 = arith.mulf %162, %161 : vector<16x256xf32>
    %164 = math.tanh %163 : vector<16x256xf32>
    %cst_51 = arith.constant 1.000000e+00 : f32
    %165 = vector.broadcast %cst_51 : f32 to vector<16x256xf32>
    %166 = arith.addf %165, %164 : vector<16x256xf32>
    %cst_52 = arith.constant 5.000000e-01 : f32
    %167 = vector.broadcast %cst_52 : f32 to vector<16x256xf32>
    %168 = arith.mulf %167, %166 : vector<16x256xf32>
    %169 = arith.mulf %156, %168 : vector<16x256xf32>
    %170 = arith.truncf %169 : vector<16x256xf32> to vector<16x256xbf16>
    %171 = arith.truncf %7 : vector<256x64xf32> to vector<256x64xbf16>
    %cst_53 = arith.constant dense<0.000000e+00> : vector<16x64xf32>
    %172 = tpu.matmul %170, %171, %cst_53 {dimension_numbers = #tpu.dot_dimension_numbers<[1], [0], [0], [1], [0, 0, 1, 1], [], []>} : vector<16x256xbf16>, vector<256x64xbf16>, vector<16x64xf32> -> vector<16x64xf32>
    %173 = vector.broadcast %8 : vector<1x64xf32> to vector<16x64xf32>
    %174 = arith.addf %172, %173 : vector<16x64xf32>
    %175 = arith.addf %131, %174 : vector<16x64xf32>
    %c0_54 = arith.constant 0 : index
    %c0_55 = arith.constant 0 : index
    %176 = vector.load %arg9[%c0_54, %c0_55] : memref<1x64xf32, #tpu.memory_space<vmem>>, vector<1x64xf32>
    %cst_56 = arith.constant dense<0.000000e+00> : vector<16xf32>
    %177 = vector.multi_reduction <add>, %175, %cst_56 [1] : vector<16x64xf32> to vector<16xf32>
    %178 = vector.shape_cast %177 : vector<16xf32> to vector<16x1xf32>
    %cst_57 = arith.constant 6.400000e+01 : f32
    %179 = vector.broadcast %cst_57 : f32 to vector<16x1xf32>
    %180 = arith.divf %178, %179 : vector<16x1xf32>
    %181 = vector.broadcast %180 : vector<16x1xf32> to vector<16x64xf32>
    %182 = arith.subf %175, %181 : vector<16x64xf32>
    %183 = arith.mulf %182, %182 : vector<16x64xf32>
    %cst_58 = arith.constant dense<0.000000e+00> : vector<16xf32>
    %184 = vector.multi_reduction <add>, %183, %cst_58 [1] : vector<16x64xf32> to vector<16xf32>
    %185 = vector.shape_cast %184 : vector<16xf32> to vector<16x1xf32>
    %cst_59 = arith.constant 6.400000e+01 : f32
    %186 = vector.broadcast %cst_59 : f32 to vector<16x1xf32>
    %187 = arith.divf %185, %186 : vector<16x1xf32>
    %188 = vector.broadcast %180 : vector<16x1xf32> to vector<16x64xf32>
    %189 = arith.subf %175, %188 : vector<16x64xf32>
    %cst_60 = arith.constant 9.99999974E-6 : f32
    %190 = vector.broadcast %cst_60 : f32 to vector<16x1xf32>
    %191 = arith.addf %187, %190 : vector<16x1xf32>
    %192 = math.rsqrt %191 : vector<16x1xf32>
    %193 = vector.broadcast %192 : vector<16x1xf32> to vector<16x64xf32>
    %194 = arith.mulf %189, %193 : vector<16x64xf32>
    %195 = vector.broadcast %176 : vector<1x64xf32> to vector<16x64xf32>
    %196 = arith.mulf %194, %195 : vector<16x64xf32>
    %c0_61 = arith.constant 0 : index
    %c0_62 = arith.constant 0 : index
    %197 = vector.load %arg10[%c0_61, %c0_62] : memref<16x64xf32, #tpu.memory_space<vmem>>, vector<16x64xf32>
    tpu.vector_store %arg10[%c0_61, %c0_62], %196 {strides = array<i32>} : memref<16x64xf32, #tpu.memory_space<vmem>>, vector<16x64xf32>,
    return
  }
}

module attributes {stable_mosaic.version = 11 : i64} {
  func.func @_decoder_kernel(%arg0: memref<16x64xf32, #tpu.memory_space<vmem>>, %arg1: memref<16x64xf32, #tpu.memory_space<vmem>>, %arg2: memref<1x64xf32, #tpu.memory_space<vmem>>, %arg3: memref<64x192xf32, #tpu.memory_space<vmem>>, %arg4: memref<64x64xf32, #tpu.memory_space<vmem>>, %arg5: memref<1x64xf32, #tpu.memory_space<vmem>>, %arg6: memref<64x64xf32, #tpu.memory_space<vmem>>, %arg7: memref<64x128xf32, #tpu.memory_space<vmem>>, %arg8: memref<64x64xf32, #tpu.memory_space<vmem>>, %arg9: memref<1x64xf32, #tpu.memory_space<vmem>>, %arg10: memref<64x256xf32, #tpu.memory_space<vmem>>, %arg11: memref<1x256xf32, #tpu.memory_space<vmem>>, %arg12: memref<256x64xf32, #tpu.memory_space<vmem>>, %arg13: memref<1x64xf32, #tpu.memory_space<vmem>>, %arg14: memref<1x64xf32, #tpu.memory_space<vmem>>, %arg15: memref<64x256xf32, #tpu.memory_space<vmem>>, %arg16: memref<16x256xf32, #tpu.memory_space<vmem>>) attributes {dimension_semantics = [], scalar_prefetch = 0 : i64, scratch_operands = 0 : i64, tpu.core_type = #tpu.core_type<tc>} {
    %c0 = arith.constant 0 : index
    %c0_0 = arith.constant 0 : index
    %0 = vector.load %arg0[%c0, %c0_0] : memref<16x64xf32, #tpu.memory_space<vmem>>, vector<16x64xf32>
    %c0_1 = arith.constant 0 : index
    %c0_2 = arith.constant 0 : index
    %1 = vector.load %arg1[%c0_1, %c0_2] : memref<16x64xf32, #tpu.memory_space<vmem>>, vector<16x64xf32>
    %c0_3 = arith.constant 0 : index
    %c0_4 = arith.constant 0 : index
    %2 = vector.load %arg2[%c0_3, %c0_4] : memref<1x64xf32, #tpu.memory_space<vmem>>, vector<1x64xf32>
    %c0_5 = arith.constant 0 : index
    %c0_6 = arith.constant 0 : index
    %3 = vector.load %arg3[%c0_5, %c0_6] : memref<64x192xf32, #tpu.memory_space<vmem>>, vector<64x192xf32>
    %c0_7 = arith.constant 0 : index
    %c0_8 = arith.constant 0 : index
    %4 = vector.load %arg4[%c0_7, %c0_8] : memref<64x64xf32, #tpu.memory_space<vmem>>, vector<64x64xf32>
    %c0_9 = arith.constant 0 : index
    %c0_10 = arith.constant 0 : index
    %5 = vector.load %arg5[%c0_9, %c0_10] : memref<1x64xf32, #tpu.memory_space<vmem>>, vector<1x64xf32>
    %c0_11 = arith.constant 0 : index
    %c0_12 = arith.constant 0 : index
    %6 = vector.load %arg6[%c0_11, %c0_12] : memref<64x64xf32, #tpu.memory_space<vmem>>, vector<64x64xf32>
    %c0_13 = arith.constant 0 : index
    %c0_14 = arith.constant 0 : index
    %7 = vector.load %arg7[%c0_13, %c0_14] : memref<64x128xf32, #tpu.memory_space<vmem>>, vector<64x128xf32>
    %c0_15 = arith.constant 0 : index
    %c0_16 = arith.constant 0 : index
    %8 = vector.load %arg8[%c0_15, %c0_16] : memref<64x64xf32, #tpu.memory_space<vmem>>, vector<64x64xf32>
    %c0_17 = arith.constant 0 : index
    %c0_18 = arith.constant 0 : index
    %9 = vector.load %arg9[%c0_17, %c0_18] : memref<1x64xf32, #tpu.memory_space<vmem>>, vector<1x64xf32>
    %c0_19 = arith.constant 0 : index
    %c0_20 = arith.constant 0 : index
    %10 = vector.load %arg10[%c0_19, %c0_20] : memref<64x256xf32, #tpu.memory_space<vmem>>, vector<64x256xf32>
    %c0_21 = arith.constant 0 : index
    %c0_22 = arith.constant 0 : index
    %11 = vector.load %arg11[%c0_21, %c0_22] : memref<1x256xf32, #tpu.memory_space<vmem>>, vector<1x256xf32>
    %c0_23 = arith.constant 0 : index
    %c0_24 = arith.constant 0 : index
    %12 = vector.load %arg12[%c0_23, %c0_24] : memref<256x64xf32, #tpu.memory_space<vmem>>, vector<256x64xf32>
    %c0_25 = arith.constant 0 : index
    %c0_26 = arith.constant 0 : index
    %13 = vector.load %arg13[%c0_25, %c0_26] : memref<1x64xf32, #tpu.memory_space<vmem>>, vector<1x64xf32>
    %cst = arith.constant dense<0.000000e+00> : vector<16xf32>
    %14 = vector.multi_reduction <add>, %0, %cst [1] : vector<16x64xf32> to vector<16xf32>
    %15 = vector.shape_cast %14 : vector<16xf32> to vector<16x1xf32>
    %cst_27 = arith.constant 6.400000e+01 : f32
    %16 = vector.broadcast %cst_27 : f32 to vector<16x1xf32>
    %17 = arith.divf %15, %16 : vector<16x1xf32>
    %18 = vector.broadcast %17 : vector<16x1xf32> to vector<16x64xf32>
    %19 = arith.subf %0, %18 : vector<16x64xf32>
    %20 = arith.mulf %19, %19 : vector<16x64xf32>
    %cst_28 = arith.constant dense<0.000000e+00> : vector<16xf32>
    %21 = vector.multi_reduction <add>, %20, %cst_28 [1] : vector<16x64xf32> to vector<16xf32>
    %22 = vector.shape_cast %21 : vector<16xf32> to vector<16x1xf32>
    %cst_29 = arith.constant 6.400000e+01 : f32
    %23 = vector.broadcast %cst_29 : f32 to vector<16x1xf32>
    %24 = arith.divf %22, %23 : vector<16x1xf32>
    %25 = vector.broadcast %17 : vector<16x1xf32> to vector<16x64xf32>
    %26 = arith.subf %0, %25 : vector<16x64xf32>
    %cst_30 = arith.constant 9.99999974E-6 : f32
    %27 = vector.broadcast %cst_30 : f32 to vector<16x1xf32>
    %28 = arith.addf %24, %27 : vector<16x1xf32>
    %29 = math.rsqrt %28 : vector<16x1xf32>
    %30 = vector.broadcast %29 : vector<16x1xf32> to vector<16x64xf32>
    %31 = arith.mulf %26, %30 : vector<16x64xf32>
    %32 = vector.broadcast %2 : vector<1x64xf32> to vector<16x64xf32>
    %33 = arith.mulf %31, %32 : vector<16x64xf32>
    %34 = arith.truncf %33 : vector<16x64xf32> to vector<16x64xbf16>
    %35 = arith.truncf %3 : vector<64x192xf32> to vector<64x192xbf16>
    %cst_31 = arith.constant dense<0.000000e+00> : vector<16x192xf32>
    %36 = tpu.matmul %34, %35, %cst_31 {dimension_numbers = #tpu.dot_dimension_numbers<[1], [0], [0], [1], [0, 0, 1, 1], [], []>} : vector<16x64xbf16>, vector<64x192xbf16>, vector<16x192xf32> -> vector<16x192xf32>
    %37 = vector.extract_strided_slice %36 {offsets = [0, 0], sizes = [16, 64], strides = [1, 1]} : vector<16x192xf32> to vector<16x64xf32>
    %38 = vector.extract_strided_slice %36 {offsets = [0, 64], sizes = [16, 64], strides = [1, 1]} : vector<16x192xf32> to vector<16x64xf32>
    %39 = vector.extract_strided_slice %36 {offsets = [0, 128], sizes = [16, 64], strides = [1, 1]} : vector<16x192xf32> to vector<16x64xf32>
    %40 = vector.extract_strided_slice %37 {offsets = [0, 0], sizes = [8, 64], strides = [1, 1]} : vector<16x64xf32> to vector<8x64xf32>
    %41 = vector.extract_strided_slice %38 {offsets = [0, 0], sizes = [8, 64], strides = [1, 1]} : vector<16x64xf32> to vector<8x64xf32>
    %42 = vector.extract_strided_slice %39 {offsets = [0, 0], sizes = [8, 64], strides = [1, 1]} : vector<16x64xf32> to vector<8x64xf32>
    %43 = vector.extract_strided_slice %40 {offsets = [0, 0], sizes = [8, 32], strides = [1, 1]} : vector<8x64xf32> to vector<8x32xf32>
    %44 = vector.extract_strided_slice %41 {offsets = [0, 0], sizes = [8, 32], strides = [1, 1]} : vector<8x64xf32> to vector<8x32xf32>
    %45 = vector.extract_strided_slice %42 {offsets = [0, 0], sizes = [8, 32], strides = [1, 1]} : vector<8x64xf32> to vector<8x32xf32>
    %46 = arith.truncf %43 : vector<8x32xf32> to vector<8x32xbf16>
    %47 = arith.truncf %44 : vector<8x32xf32> to vector<8x32xbf16>
    %cst_32 = arith.constant dense<0.000000e+00> : vector<8x8xf32>
    %48 = tpu.matmul %46, %47, %cst_32 {dimension_numbers = #tpu.dot_dimension_numbers<[1], [1], [0], [0], [0, 0, 1, 0], [], []>} : vector<8x32xbf16>, vector<8x32xbf16>, vector<8x8xf32> -> vector<8x8xf32>
    %cst_33 = arith.constant 0.176776692 : f32
    %49 = vector.broadcast %cst_33 : f32 to vector<8x8xf32>
    %50 = arith.mulf %48, %49 : vector<8x8xf32>
    %51 = tpu.iota {dimensions = array<i32: 0>} : vector<8x8xi32>
    %52 = tpu.iota {dimensions = array<i32: 1>} : vector<8x8xi32>
    %53 = arith.cmpi sle, %52, %51 : vector<8x8xi32>
    %cst_34 = arith.constant -3.40282347E+38 : f32
    %54 = vector.broadcast %cst_34 : f32 to vector<8x8xf32>
    %55 = arith.select %53, %50, %54 : vector<8x8xi1>, vector<8x8xf32>
    %cst_35 = arith.constant dense<0xFF800000> : vector<8xf32>
    %56 = vector.multi_reduction <maximumf>, %55, %cst_35 [1] : vector<8x8xf32> to vector<8xf32>
    %57 = vector.shape_cast %56 : vector<8xf32> to vector<8x1xf32>
    %58 = vector.broadcast %57 : vector<8x1xf32> to vector<8x8xf32>
    %59 = arith.subf %55, %58 : vector<8x8xf32>
    %60 = math.exp %59 : vector<8x8xf32>
    %cst_36 = arith.constant dense<0.000000e+00> : vector<8xf32>
    %61 = vector.multi_reduction <add>, %60, %cst_36 [1] : vector<8x8xf32> to vector<8xf32>
    %62 = vector.shape_cast %61 : vector<8xf32> to vector<8x1xf32>
    %63 = tpu.reciprocal %62 {approx = true} : vector<8x1xf32> -> vector<8x1xf32>
    %64 = vector.broadcast %63 : vector<8x1xf32> to vector<8x8xf32>
    %65 = arith.mulf %60, %64 : vector<8x8xf32>
    %66 = arith.truncf %65 : vector<8x8xf32> to vector<8x8xbf16>
    %67 = arith.truncf %45 : vector<8x32xf32> to vector<8x32xbf16>
    %cst_37 = arith.constant dense<0.000000e+00> : vector<8x32xf32>
    %68 = tpu.matmul %66, %67, %cst_37 {dimension_numbers = #tpu.dot_dimension_numbers<[1], [0], [0], [1], [0, 0, 1, 1], [], []>} : vector<8x8xbf16>, vector<8x32xbf16>, vector<8x32xf32> -> vector<8x32xf32>
    %69 = vector.extract_strided_slice %40 {offsets = [0, 32], sizes = [8, 32], strides = [1, 1]} : vector<8x64xf32> to vector<8x32xf32>
    %70 = vector.extract_strided_slice %41 {offsets = [0, 32], sizes = [8, 32], strides = [1, 1]} : vector<8x64xf32> to vector<8x32xf32>
    %71 = vector.extract_strided_slice %42 {offsets = [0, 32], sizes = [8, 32], strides = [1, 1]} : vector<8x64xf32> to vector<8x32xf32>
    %72 = arith.truncf %69 : vector<8x32xf32> to vector<8x32xbf16>
    %73 = arith.truncf %70 : vector<8x32xf32> to vector<8x32xbf16>
    %cst_38 = arith.constant dense<0.000000e+00> : vector<8x8xf32>
    %74 = tpu.matmul %72, %73, %cst_38 {dimension_numbers = #tpu.dot_dimension_numbers<[1], [1], [0], [0], [0, 0, 1, 0], [], []>} : vector<8x32xbf16>, vector<8x32xbf16>, vector<8x8xf32> -> vector<8x8xf32>
    %cst_39 = arith.constant 0.176776692 : f32
    %75 = vector.broadcast %cst_39 : f32 to vector<8x8xf32>
    %76 = arith.mulf %74, %75 : vector<8x8xf32>
    %77 = tpu.iota {dimensions = array<i32: 0>} : vector<8x8xi32>
    %78 = tpu.iota {dimensions = array<i32: 1>} : vector<8x8xi32>
    %79 = arith.cmpi sle, %78, %77 : vector<8x8xi32>
    %cst_40 = arith.constant -3.40282347E+38 : f32
    %80 = vector.broadcast %cst_40 : f32 to vector<8x8xf32>
    %81 = arith.select %79, %76, %80 : vector<8x8xi1>, vector<8x8xf32>
    %cst_41 = arith.constant dense<0xFF800000> : vector<8xf32>
    %82 = vector.multi_reduction <maximumf>, %81, %cst_41 [1] : vector<8x8xf32> to vector<8xf32>
    %83 = vector.shape_cast %82 : vector<8xf32> to vector<8x1xf32>
    %84 = vector.broadcast %83 : vector<8x1xf32> to vector<8x8xf32>
    %85 = arith.subf %81, %84 : vector<8x8xf32>
    %86 = math.exp %85 : vector<8x8xf32>
    %cst_42 = arith.constant dense<0.000000e+00> : vector<8xf32>
    %87 = vector.multi_reduction <add>, %86, %cst_42 [1] : vector<8x8xf32> to vector<8xf32>
    %88 = vector.shape_cast %87 : vector<8xf32> to vector<8x1xf32>
    %89 = tpu.reciprocal %88 {approx = true} : vector<8x1xf32> -> vector<8x1xf32>
    %90 = vector.broadcast %89 : vector<8x1xf32> to vector<8x8xf32>
    %91 = arith.mulf %86, %90 : vector<8x8xf32>
    %92 = arith.truncf %91 : vector<8x8xf32> to vector<8x8xbf16>
    %93 = arith.truncf %71 : vector<8x32xf32> to vector<8x32xbf16>
    %cst_43 = arith.constant dense<0.000000e+00> : vector<8x32xf32>
    %94 = tpu.matmul %92, %93, %cst_43 {dimension_numbers = #tpu.dot_dimension_numbers<[1], [0], [0], [1], [0, 0, 1, 1], [], []>} : vector<8x8xbf16>, vector<8x32xbf16>, vector<8x32xf32> -> vector<8x32xf32>
    %95 = tpu.concatenate %68, %94 in 1 : vector<8x32xf32>, vector<8x32xf32> -> vector<8x64xf32>
    %96 = vector.extract_strided_slice %37 {offsets = [8, 0], sizes = [8, 64], strides = [1, 1]} : vector<16x64xf32> to vector<8x64xf32>
    %97 = vector.extract_strided_slice %38 {offsets = [8, 0], sizes = [8, 64], strides = [1, 1]} : vector<16x64xf32> to vector<8x64xf32>
    %98 = vector.extract_strided_slice %39 {offsets = [8, 0], sizes = [8, 64], strides = [1, 1]} : vector<16x64xf32> to vector<8x64xf32>
    %99 = vector.extract_strided_slice %96 {offsets = [0, 0], sizes = [8, 32], strides = [1, 1]} : vector<8x64xf32> to vector<8x32xf32>
    %100 = vector.extract_strided_slice %97 {offsets = [0, 0], sizes = [8, 32], strides = [1, 1]} : vector<8x64xf32> to vector<8x32xf32>
    %101 = vector.extract_strided_slice %98 {offsets = [0, 0], sizes = [8, 32], strides = [1, 1]} : vector<8x64xf32> to vector<8x32xf32>
    %102 = arith.truncf %99 : vector<8x32xf32> to vector<8x32xbf16>
    %103 = arith.truncf %100 : vector<8x32xf32> to vector<8x32xbf16>
    %cst_44 = arith.constant dense<0.000000e+00> : vector<8x8xf32>
    %104 = tpu.matmul %102, %103, %cst_44 {dimension_numbers = #tpu.dot_dimension_numbers<[1], [1], [0], [0], [0, 0, 1, 0], [], []>} : vector<8x32xbf16>, vector<8x32xbf16>, vector<8x8xf32> -> vector<8x8xf32>
    %cst_45 = arith.constant 0.176776692 : f32
    %105 = vector.broadcast %cst_45 : f32 to vector<8x8xf32>
    %106 = arith.mulf %104, %105 : vector<8x8xf32>
    %107 = tpu.iota {dimensions = array<i32: 0>} : vector<8x8xi32>
    %108 = tpu.iota {dimensions = array<i32: 1>} : vector<8x8xi32>
    %109 = arith.cmpi sle, %108, %107 : vector<8x8xi32>
    %cst_46 = arith.constant -3.40282347E+38 : f32
    %110 = vector.broadcast %cst_46 : f32 to vector<8x8xf32>
    %111 = arith.select %109, %106, %110 : vector<8x8xi1>, vector<8x8xf32>
    %cst_47 = arith.constant dense<0xFF800000> : vector<8xf32>
    %112 = vector.multi_reduction <maximumf>, %111, %cst_47 [1] : vector<8x8xf32> to vector<8xf32>
    %113 = vector.shape_cast %112 : vector<8xf32> to vector<8x1xf32>
    %114 = vector.broadcast %113 : vector<8x1xf32> to vector<8x8xf32>
    %115 = arith.subf %111, %114 : vector<8x8xf32>
    %116 = math.exp %115 : vector<8x8xf32>
    %cst_48 = arith.constant dense<0.000000e+00> : vector<8xf32>
    %117 = vector.multi_reduction <add>, %116, %cst_48 [1] : vector<8x8xf32> to vector<8xf32>
    %118 = vector.shape_cast %117 : vector<8xf32> to vector<8x1xf32>
    %119 = tpu.reciprocal %118 {approx = true} : vector<8x1xf32> -> vector<8x1xf32>
    %120 = vector.broadcast %119 : vector<8x1xf32> to vector<8x8xf32>
    %121 = arith.mulf %116, %120 : vector<8x8xf32>
    %122 = arith.truncf %121 : vector<8x8xf32> to vector<8x8xbf16>
    %123 = arith.truncf %101 : vector<8x32xf32> to vector<8x32xbf16>
    %cst_49 = arith.constant dense<0.000000e+00> : vector<8x32xf32>
    %124 = tpu.matmul %122, %123, %cst_49 {dimension_numbers = #tpu.dot_dimension_numbers<[1], [0], [0], [1], [0, 0, 1, 1], [], []>} : vector<8x8xbf16>, vector<8x32xbf16>, vector<8x32xf32> -> vector<8x32xf32>
    %125 = vector.extract_strided_slice %96 {offsets = [0, 32], sizes = [8, 32], strides = [1, 1]} : vector<8x64xf32> to vector<8x32xf32>
    %126 = vector.extract_strided_slice %97 {offsets = [0, 32], sizes = [8, 32], strides = [1, 1]} : vector<8x64xf32> to vector<8x32xf32>
    %127 = vector.extract_strided_slice %98 {offsets = [0, 32], sizes = [8, 32], strides = [1, 1]} : vector<8x64xf32> to vector<8x32xf32>
    %128 = arith.truncf %125 : vector<8x32xf32> to vector<8x32xbf16>
    %129 = arith.truncf %126 : vector<8x32xf32> to vector<8x32xbf16>
    %cst_50 = arith.constant dense<0.000000e+00> : vector<8x8xf32>
    %130 = tpu.matmul %128, %129, %cst_50 {dimension_numbers = #tpu.dot_dimension_numbers<[1], [1], [0], [0], [0, 0, 1, 0], [], []>} : vector<8x32xbf16>, vector<8x32xbf16>, vector<8x8xf32> -> vector<8x8xf32>
    %cst_51 = arith.constant 0.176776692 : f32
    %131 = vector.broadcast %cst_51 : f32 to vector<8x8xf32>
    %132 = arith.mulf %130, %131 : vector<8x8xf32>
    %133 = tpu.iota {dimensions = array<i32: 0>} : vector<8x8xi32>
    %134 = tpu.iota {dimensions = array<i32: 1>} : vector<8x8xi32>
    %135 = arith.cmpi sle, %134, %133 : vector<8x8xi32>
    %cst_52 = arith.constant -3.40282347E+38 : f32
    %136 = vector.broadcast %cst_52 : f32 to vector<8x8xf32>
    %137 = arith.select %135, %132, %136 : vector<8x8xi1>, vector<8x8xf32>
    %cst_53 = arith.constant dense<0xFF800000> : vector<8xf32>
    %138 = vector.multi_reduction <maximumf>, %137, %cst_53 [1] : vector<8x8xf32> to vector<8xf32>
    %139 = vector.shape_cast %138 : vector<8xf32> to vector<8x1xf32>
    %140 = vector.broadcast %139 : vector<8x1xf32> to vector<8x8xf32>
    %141 = arith.subf %137, %140 : vector<8x8xf32>
    %142 = math.exp %141 : vector<8x8xf32>
    %cst_54 = arith.constant dense<0.000000e+00> : vector<8xf32>
    %143 = vector.multi_reduction <add>, %142, %cst_54 [1] : vector<8x8xf32> to vector<8xf32>
    %144 = vector.shape_cast %143 : vector<8xf32> to vector<8x1xf32>
    %145 = tpu.reciprocal %144 {approx = true} : vector<8x1xf32> -> vector<8x1xf32>
    %146 = vector.broadcast %145 : vector<8x1xf32> to vector<8x8xf32>
    %147 = arith.mulf %142, %146 : vector<8x8xf32>
    %148 = arith.truncf %147 : vector<8x8xf32> to vector<8x8xbf16>
    %149 = arith.truncf %127 : vector<8x32xf32> to vector<8x32xbf16>
    %cst_55 = arith.constant dense<0.000000e+00> : vector<8x32xf32>
    %150 = tpu.matmul %148, %149, %cst_55 {dimension_numbers = #tpu.dot_dimension_numbers<[1], [0], [0], [1], [0, 0, 1, 1], [], []>} : vector<8x8xbf16>, vector<8x32xbf16>, vector<8x32xf32> -> vector<8x32xf32>
    %151 = tpu.concatenate %124, %150 in 1 : vector<8x32xf32>, vector<8x32xf32> -> vector<8x64xf32>
    %152 = tpu.concatenate %95, %151 in 0 : vector<8x64xf32>, vector<8x64xf32> -> vector<16x64xf32>
    %153 = arith.truncf %152 : vector<16x64xf32> to vector<16x64xbf16>
    %154 = arith.truncf %4 : vector<64x64xf32> to vector<64x64xbf16>
    %cst_56 = arith.constant dense<0.000000e+00> : vector<16x64xf32>
    %155 = tpu.matmul %153, %154, %cst_56 {dimension_numbers = #tpu.dot_dimension_numbers<[1], [0], [0], [1], [0, 0, 1, 1], [], []>} : vector<16x64xbf16>, vector<64x64xbf16>, vector<16x64xf32> -> vector<16x64xf32>
    %156 = arith.addf %0, %155 : vector<16x64xf32>
    %cst_57 = arith.constant dense<0.000000e+00> : vector<16xf32>
    %157 = vector.multi_reduction <add>, %156, %cst_57 [1] : vector<16x64xf32> to vector<16xf32>
    %158 = vector.shape_cast %157 : vector<16xf32> to vector<16x1xf32>
    %cst_58 = arith.constant 6.400000e+01 : f32
    %159 = vector.broadcast %cst_58 : f32 to vector<16x1xf32>
    %160 = arith.divf %158, %159 : vector<16x1xf32>
    %161 = vector.broadcast %160 : vector<16x1xf32> to vector<16x64xf32>
    %162 = arith.subf %156, %161 : vector<16x64xf32>
    %163 = arith.mulf %162, %162 : vector<16x64xf32>
    %cst_59 = arith.constant dense<0.000000e+00> : vector<16xf32>
    %164 = vector.multi_reduction <add>, %163, %cst_59 [1] : vector<16x64xf32> to vector<16xf32>
    %165 = vector.shape_cast %164 : vector<16xf32> to vector<16x1xf32>
    %cst_60 = arith.constant 6.400000e+01 : f32
    %166 = vector.broadcast %cst_60 : f32 to vector<16x1xf32>
    %167 = arith.divf %165, %166 : vector<16x1xf32>
    %168 = vector.broadcast %160 : vector<16x1xf32> to vector<16x64xf32>
    %169 = arith.subf %156, %168 : vector<16x64xf32>
    %cst_61 = arith.constant 9.99999974E-6 : f32
    %170 = vector.broadcast %cst_61 : f32 to vector<16x1xf32>
    %171 = arith.addf %167, %170 : vector<16x1xf32>
    %172 = math.rsqrt %171 : vector<16x1xf32>
    %173 = vector.broadcast %172 : vector<16x1xf32> to vector<16x64xf32>
    %174 = arith.mulf %169, %173 : vector<16x64xf32>
    %175 = vector.broadcast %5 : vector<1x64xf32> to vector<16x64xf32>
    %176 = arith.mulf %174, %175 : vector<16x64xf32>
    %177 = arith.truncf %176 : vector<16x64xf32> to vector<16x64xbf16>
    %178 = arith.truncf %6 : vector<64x64xf32> to vector<64x64xbf16>
    %cst_62 = arith.constant dense<0.000000e+00> : vector<16x64xf32>
    %179 = tpu.matmul %177, %178, %cst_62 {dimension_numbers = #tpu.dot_dimension_numbers<[1], [0], [0], [1], [0, 0, 1, 1], [], []>} : vector<16x64xbf16>, vector<64x64xbf16>, vector<16x64xf32> -> vector<16x64xf32>
    %180 = arith.truncf %1 : vector<16x64xf32> to vector<16x64xbf16>
    %181 = arith.truncf %7 : vector<64x128xf32> to vector<64x128xbf16>
    %cst_63 = arith.constant dense<0.000000e+00> : vector<16x128xf32>
    %182 = tpu.matmul %180, %181, %cst_63 {dimension_numbers = #tpu.dot_dimension_numbers<[1], [0], [0], [1], [0, 0, 1, 1], [], []>} : vector<16x64xbf16>, vector<64x128xbf16>, vector<16x128xf32> -> vector<16x128xf32>
    %183 = vector.extract_strided_slice %182 {offsets = [0, 0], sizes = [16, 64], strides = [1, 1]} : vector<16x128xf32> to vector<16x64xf32>
    %184 = vector.extract_strided_slice %182 {offsets = [0, 64], sizes = [16, 64], strides = [1, 1]} : vector<16x128xf32> to vector<16x64xf32>
    %185 = vector.extract_strided_slice %179 {offsets = [0, 0], sizes = [8, 64], strides = [1, 1]} : vector<16x64xf32> to vector<8x64xf32>
    %186 = vector.extract_strided_slice %183 {offsets = [0, 0], sizes = [8, 64], strides = [1, 1]} : vector<16x64xf32> to vector<8x64xf32>
    %187 = vector.extract_strided_slice %184 {offsets = [0, 0], sizes = [8, 64], strides = [1, 1]} : vector<16x64xf32> to vector<8x64xf32>
    %188 = vector.extract_strided_slice %185 {offsets = [0, 0], sizes = [8, 32], strides = [1, 1]} : vector<8x64xf32> to vector<8x32xf32>
    %189 = vector.extract_strided_slice %186 {offsets = [0, 0], sizes = [8, 32], strides = [1, 1]} : vector<8x64xf32> to vector<8x32xf32>
    %190 = vector.extract_strided_slice %187 {offsets = [0, 0], sizes = [8, 32], strides = [1, 1]} : vector<8x64xf32> to vector<8x32xf32>
    %191 = arith.truncf %188 : vector<8x32xf32> to vector<8x32xbf16>
    %192 = arith.truncf %189 : vector<8x32xf32> to vector<8x32xbf16>
    %cst_64 = arith.constant dense<0.000000e+00> : vector<8x8xf32>
    %193 = tpu.matmul %191, %192, %cst_64 {dimension_numbers = #tpu.dot_dimension_numbers<[1], [1], [0], [0], [0, 0, 1, 0], [], []>} : vector<8x32xbf16>, vector<8x32xbf16>, vector<8x8xf32> -> vector<8x8xf32>
    %cst_65 = arith.constant 0.176776692 : f32
    %194 = vector.broadcast %cst_65 : f32 to vector<8x8xf32>
    %195 = arith.mulf %193, %194 : vector<8x8xf32>
    %cst_66 = arith.constant dense<0xFF800000> : vector<8xf32>
    %196 = vector.multi_reduction <maximumf>, %195, %cst_66 [1] : vector<8x8xf32> to vector<8xf32>
    %197 = vector.shape_cast %196 : vector<8xf32> to vector<8x1xf32>
    %198 = vector.broadcast %197 : vector<8x1xf32> to vector<8x8xf32>
    %199 = arith.subf %195, %198 : vector<8x8xf32>
    %200 = math.exp %199 : vector<8x8xf32>
    %cst_67 = arith.constant dense<0.000000e+00> : vector<8xf32>
    %201 = vector.multi_reduction <add>, %200, %cst_67 [1] : vector<8x8xf32> to vector<8xf32>
    %202 = vector.shape_cast %201 : vector<8xf32> to vector<8x1xf32>
    %203 = tpu.reciprocal %202 {approx = true} : vector<8x1xf32> -> vector<8x1xf32>
    %204 = vector.broadcast %203 : vector<8x1xf32> to vector<8x8xf32>
    %205 = arith.mulf %200, %204 : vector<8x8xf32>
    %206 = arith.truncf %205 : vector<8x8xf32> to vector<8x8xbf16>
    %207 = arith.truncf %190 : vector<8x32xf32> to vector<8x32xbf16>
    %cst_68 = arith.constant dense<0.000000e+00> : vector<8x32xf32>
    %208 = tpu.matmul %206, %207, %cst_68 {dimension_numbers = #tpu.dot_dimension_numbers<[1], [0], [0], [1], [0, 0, 1, 1], [], []>} : vector<8x8xbf16>, vector<8x32xbf16>, vector<8x32xf32> -> vector<8x32xf32>
    %209 = vector.extract_strided_slice %185 {offsets = [0, 32], sizes = [8, 32], strides = [1, 1]} : vector<8x64xf32> to vector<8x32xf32>
    %210 = vector.extract_strided_slice %186 {offsets = [0, 32], sizes = [8, 32], strides = [1, 1]} : vector<8x64xf32> to vector<8x32xf32>
    %211 = vector.extract_strided_slice %187 {offsets = [0, 32], sizes = [8, 32], strides = [1, 1]} : vector<8x64xf32> to vector<8x32xf32>
    %212 = arith.truncf %209 : vector<8x32xf32> to vector<8x32xbf16>
    %213 = arith.truncf %210 : vector<8x32xf32> to vector<8x32xbf16>
    %cst_69 = arith.constant dense<0.000000e+00> : vector<8x8xf32>
    %214 = tpu.matmul %212, %213, %cst_69 {dimension_numbers = #tpu.dot_dimension_numbers<[1], [1], [0], [0], [0, 0, 1, 0], [], []>} : vector<8x32xbf16>, vector<8x32xbf16>, vector<8x8xf32> -> vector<8x8xf32>
    %cst_70 = arith.constant 0.176776692 : f32
    %215 = vector.broadcast %cst_70 : f32 to vector<8x8xf32>
    %216 = arith.mulf %214, %215 : vector<8x8xf32>
    %cst_71 = arith.constant dense<0xFF800000> : vector<8xf32>
    %217 = vector.multi_reduction <maximumf>, %216, %cst_71 [1] : vector<8x8xf32> to vector<8xf32>
    %218 = vector.shape_cast %217 : vector<8xf32> to vector<8x1xf32>
    %219 = vector.broadcast %218 : vector<8x1xf32> to vector<8x8xf32>
    %220 = arith.subf %216, %219 : vector<8x8xf32>
    %221 = math.exp %220 : vector<8x8xf32>
    %cst_72 = arith.constant dense<0.000000e+00> : vector<8xf32>
    %222 = vector.multi_reduction <add>, %221, %cst_72 [1] : vector<8x8xf32> to vector<8xf32>
    %223 = vector.shape_cast %222 : vector<8xf32> to vector<8x1xf32>
    %224 = tpu.reciprocal %223 {approx = true} : vector<8x1xf32> -> vector<8x1xf32>
    %225 = vector.broadcast %224 : vector<8x1xf32> to vector<8x8xf32>
    %226 = arith.mulf %221, %225 : vector<8x8xf32>
    %227 = arith.truncf %226 : vector<8x8xf32> to vector<8x8xbf16>
    %228 = arith.truncf %211 : vector<8x32xf32> to vector<8x32xbf16>
    %cst_73 = arith.constant dense<0.000000e+00> : vector<8x32xf32>
    %229 = tpu.matmul %227, %228, %cst_73 {dimension_numbers = #tpu.dot_dimension_numbers<[1], [0], [0], [1], [0, 0, 1, 1], [], []>} : vector<8x8xbf16>, vector<8x32xbf16>, vector<8x32xf32> -> vector<8x32xf32>
    %230 = tpu.concatenate %208, %229 in 1 : vector<8x32xf32>, vector<8x32xf32> -> vector<8x64xf32>
    %231 = vector.extract_strided_slice %179 {offsets = [8, 0], sizes = [8, 64], strides = [1, 1]} : vector<16x64xf32> to vector<8x64xf32>
    %232 = vector.extract_strided_slice %183 {offsets = [8, 0], sizes = [8, 64], strides = [1, 1]} : vector<16x64xf32> to vector<8x64xf32>
    %233 = vector.extract_strided_slice %184 {offsets = [8, 0], sizes = [8, 64], strides = [1, 1]} : vector<16x64xf32> to vector<8x64xf32>
    %234 = vector.extract_strided_slice %231 {offsets = [0, 0], sizes = [8, 32], strides = [1, 1]} : vector<8x64xf32> to vector<8x32xf32>
    %235 = vector.extract_strided_slice %232 {offsets = [0, 0], sizes = [8, 32], strides = [1, 1]} : vector<8x64xf32> to vector<8x32xf32>
    %236 = vector.extract_strided_slice %233 {offsets = [0, 0], sizes = [8, 32], strides = [1, 1]} : vector<8x64xf32> to vector<8x32xf32>
    %237 = arith.truncf %234 : vector<8x32xf32> to vector<8x32xbf16>
    %238 = arith.truncf %235 : vector<8x32xf32> to vector<8x32xbf16>
    %cst_74 = arith.constant dense<0.000000e+00> : vector<8x8xf32>
    %239 = tpu.matmul %237, %238, %cst_74 {dimension_numbers = #tpu.dot_dimension_numbers<[1], [1], [0], [0], [0, 0, 1, 0], [], []>} : vector<8x32xbf16>, vector<8x32xbf16>, vector<8x8xf32> -> vector<8x8xf32>
    %cst_75 = arith.constant 0.176776692 : f32
    %240 = vector.broadcast %cst_75 : f32 to vector<8x8xf32>
    %241 = arith.mulf %239, %240 : vector<8x8xf32>
    %cst_76 = arith.constant dense<0xFF800000> : vector<8xf32>
    %242 = vector.multi_reduction <maximumf>, %241, %cst_76 [1] : vector<8x8xf32> to vector<8xf32>
    %243 = vector.shape_cast %242 : vector<8xf32> to vector<8x1xf32>
    %244 = vector.broadcast %243 : vector<8x1xf32> to vector<8x8xf32>
    %245 = arith.subf %241, %244 : vector<8x8xf32>
    %246 = math.exp %245 : vector<8x8xf32>
    %cst_77 = arith.constant dense<0.000000e+00> : vector<8xf32>
    %247 = vector.multi_reduction <add>, %246, %cst_77 [1] : vector<8x8xf32> to vector<8xf32>
    %248 = vector.shape_cast %247 : vector<8xf32> to vector<8x1xf32>
    %249 = tpu.reciprocal %248 {approx = true} : vector<8x1xf32> -> vector<8x1xf32>
    %250 = vector.broadcast %249 : vector<8x1xf32> to vector<8x8xf32>
    %251 = arith.mulf %246, %250 : vector<8x8xf32>
    %252 = arith.truncf %251 : vector<8x8xf32> to vector<8x8xbf16>
    %253 = arith.truncf %236 : vector<8x32xf32> to vector<8x32xbf16>
    %cst_78 = arith.constant dense<0.000000e+00> : vector<8x32xf32>
    %254 = tpu.matmul %252, %253, %cst_78 {dimension_numbers = #tpu.dot_dimension_numbers<[1], [0], [0], [1], [0, 0, 1, 1], [], []>} : vector<8x8xbf16>, vector<8x32xbf16>, vector<8x32xf32> -> vector<8x32xf32>
    %255 = vector.extract_strided_slice %231 {offsets = [0, 32], sizes = [8, 32], strides = [1, 1]} : vector<8x64xf32> to vector<8x32xf32>
    %256 = vector.extract_strided_slice %232 {offsets = [0, 32], sizes = [8, 32], strides = [1, 1]} : vector<8x64xf32> to vector<8x32xf32>
    %257 = vector.extract_strided_slice %233 {offsets = [0, 32], sizes = [8, 32], strides = [1, 1]} : vector<8x64xf32> to vector<8x32xf32>
    %258 = arith.truncf %255 : vector<8x32xf32> to vector<8x32xbf16>
    %259 = arith.truncf %256 : vector<8x32xf32> to vector<8x32xbf16>
    %cst_79 = arith.constant dense<0.000000e+00> : vector<8x8xf32>
    %260 = tpu.matmul %258, %259, %cst_79 {dimension_numbers = #tpu.dot_dimension_numbers<[1], [1], [0], [0], [0, 0, 1, 0], [], []>} : vector<8x32xbf16>, vector<8x32xbf16>, vector<8x8xf32> -> vector<8x8xf32>
    %cst_80 = arith.constant 0.176776692 : f32
    %261 = vector.broadcast %cst_80 : f32 to vector<8x8xf32>
    %262 = arith.mulf %260, %261 : vector<8x8xf32>
    %cst_81 = arith.constant dense<0xFF800000> : vector<8xf32>
    %263 = vector.multi_reduction <maximumf>, %262, %cst_81 [1] : vector<8x8xf32> to vector<8xf32>
    %264 = vector.shape_cast %263 : vector<8xf32> to vector<8x1xf32>
    %265 = vector.broadcast %264 : vector<8x1xf32> to vector<8x8xf32>
    %266 = arith.subf %262, %265 : vector<8x8xf32>
    %267 = math.exp %266 : vector<8x8xf32>
    %cst_82 = arith.constant dense<0.000000e+00> : vector<8xf32>
    %268 = vector.multi_reduction <add>, %267, %cst_82 [1] : vector<8x8xf32> to vector<8xf32>
    %269 = vector.shape_cast %268 : vector<8xf32> to vector<8x1xf32>
    %270 = tpu.reciprocal %269 {approx = true} : vector<8x1xf32> -> vector<8x1xf32>
    %271 = vector.broadcast %270 : vector<8x1xf32> to vector<8x8xf32>
    %272 = arith.mulf %267, %271 : vector<8x8xf32>
    %273 = arith.truncf %272 : vector<8x8xf32> to vector<8x8xbf16>
    %274 = arith.truncf %257 : vector<8x32xf32> to vector<8x32xbf16>
    %cst_83 = arith.constant dense<0.000000e+00> : vector<8x32xf32>
    %275 = tpu.matmul %273, %274, %cst_83 {dimension_numbers = #tpu.dot_dimension_numbers<[1], [0], [0], [1], [0, 0, 1, 1], [], []>} : vector<8x8xbf16>, vector<8x32xbf16>, vector<8x32xf32> -> vector<8x32xf32>
    %276 = tpu.concatenate %254, %275 in 1 : vector<8x32xf32>, vector<8x32xf32> -> vector<8x64xf32>
    %277 = tpu.concatenate %230, %276 in 0 : vector<8x64xf32>, vector<8x64xf32> -> vector<16x64xf32>
    %278 = arith.truncf %277 : vector<16x64xf32> to vector<16x64xbf16>
    %279 = arith.truncf %8 : vector<64x64xf32> to vector<64x64xbf16>
    %cst_84 = arith.constant dense<0.000000e+00> : vector<16x64xf32>
    %280 = tpu.matmul %278, %279, %cst_84 {dimension_numbers = #tpu.dot_dimension_numbers<[1], [0], [0], [1], [0, 0, 1, 1], [], []>} : vector<16x64xbf16>, vector<64x64xbf16>, vector<16x64xf32> -> vector<16x64xf32>
    %281 = arith.addf %156, %280 : vector<16x64xf32>
    %cst_85 = arith.constant dense<0.000000e+00> : vector<16xf32>
    %282 = vector.multi_reduction <add>, %281, %cst_85 [1] : vector<16x64xf32> to vector<16xf32>
    %283 = vector.shape_cast %282 : vector<16xf32> to vector<16x1xf32>
    %cst_86 = arith.constant 6.400000e+01 : f32
    %284 = vector.broadcast %cst_86 : f32 to vector<16x1xf32>
    %285 = arith.divf %283, %284 : vector<16x1xf32>
    %286 = vector.broadcast %285 : vector<16x1xf32> to vector<16x64xf32>
    %287 = arith.subf %281, %286 : vector<16x64xf32>
    %288 = arith.mulf %287, %287 : vector<16x64xf32>
    %cst_87 = arith.constant dense<0.000000e+00> : vector<16xf32>
    %289 = vector.multi_reduction <add>, %288, %cst_87 [1] : vector<16x64xf32> to vector<16xf32>
    %290 = vector.shape_cast %289 : vector<16xf32> to vector<16x1xf32>
    %cst_88 = arith.constant 6.400000e+01 : f32
    %291 = vector.broadcast %cst_88 : f32 to vector<16x1xf32>
    %292 = arith.divf %290, %291 : vector<16x1xf32>
    %293 = vector.broadcast %285 : vector<16x1xf32> to vector<16x64xf32>
    %294 = arith.subf %281, %293 : vector<16x64xf32>
    %cst_89 = arith.constant 9.99999974E-6 : f32
    %295 = vector.broadcast %cst_89 : f32 to vector<16x1xf32>
    %296 = arith.addf %292, %295 : vector<16x1xf32>
    %297 = math.rsqrt %296 : vector<16x1xf32>
    %298 = vector.broadcast %297 : vector<16x1xf32> to vector<16x64xf32>
    %299 = arith.mulf %294, %298 : vector<16x64xf32>
    %300 = vector.broadcast %9 : vector<1x64xf32> to vector<16x64xf32>
    %301 = arith.mulf %299, %300 : vector<16x64xf32>
    %302 = arith.truncf %301 : vector<16x64xf32> to vector<16x64xbf16>
    %303 = arith.truncf %10 : vector<64x256xf32> to vector<64x256xbf16>
    %cst_90 = arith.constant dense<0.000000e+00> : vector<16x256xf32>
    %304 = tpu.matmul %302, %303, %cst_90 {dimension_numbers = #tpu.dot_dimension_numbers<[1], [0], [0], [1], [0, 0, 1, 1], [], []>} : vector<16x64xbf16>, vector<64x256xbf16>, vector<16x256xf32> -> vector<16x256xf32>
    %305 = vector.broadcast %11 : vector<1x256xf32> to vector<16x256xf32>
    %306 = arith.addf %304, %305 : vector<16x256xf32>
    %307 = arith.mulf %306, %306 : vector<16x256xf32>
    %308 = arith.mulf %306, %307 : vector<16x256xf32>
    %cst_91 = arith.constant 4.471500e-02 : f32
    %309 = vector.broadcast %cst_91 : f32 to vector<16x256xf32>
    %310 = arith.mulf %309, %308 : vector<16x256xf32>
    %311 = arith.addf %306, %310 : vector<16x256xf32>
    %cst_92 = arith.constant 0.797884583 : f32
    %312 = vector.broadcast %cst_92 : f32 to vector<16x256xf32>
    %313 = arith.mulf %312, %311 : vector<16x256xf32>
    %314 = math.tanh %313 : vector<16x256xf32>
    %cst_93 = arith.constant 1.000000e+00 : f32
    %315 = vector.broadcast %cst_93 : f32 to vector<16x256xf32>
    %316 = arith.addf %315, %314 : vector<16x256xf32>
    %cst_94 = arith.constant 5.000000e-01 : f32
    %317 = vector.broadcast %cst_94 : f32 to vector<16x256xf32>
    %318 = arith.mulf %317, %316 : vector<16x256xf32>
    %319 = arith.mulf %306, %318 : vector<16x256xf32>
    %320 = arith.truncf %319 : vector<16x256xf32> to vector<16x256xbf16>
    %321 = arith.truncf %12 : vector<256x64xf32> to vector<256x64xbf16>
    %cst_95 = arith.constant dense<0.000000e+00> : vector<16x64xf32>
    %322 = tpu.matmul %320, %321, %cst_95 {dimension_numbers = #tpu.dot_dimension_numbers<[1], [0], [0], [1], [0, 0, 1, 1], [], []>} : vector<16x256xbf16>, vector<256x64xbf16>, vector<16x64xf32> -> vector<16x64xf32>
    %323 = vector.broadcast %13 : vector<1x64xf32> to vector<16x64xf32>
    %324 = arith.addf %322, %323 : vector<16x64xf32>
    %325 = arith.addf %281, %324 : vector<16x64xf32>
    %c0_96 = arith.constant 0 : index
    %c0_97 = arith.constant 0 : index
    %326 = vector.load %arg14[%c0_96, %c0_97] : memref<1x64xf32, #tpu.memory_space<vmem>>, vector<1x64xf32>
    %c0_98 = arith.constant 0 : index
    %c0_99 = arith.constant 0 : index
    %327 = vector.load %arg15[%c0_98, %c0_99] : memref<64x256xf32, #tpu.memory_space<vmem>>, vector<64x256xf32>
    %cst_100 = arith.constant dense<0.000000e+00> : vector<16xf32>
    %328 = vector.multi_reduction <add>, %325, %cst_100 [1] : vector<16x64xf32> to vector<16xf32>
    %329 = vector.shape_cast %328 : vector<16xf32> to vector<16x1xf32>
    %cst_101 = arith.constant 6.400000e+01 : f32
    %330 = vector.broadcast %cst_101 : f32 to vector<16x1xf32>
    %331 = arith.divf %329, %330 : vector<16x1xf32>
    %332 = vector.broadcast %331 : vector<16x1xf32> to vector<16x64xf32>
    %333 = arith.subf %325, %332 : vector<16x64xf32>
    %334 = arith.mulf %333, %333 : vector<16x64xf32>
    %cst_102 = arith.constant dense<0.000000e+00> : vector<16xf32>
    %335 = vector.multi_reduction <add>, %334, %cst_102 [1] : vector<16x64xf32> to vector<16xf32>
    %336 = vector.shape_cast %335 : vector<16xf32> to vector<16x1xf32>
    %cst_103 = arith.constant 6.400000e+01 : f32
    %337 = vector.broadcast %cst_103 : f32 to vector<16x1xf32>
    %338 = arith.divf %336, %337 : vector<16x1xf32>
    %339 = vector.broadcast %331 : vector<16x1xf32> to vector<16x64xf32>
    %340 = arith.subf %325, %339 : vector<16x64xf32>
    %cst_104 = arith.constant 9.99999974E-6 : f32
    %341 = vector.broadcast %cst_104 : f32 to vector<16x1xf32>
    %342 = arith.addf %338, %341 : vector<16x1xf32>
    %343 = math.rsqrt %342 : vector<16x1xf32>
    %344 = vector.broadcast %343 : vector<16x1xf32> to vector<16x64xf32>
    %345 = arith.mulf %340, %344 : vector<16x64xf32>
    %346 = vector.broadcast %326 : vector<1x64xf32> to vector<16x64xf32>
    %347 = arith.mulf %345, %346 : vector<16x64xf32>
    %348 = arith.truncf %347 : vector<16x64xf32> to vector<16x64xbf16>
    %349 = arith.truncf %327 : vector<64x256xf32> to vector<64x256xbf16>
    %cst_105 = arith.constant dense<0.000000e+00> : vector<16x256xf32>
    %350 = tpu.matmul %348, %349, %cst_105 {dimension_numbers = #tpu.dot_dimension_numbers<[1], [0], [0], [1], [0, 0, 1, 1], [], []>} : vector<16x64xbf16>, vector<64x256xbf16>, vector<16x256xf32> -> vector<16x256xf32>
    %c0_106 = arith.constant 0 : index
    %c0_107 = arith.constant 0 : index
    %351 = vector.load %arg16[%c0_106, %c0_107] : memref<16x256xf32, #tpu.memory_space<vmem>>, vector<16x256xf32>
    tpu.vector_store %arg16[%c0_106, %c0_107], %350 {strides = array<i32>} : memref<16x256xf32, #tpu.memory_space<vmem>>, vector<16x256xf32>,
    return
  }
}

</mosaic_0001>

<llo_original>
// kernel: xtransformer_forward.2
$region0: #{xtransformer_forward.2}
  #allocation0 [shape = 'u32[]', space=smem, size = 0x4, offset = 0x4, fixed_abs, tag = 'smem constant byte address 0x4 - core index']
  #allocation1 [shape = 'u32[144,128]{1,0:T(1,128)}', space=vmem, size = 0x12000, scoped, tag = 'internal scratch']
  %s0 = inlined_call_operand.vmem [shape: f32[16,64], index: 0, kind: input, shape index: {}]
  %s1 = inlined_call_operand.vmem [shape: f32[1,64], index: 1, kind: input, shape index: {}]
  %s2 = inlined_call_operand.vmem [shape: f32[64,192], index: 2, kind: input, shape index: {}]
  %s3 = inlined_call_operand.vmem [shape: f32[64,64], index: 3, kind: input, shape index: {}]
  %s4 = inlined_call_operand.vmem [shape: f32[1,64], index: 4, kind: input, shape index: {}]
  %s5 = inlined_call_operand.vmem [shape: f32[64,256], index: 5, kind: input, shape index: {}]
  %s6 = inlined_call_operand.vmem [shape: f32[1,256], index: 6, kind: input, shape index: {}]
  %s7 = inlined_call_operand.vmem [shape: f32[256,64], index: 7, kind: input, shape index: {}]
  %s8 = inlined_call_operand.vmem [shape: f32[1,64], index: 8, kind: input, shape index: {}]
  %s9 = inlined_call_operand.vmem [shape: f32[1,64], index: 9, kind: input, shape index: {}]
  %s10 = inlined_call_operand.vmem [shape: f32[16,64], index: 10, kind: output, shape index: {}]
  %s11 = sld [smem:[#allocation0]]
  $region50: #{xtransformer_forward.2} parent=0
    _
  %s13 = ssub.s32 1, %s11
  %s14 = scalar_select 0, %s13, %s11
  // Predicated region
  $region2: #{xtransformer_forward.2} parent=0 // pred_check
    _
  $region3: #{xtransformer_forward.2} parent=0 // pred_check_branch
    %16 = sbr.rel (0) target = $region5
  $region4: #{xtransformer_forward.2} parent=0 // pred_region
    _
  $region5: #{xtransformer_forward.2} parent=0 // pred_fallthru
    _
  // Predicated region
  $region6: #{xtransformer_forward.2} parent=0 // pred_check
    _
  $region7: #{xtransformer_forward.2} parent=0 // pred_check_branch
    %18 = sbr.rel (0) target = $region9
  $region8: #{xtransformer_forward.2} parent=0 // pred_region
    _
  $region9: #{xtransformer_forward.2} parent=0 // pred_fallthru
    _
  // Predicated region
  $region10: #{xtransformer_forward.2} parent=0 // pred_check
    _
  $region11: #{xtransformer_forward.2} parent=0 // pred_check_branch
    %20 = sbr.rel (0) target = $region13
  $region12: #{xtransformer_forward.2} parent=0 // pred_region
    _
  $region13: #{xtransformer_forward.2} parent=0 // pred_fallthru
    _
  // Predicated region
  $region14: #{xtransformer_forward.2} parent=0 // pred_check
    _
  $region15: #{xtransformer_forward.2} parent=0 // pred_check_branch
    %22 = sbr.rel (0) target = $region17
  $region16: #{xtransformer_forward.2} parent=0 // pred_region
    _
  $region17: #{xtransformer_forward.2} parent=0 // pred_fallthru
    _
  // Predicated region
  $region18: #{xtransformer_forward.2} parent=0 // pred_check
    _
  $region19: #{xtransformer_forward.2} parent=0 // pred_check_branch
    %24 = sbr.rel (0) target = $region21
  $region20: #{xtransformer_forward.2} parent=0 // pred_region
    _
  $region21: #{xtransformer_forward.2} parent=0 // pred_fallthru
    _
  // Predicated region
  $region22: #{xtransformer_forward.2} parent=0 // pred_check
    _
  $region23: #{xtransformer_forward.2} parent=0 // pred_check_branch
    %26 = sbr.rel (0) target = $region25
  $region24: #{xtransformer_forward.2} parent=0 // pred_region
    _
  $region25: #{xtransformer_forward.2} parent=0 // pred_fallthru
    _
  // Predicated region
  $region26: #{xtransformer_forward.2} parent=0 // pred_check
    _
  $region27: #{xtransformer_forward.2} parent=0 // pred_check_branch
    %28 = sbr.rel (0) target = $region29
  $region28: #{xtransformer_forward.2} parent=0 // pred_region
    _
  $region29: #{xtransformer_forward.2} parent=0 // pred_fallthru
    _
  // Predicated region
  $region30: #{xtransformer_forward.2} parent=0 // pred_check
    _
  $region31: #{xtransformer_forward.2} parent=0 // pred_check_branch
    %30 = sbr.rel (0) target = $region33
  $region32: #{xtransformer_forward.2} parent=0 // pred_region
    _
  $region33: #{xtransformer_forward.2} parent=0 // pred_fallthru
    _
  // Predicated region
  $region34: #{xtransformer_forward.2} parent=0 // pred_check
    _
  $region35: #{xtransformer_forward.2} parent=0 // pred_check_branch
    %32 = sbr.rel (0) target = $region37
  $region36: #{xtransformer_forward.2} parent=0 // pred_region
    _
  $region37: #{xtransformer_forward.2} parent=0 // pred_fallthru
    _
  // Predicated region
  $region38: #{xtransformer_forward.2} parent=0 // pred_check
    _
  $region39: #{xtransformer_forward.2} parent=0 // pred_check_branch
    %34 = sbr.rel (0) target = $region41
  $region40: #{xtransformer_forward.2} parent=0 // pred_region
    _
  $region41: #{xtransformer_forward.2} parent=0 // pred_fallthru
    _
  %v36 = vld [vmem:[%s0] sm:$0xff]
  %v37 = vld [vmem:[%s0 + $0x8] sm:$0xff]
  %v38 = vld [vmem:[%s1] sm:$0x1]
  %v39 = vld [vmem:[%s2] sm:$0xff]
  %v40 = vld [vmem:[%s2 + $0x8] sm:$0xff]
  %v41 = vld [vmem:[%s2 + $0x10] sm:$0xff]
  %v42 = vld [vmem:[%s2 + $0x18] sm:$0xff]
  %v43 = vld [vmem:[%s2 + $0x20] sm:$0xff]
  %v44 = vld [vmem:[%s2 + $0x28] sm:$0xff]
  %v45 = vld [vmem:[%s2 + $0x30] sm:$0xff]
  %v46 = vld [vmem:[%s2 + $0x38] sm:$0xff]
  %v47 = vld [vmem:[%s2 + $0x40] sm:$0xff]
  %v48 = vld [vmem:[%s2 + $0x48] sm:$0xff]
  %v49 = vld [vmem:[%s2 + $0x50] sm:$0xff]
  %v50 = vld [vmem:[%s2 + $0x58] sm:$0xff]
  %v51 = vld [vmem:[%s2 + $0x60] sm:$0xff]
  %v52 = vld [vmem:[%s2 + $0x68] sm:$0xff]
  %v53 = vld [vmem:[%s2 + $0x70] sm:$0xff]
  %v54 = vld [vmem:[%s2 + $0x78] sm:$0xff]
  %v55 = vld [vmem:[%s3] sm:$0xff]
  %v56 = vld [vmem:[%s3 + $0x8] sm:$0xff]
  %v57 = vld [vmem:[%s3 + $0x10] sm:$0xff]
  %v58 = vld [vmem:[%s3 + $0x18] sm:$0xff]
  %v59 = vld [vmem:[%s3 + $0x20] sm:$0xff]
  %v60 = vld [vmem:[%s3 + $0x28] sm:$0xff]
  %v61 = vld [vmem:[%s3 + $0x30] sm:$0xff]
  %v62 = vld [vmem:[%s3 + $0x38] sm:$0xff]
  %v63 = vld [vmem:[%s4] sm:$0x1]
  %v64 = vld [vmem:[%s5] sm:$0xff]
  %v65 = vld [vmem:[%s5 + $0x8] sm:$0xff]
  %v66 = vld [vmem:[%s5 + $0x10] sm:$0xff]
  %v67 = vld [vmem:[%s5 + $0x18] sm:$0xff]
  %v68 = vld [vmem:[%s5 + $0x20] sm:$0xff]
  %v69 = vld [vmem:[%s5 + $0x28] sm:$0xff]
  %v70 = vld [vmem:[%s5 + $0x30] sm:$0xff]
  %v71 = vld [vmem:[%s5 + $0x38] sm:$0xff]
  %v72 = vld [vmem:[%s5 + $0x40] sm:$0xff]
  %v73 = vld [vmem:[%s5 + $0x48] sm:$0xff]
  %v74 = vld [vmem:[%s5 + $0x50] sm:$0xff]
  %v75 = vld [vmem:[%s5 + $0x58] sm:$0xff]
  %v76 = vld [vmem:[%s5 + $0x60] sm:$0xff]
  %v77 = vld [vmem:[%s5 + $0x68] sm:$0xff]
  %v78 = vld [vmem:[%s5 + $0x70] sm:$0xff]
  %v79 = vld [vmem:[%s5 + $0x78] sm:$0xff]
  %v80 = vld [vmem:[%s6] sm:$0x3]
  %v81 = vld [vmem:[%s7] sm:$0xff]
  %v82 = vld [vmem:[%s7 + $0x8] sm:$0xff]
  %v83 = vld [vmem:[%s7 + $0x10] sm:$0xff]
  %v84 = vld [vmem:[%s7 + $0x18] sm:$0xff]
  %v85 = vld [vmem:[%s7 + $0x20] sm:$0xff]
  %v86 = vld [vmem:[%s7 + $0x28] sm:$0xff]
  %v87 = vld [vmem:[%s7 + $0x30] sm:$0xff]
  %v88 = vld [vmem:[%s7 + $0x38] sm:$0xff]
  %v89 = vld [vmem:[%s7 + $0x40] sm:$0xff]
  %v90 = vld [vmem:[%s7 + $0x48] sm:$0xff]
  %v91 = vld [vmem:[%s7 + $0x50] sm:$0xff]
  %v92 = vld [vmem:[%s7 + $0x58] sm:$0xff]
  %v93 = vld [vmem:[%s7 + $0x60] sm:$0xff]
  %v94 = vld [vmem:[%s7 + $0x68] sm:$0xff]
  %v95 = vld [vmem:[%s7 + $0x70] sm:$0xff]
  %v96 = vld [vmem:[%s7 + $0x78] sm:$0xff]
  %v97 = vld [vmem:[%s7 + $0x80] sm:$0xff]
  %v98 = vld [vmem:[%s7 + $0x88] sm:$0xff]
  %v99 = vld [vmem:[%s7 + $0x90] sm:$0xff]
  %v100 = vld [vmem:[%s7 + $0x98] sm:$0xff]
  %v101 = vld [vmem:[%s7 + $0xa0] sm:$0xff]
  %v102 = vld [vmem:[%s7 + $0xa8] sm:$0xff]
  %v103 = vld [vmem:[%s7 + $0xb0] sm:$0xff]
  %v104 = vld [vmem:[%s7 + $0xb8] sm:$0xff]
  %v105 = vld [vmem:[%s7 + $0xc0] sm:$0xff]
  %v106 = vld [vmem:[%s7 + $0xc8] sm:$0xff]
  %v107 = vld [vmem:[%s7 + $0xd0] sm:$0xff]
  %v108 = vld [vmem:[%s7 + $0xd8] sm:$0xff]
  %v109 = vld [vmem:[%s7 + $0xe0] sm:$0xff]
  %v110 = vld [vmem:[%s7 + $0xe8] sm:$0xff]
  %v111 = vld [vmem:[%s7 + $0xf0] sm:$0xff]
  %v112 = vld [vmem:[%s7 + $0xf8] sm:$0xff]
  %v113 = vld [vmem:[%s8] sm:$0x1]
  %vm114 = vcmask 523264
  %v115 = vsel %vm114, %v36, 0.0
  %116 = vadd.xlane.f32.xlu0 %v115
  %v117 = vpop.xlane.xlu0 %116
  %v118 = vsel %vm114, %v37, 0.0
  %119 = vadd.xlane.f32.xlu0 %v118
  %v120 = vpop.xlane.xlu0 %119
  %v121 = vrcp.pop 64.0
  %v122 = vmul.f32 %v117, %v121
  %v123 = vmul.f32 %v120, %v121
  %v124 = vsub.f32 %v36, %v122
  %v125 = vsub.f32 %v37, %v123
  %v126 = vmul.f32 %v124, %v124
  %v127 = vmul.f32 %v125, %v125
  %v128 = vsel %vm114, %v126, 0.0
  %129 = vadd.xlane.f32.xlu0 %v128
  %v130 = vpop.xlane.xlu0 %129
  %v131 = vsel %vm114, %v127, 0.0
  %132 = vadd.xlane.f32.xlu0 %v131
  %v133 = vpop.xlane.xlu0 %132
  %v134 = vmul.f32 %v130, %v121
  %v135 = vmul.f32 %v133, %v121
  %v136 = vadd.f32 %v134, 1e-05
  %v137 = vadd.f32 %v135, 1e-05
  %v138 = vrsqrt.pop %v136
  %v139 = vrsqrt.pop %v137
  %v140 = vmul.f32 %v124, %v138
  %v141 = vmul.f32 %v125, %v139
  %v143 = vlaneseq
  %v144 = vshrl.u32 %v143, 7
  %v145 = vsub.s32 0, %v144
  %v146 = vrot.slane %v38, %v145
  %v148 = vmul.f32 %v140, %v146
  %v149 = vmul.f32 %v141, %v146
  %v150 = vpack.c.bf16 %v149, %v148
  %v151 = vpack.c.bf16 %v41, %v39
  %v152 = vpack.c.bf16 %v42, %v40
  %v153 = vpack.c.bf16 %v45, %v43
  %v154 = vpack.c.bf16 %v46, %v44
  %v155 = vpack.c.bf16 %v49, %v47
  %v156 = vpack.c.bf16 %v50, %v48
  %v157 = vpack.c.bf16 %v53, %v51
  %v158 = vpack.c.bf16 %v54, %v52
  %v160 = vsel %vm114, %v150, 0
  %162 = vmatprep.subr.bf16.mxu0 %v152
  %163 = vmatpush1.bf16.msra.mxu0 %v151
  %164 = vmatprep.subr.bf16.mxu0 %v154
  %165 = vmatpush1.bf16.msra.mxu0 %v153
  %166 = vmatprep.subr.bf16.mxu0 %v156
  %167 = vmatpush1.bf16.msra.mxu0 %v155
  %168 = vmatprep.subr.bf16.mxu0 %v158
  %169 = vmatpush1.bf16.msra.mxu0 %v157
  %170 = vmatprep.subr.bf16.mxu0 0
  %171 = vmatpush1.bf16.msra.mxu0 0
  %172 = vmatprep.subr.bf16.mxu0 0
  %173 = vmatpush1.bf16.msra.mxu0 0
  %174 = vmatprep.subr.bf16.mxu0 0
  %175 = vmatpush1.bf16.msra.mxu0 0
  %176 = vmatprep.subr.bf16.mxu0 0
  %177 = vmatpush1.bf16.msra.mxu0 0
  %178 = vmatprep.subr.bf16.mxu0 0
  %179 = vmatpush1.bf16.msra.mxu0 0
  %180 = vmatprep.subr.bf16.mxu0 0
  %181 = vmatpush1.bf16.msra.mxu0 0
  %182 = vmatprep.subr.bf16.mxu0 0
  %183 = vmatpush1.bf16.msra.mxu0 0
  %184 = vmatprep.subr.bf16.mxu0 0
  %185 = vmatpush1.bf16.msra.mxu0 0
  %186 = vmatprep.subr.bf16.mxu0 0
  %187 = vmatpush1.bf16.msra.mxu0 0
  %188 = vmatprep.subr.bf16.mxu0 0
  %189 = vmatpush1.bf16.msra.mxu0 0
  %190 = vmatprep.subr.bf16.mxu0 0
  %191 = vmatpush1.bf16.msra.mxu0 0
  %192 = vmatprep.subr.bf16.mxu0 0
  %193 = vmatpush1.bf16.msra.mxu0 0
  %194 = vmatprep.mubr.bf16.mxu0 0
  %195 = vmatmul.mubr.bf16.gmra.mrb[0].mxu0 %v160
  %v196 = vpop.f32.mrb[0].mxu0
  %v197 = vadd.f32 0.0, %v196
  %v198 = vpop.f32.mrb[0].mxu0
  %v199 = vadd.f32 0.0, %v198
  %v200 = vpop.f32.mrb[0].mxu0
  %v201 = vadd.f32 0.0, %v200
  %v202 = vpop.f32.mrb[0].mxu0
  %v203 = vadd.f32 0.0, %v202
  %204 = vdwg.mxu0
  %v205 = vpack.c.bf16 %v197, %v197
  %207 = vrot.lane.b32.xlu0 %v205, 64
  %v208 = vpop.permute.xlu0 %207
  %vm209 = vcmask 261120
  %v211 = vsel %vm209, %v205, 0
  %v214 = vsel %vm209, %v208, 0
  %216 = vmatprep.subr.bf16.mxu0 0
  %217 = vmatpush1.bf16.xpose.msra.mxu0 %v214
  %218 = vmatprep.subr.bf16.mxu0 0
  %219 = vmatpush1.bf16.xpose.msra.mxu0 0
  %220 = vmatprep.subr.bf16.mxu0 0
  %221 = vmatpush1.bf16.xpose.msra.mxu0 0
  %222 = vmatprep.subr.bf16.mxu0 0
  %223 = vmatpush1.bf16.xpose.msra.mxu0 0
  %224 = vmatprep.subr.bf16.mxu0 0
  %225 = vmatpush1.bf16.xpose.msra.mxu0 0
  %226 = vmatprep.subr.bf16.mxu0 0
  %227 = vmatpush1.bf16.xpose.msra.mxu0 0
  %228 = vmatprep.subr.bf16.mxu0 0
  %229 = vmatpush1.bf16.xpose.msra.mxu0 0
  %230 = vmatprep.subr.bf16.mxu0 0
  %231 = vmatpush1.bf16.xpose.msra.mxu0 0
  %232 = vmatprep.subr.bf16.mxu0 0
  %233 = vmatpush1.bf16.xpose.msra.mxu0 0
  %234 = vmatprep.subr.bf16.mxu0 0
  %235 = vmatpush1.bf16.xpose.msra.mxu0 0
  %236 = vmatprep.subr.bf16.mxu0 0
  %237 = vmatpush1.bf16.xpose.msra.mxu0 0
  %238 = vmatprep.subr.bf16.mxu0 0
  %239 = vmatpush1.bf16.xpose.msra.mxu0 0
  %240 = vmatprep.subr.bf16.mxu0 0
  %241 = vmatpush1.bf16.xpose.msra.mxu0 0
  %242 = vmatprep.subr.bf16.mxu0 0
  %243 = vmatpush1.bf16.xpose.msra.mxu0 0
  %244 = vmatprep.subr.bf16.mxu0 0
  %245 = vmatpush1.bf16.xpose.msra.mxu0 0
  %246 = vmatprep.subr.bf16.mxu0 0
  %247 = vmatpush1.bf16.xpose.msra.mxu0 0
  %248 = vmatprep.mubr.bf16.mxu0 0
  %249 = vmatmul.mubr.bf16.gmra.mrb[0].mxu0 %v211
  %v250 = vpop.f32.mrb[0].mxu0
  %v251 = vadd.f32 0.0, %v250
  %v252 = vpop.f32.mrb[0].mxu0
  %v253 = vpop.f32.mrb[0].mxu0
  %v254 = vpop.f32.mrb[0].mxu0
  %255 = vdwg.mxu0
  %v256 = vmul.f32 %v251, 0.17677669
  %vm257 = vcmask 64512
  %v258 = vsel %vm257, %v256, -inf
  %259 = vmax.xlane.f32.xlu0 %v258
  %v260 = vpop.xlane.xlu0 %259
  %v261 = vsub.f32 %v256, %v260
  %v262 = vmul.f32 %v261, 1.442695
  %v263 = vpow.pop %v262
  %v264 = vsel %vm257, %v263, 0.0
  %265 = vadd.xlane.f32.xlu0 %v264
  %v266 = vpop.xlane.xlu0 %265
  %v267 = vrcp.pop %v266
  %v268 = vmul.f32 %v263, %v267
  %v269 = vpack.c.bf16 %v268, %v268
  %v270 = vpack.c.bf16 %v199, %v199
  %v272 = vsel %vm257, %v269, 0
  %vm274 = vcmask 1043456
  %v276 = vsel %vm274, %v270, 0
  %278 = vmatprep.subr.bf16.mxu0 0
  %279 = vmatpush1.bf16.msra.mxu0 %v276
  %280 = vmatprep.subr.bf16.mxu0 0
  %281 = vmatpush1.bf16.msra.mxu0 0
  %282 = vmatprep.subr.bf16.mxu0 0
  %283 = vmatpush1.bf16.msra.mxu0 0
  %284 = vmatprep.subr.bf16.mxu0 0
  %285 = vmatpush1.bf16.msra.mxu0 0
  %286 = vmatprep.subr.bf16.mxu0 0
  %287 = vmatpush1.bf16.msra.mxu0 0
  %288 = vmatprep.subr.bf16.mxu0 0
  %289 = vmatpush1.bf16.msra.mxu0 0
  %290 = vmatprep.subr.bf16.mxu0 0
  %291 = vmatpush1.bf16.msra.mxu0 0
  %292 = vmatprep.subr.bf16.mxu0 0
  %293 = vmatpush1.bf16.msra.mxu0 0
  %294 = vmatprep.subr.bf16.mxu0 0
  %295 = vmatpush1.bf16.msra.mxu0 0
  %296 = vmatprep.subr.bf16.mxu0 0
  %297 = vmatpush1.bf16.msra.mxu0 0
  %298 = vmatprep.subr.bf16.mxu0 0
  %299 = vmatpush1.bf16.msra.mxu0 0
  %300 = vmatprep.subr.bf16.mxu0 0
  %301 = vmatpush1.bf16.msra.mxu0 0
  %302 = vmatprep.subr.bf16.mxu0 0
  %303 = vmatpush1.bf16.msra.mxu0 0
  %304 = vmatprep.subr.bf16.mxu0 0
  %305 = vmatpush1.bf16.msra.mxu0 0
  %306 = vmatprep.subr.bf16.mxu0 0
  %307 = vmatpush1.bf16.msra.mxu0 0
  %308 = vmatprep.subr.bf16.mxu0 0
  %309 = vmatpush1.bf16.msra.mxu0 0
  %310 = vmatprep.mubr.bf16.mxu0 0
  %311 = vmatmul.mubr.bf16.gmra.mrb[0].mxu0 %v272
  %v312 = vpop.f32.mrb[0].mxu0
  %v313 = vadd.f32 0.0, %v312
  %v314 = vpop.f32.mrb[0].mxu0
  %v315 = vpop.f32.mrb[0].mxu0
  %v316 = vpop.f32.mrb[0].mxu0
  %317 = vdwg.mxu0
  %318 = vrot.lane.b32.xlu0 %v205, 96
  %v319 = vpop.permute.xlu0 %318
  %320 = vrot.lane.b32.xlu0 %v205, 32
  %v321 = vpop.permute.xlu0 %320
  %v323 = vsel %vm209, %v319, 0
  %v326 = vsel %vm209, %v321, 0
  %328 = vmatprep.subr.bf16.mxu0 0
  %329 = vmatpush1.bf16.xpose.msra.mxu0 %v326
  %330 = vmatprep.subr.bf16.mxu0 0
  %331 = vmatpush1.bf16.xpose.msra.mxu0 0
  %332 = vmatprep.subr.bf16.mxu0 0
  %333 = vmatpush1.bf16.xpose.msra.mxu0 0
  %334 = vmatprep.subr.bf16.mxu0 0
  %335 = vmatpush1.bf16.xpose.msra.mxu0 0
  %336 = vmatprep.subr.bf16.mxu0 0
  %337 = vmatpush1.bf16.xpose.msra.mxu0 0
  %338 = vmatprep.subr.bf16.mxu0 0
  %339 = vmatpush1.bf16.xpose.msra.mxu0 0
  %340 = vmatprep.subr.bf16.mxu0 0
  %341 = vmatpush1.bf16.xpose.msra.mxu0 0
  %342 = vmatprep.subr.bf16.mxu0 0
  %343 = vmatpush1.bf16.xpose.msra.mxu0 0
  %344 = vmatprep.subr.bf16.mxu0 0
  %345 = vmatpush1.bf16.xpose.msra.mxu0 0
  %346 = vmatprep.subr.bf16.mxu0 0
  %347 = vmatpush1.bf16.xpose.msra.mxu0 0
  %348 = vmatprep.subr.bf16.mxu0 0
  %349 = vmatpush1.bf16.xpose.msra.mxu0 0
  %350 = vmatprep.subr.bf16.mxu0 0
  %351 = vmatpush1.bf16.xpose.msra.mxu0 0
  %352 = vmatprep.subr.bf16.mxu0 0
  %353 = vmatpush1.bf16.xpose.msra.mxu0 0
  %354 = vmatprep.subr.bf16.mxu0 0
  %355 = vmatpush1.bf16.xpose.msra.mxu0 0
  %356 = vmatprep.subr.bf16.mxu0 0
  %357 = vmatpush1.bf16.xpose.msra.mxu0 0
  %358 = vmatprep.subr.bf16.mxu0 0
  %359 = vmatpush1.bf16.xpose.msra.mxu0 0
  %360 = vmatprep.mubr.bf16.mxu0 0
  %361 = vmatmul.mubr.bf16.gmra.mrb[0].mxu0 %v323
  %v362 = vpop.f32.mrb[0].mxu0
  %v363 = vadd.f32 0.0, %v362
  %v364 = vpop.f32.mrb[0].mxu0
  %v365 = vpop.f32.mrb[0].mxu0
  %v366 = vpop.f32.mrb[0].mxu0
  %367 = vdwg.mxu0
  %v368 = vmul.f32 %v363, 0.17677669
  %v369 = vsel %vm257, %v368, -inf
  %370 = vmax.xlane.f32.xlu0 %v369
  %v371 = vpop.xlane.xlu0 %370
  %v372 = vsub.f32 %v368, %v371
  %v373 = vmul.f32 %v372, 1.442695
  %v374 = vpow.pop %v373
  %v375 = vsel %vm257, %v374, 0.0
  %376 = vadd.xlane.f32.xlu0 %v375
  %v377 = vpop.xlane.xlu0 %376
  %v378 = vrcp.pop %v377
  %v379 = vmul.f32 %v374, %v378
  %v380 = vpack.c.bf16 %v379, %v379
  %382 = vrot.lane.b32.xlu0 %v270, 96
  %v383 = vpop.permute.xlu0 %382
  %v385 = vsel %vm257, %v380, 0
  %v388 = vsel %vm274, %v383, 0
  %390 = vmatprep.subr.bf16.mxu0 0
  %391 = vmatpush1.bf16.msra.mxu0 %v388
  %392 = vmatprep.subr.bf16.mxu0 0
  %393 = vmatpush1.bf16.msra.mxu0 0
  %394 = vmatprep.subr.bf16.mxu0 0
  %395 = vmatpush1.bf16.msra.mxu0 0
  %396 = vmatprep.subr.bf16.mxu0 0
  %397 = vmatpush1.bf16.msra.mxu0 0
  %398 = vmatprep.subr.bf16.mxu0 0
  %399 = vmatpush1.bf16.msra.mxu0 0
  %400 = vmatprep.subr.bf16.mxu0 0
  %401 = vmatpush1.bf16.msra.mxu0 0
  %402 = vmatprep.subr.bf16.mxu0 0
  %403 = vmatpush1.bf16.msra.mxu0 0
  %404 = vmatprep.subr.bf16.mxu0 0
  %405 = vmatpush1.bf16.msra.mxu0 0
  %406 = vmatprep.subr.bf16.mxu0 0
  %407 = vmatpush1.bf16.msra.mxu0 0
  %408 = vmatprep.subr.bf16.mxu0 0
  %409 = vmatpush1.bf16.msra.mxu0 0
  %410 = vmatprep.subr.bf16.mxu0 0
  %411 = vmatpush1.bf16.msra.mxu0 0
  %412 = vmatprep.subr.bf16.mxu0 0
  %413 = vmatpush1.bf16.msra.mxu0 0
  %414 = vmatprep.subr.bf16.mxu0 0
  %415 = vmatpush1.bf16.msra.mxu0 0
  %416 = vmatprep.subr.bf16.mxu0 0
  %417 = vmatpush1.bf16.msra.mxu0 0
  %418 = vmatprep.subr.bf16.mxu0 0
  %419 = vmatpush1.bf16.msra.mxu0 0
  %420 = vmatprep.subr.bf16.mxu0 0
  %421 = vmatpush1.bf16.msra.mxu0 0
  %422 = vmatprep.mubr.bf16.mxu0 0
  %423 = vmatmul.mubr.bf16.gmra.mrb[0].mxu0 %v385
  %v424 = vpop.f32.mrb[0].mxu0
  %v425 = vadd.f32 0.0, %v424
  %v426 = vpop.f32.mrb[0].mxu0
  %v427 = vpop.f32.mrb[0].mxu0
  %v428 = vpop.f32.mrb[0].mxu0
  %429 = vdwg.mxu0
  %431 = vrot.lane.b32.xlu0 %v425, 32
  %v432 = vpop.permute.xlu0 %431
  %v434 = vsel %vm209, %v313, %v432
  %v435 = vpack.c.bf16 %v201, %v201
  %437 = vrot.lane.b32.xlu0 %v435, 64
  %v438 = vpop.permute.xlu0 %437
  %v440 = vsel %vm209, %v435, 0
  %v443 = vsel %vm209, %v438, 0
  %445 = vmatprep.subr.bf16.mxu0 0
  %446 = vmatpush1.bf16.xpose.msra.mxu0 %v443
  %447 = vmatprep.subr.bf16.mxu0 0
  %448 = vmatpush1.bf16.xpose.msra.mxu0 0
  %449 = vmatprep.subr.bf16.mxu0 0
  %450 = vmatpush1.bf16.xpose.msra.mxu0 0
  %451 = vmatprep.subr.bf16.mxu0 0
  %452 = vmatpush1.bf16.xpose.msra.mxu0 0
  %453 = vmatprep.subr.bf16.mxu0 0
  %454 = vmatpush1.bf16.xpose.msra.mxu0 0
  %455 = vmatprep.subr.bf16.mxu0 0
  %456 = vmatpush1.bf16.xpose.msra.mxu0 0
  %457 = vmatprep.subr.bf16.mxu0 0
  %458 = vmatpush1.bf16.xpose.msra.mxu0 0
  %459 = vmatprep.subr.bf16.mxu0 0
  %460 = vmatpush1.bf16.xpose.msra.mxu0 0
  %461 = vmatprep.subr.bf16.mxu0 0
  %462 = vmatpush1.bf16.xpose.msra.mxu0 0
  %463 = vmatprep.subr.bf16.mxu0 0
  %464 = vmatpush1.bf16.xpose.msra.mxu0 0
  %465 = vmatprep.subr.bf16.mxu0 0
  %466 = vmatpush1.bf16.xpose.msra.mxu0 0
  %467 = vmatprep.subr.bf16.mxu0 0
  %468 = vmatpush1.bf16.xpose.msra.mxu0 0
  %469 = vmatprep.subr.bf16.mxu0 0
  %470 = vmatpush1.bf16.xpose.msra.mxu0 0
  %471 = vmatprep.subr.bf16.mxu0 0
  %472 = vmatpush1.bf16.xpose.msra.mxu0 0
  %473 = vmatprep.subr.bf16.mxu0 0
  %474 = vmatpush1.bf16.xpose.msra.mxu0 0
  %475 = vmatprep.subr.bf16.mxu0 0
  %476 = vmatpush1.bf16.xpose.msra.mxu0 0
  %477 = vmatprep.mubr.bf16.mxu0 0
  %478 = vmatmul.mubr.bf16.gmra.mrb[0].mxu0 %v440
  %v479 = vpop.f32.mrb[0].mxu0
  %v480 = vadd.f32 0.0, %v479
  %v481 = vpop.f32.mrb[0].mxu0
  %v482 = vpop.f32.mrb[0].mxu0
  %v483 = vpop.f32.mrb[0].mxu0
  %484 = vdwg.mxu0
  %v485 = vmul.f32 %v480, 0.17677669
  %v486 = vsel %vm257, %v485, -inf
  %487 = vmax.xlane.f32.xlu0 %v486
  %v488 = vpop.xlane.xlu0 %487
  %v489 = vsub.f32 %v485, %v488
  %v490 = vmul.f32 %v489, 1.442695
  %v491 = vpow.pop %v490
  %v492 = vsel %vm257, %v491, 0.0
  %493 = vadd.xlane.f32.xlu0 %v492
  %v494 = vpop.xlane.xlu0 %493
  %v495 = vrcp.pop %v494
  %v496 = vmul.f32 %v491, %v495
  %v497 = vpack.c.bf16 %v496, %v496
  %v498 = vpack.c.bf16 %v203, %v203
  %v500 = vsel %vm257, %v497, 0
  %v503 = vsel %vm274, %v498, 0
  %505 = vmatprep.subr.bf16.mxu0 0
  %506 = vmatpush1.bf16.msra.mxu0 %v503
  %507 = vmatprep.subr.bf16.mxu0 0
  %508 = vmatpush1.bf16.msra.mxu0 0
  %509 = vmatprep.subr.bf16.mxu0 0
  %510 = vmatpush1.bf16.msra.mxu0 0
  %511 = vmatprep.subr.bf16.mxu0 0
  %512 = vmatpush1.bf16.msra.mxu0 0
  %513 = vmatprep.subr.bf16.mxu0 0
  %514 = vmatpush1.bf16.msra.mxu0 0
  %515 = vmatprep.subr.bf16.mxu0 0
  %516 = vmatpush1.bf16.msra.mxu0 0
  %517 = vmatprep.subr.bf16.mxu0 0
  %518 = vmatpush1.bf16.msra.mxu0 0
  %519 = vmatprep.subr.bf16.mxu0 0
  %520 = vmatpush1.bf16.msra.mxu0 0
  %521 = vmatprep.subr.bf16.mxu0 0
  %522 = vmatpush1.bf16.msra.mxu0 0
  %523 = vmatprep.subr.bf16.mxu0 0
  %524 = vmatpush1.bf16.msra.mxu0 0
  %525 = vmatprep.subr.bf16.mxu0 0
  %526 = vmatpush1.bf16.msra.mxu0 0
  %527 = vmatprep.subr.bf16.mxu0 0
  %528 = vmatpush1.bf16.msra.mxu0 0
  %529 = vmatprep.subr.bf16.mxu0 0
  %530 = vmatpush1.bf16.msra.mxu0 0
  %531 = vmatprep.subr.bf16.mxu0 0
  %532 = vmatpush1.bf16.msra.mxu0 0
  %533 = vmatprep.subr.bf16.mxu0 0
  %534 = vmatpush1.bf16.msra.mxu0 0
  %535 = vmatprep.subr.bf16.mxu0 0
  %536 = vmatpush1.bf16.msra.mxu0 0
  %537 = vmatprep.mubr.bf16.mxu0 0
  %538 = vmatmul.mubr.bf16.gmra.mrb[0].mxu0 %v500
  %v539 = vpop.f32.mrb[0].mxu0
  %v540 = vadd.f32 0.0, %v539
  %v541 = vpop.f32.mrb[0].mxu0
  %v542 = vpop.f32.mrb[0].mxu0
  %v543 = vpop.f32.mrb[0].mxu0
  %544 = vdwg.mxu0
  %545 = vrot.lane.b32.xlu0 %v435, 96
  %v546 = vpop.permute.xlu0 %545
  %547 = vrot.lane.b32.xlu0 %v435, 32
  %v548 = vpop.permute.xlu0 %547
  %v550 = vsel %vm209, %v546, 0
  %v553 = vsel %vm209, %v548, 0
  %555 = vmatprep.subr.bf16.mxu0 0
  %556 = vmatpush1.bf16.xpose.msra.mxu0 %v553
  %557 = vmatprep.subr.bf16.mxu0 0
  %558 = vmatpush1.bf16.xpose.msra.mxu0 0
  %559 = vmatprep.subr.bf16.mxu0 0
  %560 = vmatpush1.bf16.xpose.msra.mxu0 0
  %561 = vmatprep.subr.bf16.mxu0 0
  %562 = vmatpush1.bf16.xpose.msra.mxu0 0
  %563 = vmatprep.subr.bf16.mxu0 0
  %564 = vmatpush1.bf16.xpose.msra.mxu0 0
  %565 = vmatprep.subr.bf16.mxu0 0
  %566 = vmatpush1.bf16.xpose.msra.mxu0 0
  %567 = vmatprep.subr.bf16.mxu0 0
  %568 = vmatpush1.bf16.xpose.msra.mxu0 0
  %569 = vmatprep.subr.bf16.mxu0 0
  %570 = vmatpush1.bf16.xpose.msra.mxu0 0
  %571 = vmatprep.subr.bf16.mxu0 0
  %572 = vmatpush1.bf16.xpose.msra.mxu0 0
  %573 = vmatprep.subr.bf16.mxu0 0
  %574 = vmatpush1.bf16.xpose.msra.mxu0 0
  %575 = vmatprep.subr.bf16.mxu0 0
  %576 = vmatpush1.bf16.xpose.msra.mxu0 0
  %577 = vmatprep.subr.bf16.mxu0 0
  %578 = vmatpush1.bf16.xpose.msra.mxu0 0
  %579 = vmatprep.subr.bf16.mxu0 0
  %580 = vmatpush1.bf16.xpose.msra.mxu0 0
  %581 = vmatprep.subr.bf16.mxu0 0
  %582 = vmatpush1.bf16.xpose.msra.mxu0 0
  %583 = vmatprep.subr.bf16.mxu0 0
  %584 = vmatpush1.bf16.xpose.msra.mxu0 0
  %585 = vmatprep.subr.bf16.mxu0 0
  %586 = vmatpush1.bf16.xpose.msra.mxu0 0
  %587 = vmatprep.mubr.bf16.mxu0 0
  %588 = vmatmul.mubr.bf16.gmra.mrb[0].mxu0 %v550
  %v589 = vpop.f32.mrb[0].mxu0
  %v590 = vadd.f32 0.0, %v589
  %v591 = vpop.f32.mrb[0].mxu0
  %v592 = vpop.f32.mrb[0].mxu0
  %v593 = vpop.f32.mrb[0].mxu0
  %594 = vdwg.mxu0
  %v595 = vmul.f32 %v590, 0.17677669
  %v596 = vsel %vm257, %v595, -inf
  %597 = vmax.xlane.f32.xlu0 %v596
  %v598 = vpop.xlane.xlu0 %597
  %v599 = vsub.f32 %v595, %v598
  %v600 = vmul.f32 %v599, 1.442695
  %v601 = vpow.pop %v600
  %v602 = vsel %vm257, %v601, 0.0
  %603 = vadd.xlane.f32.xlu0 %v602
  %v604 = vpop.xlane.xlu0 %603
  %v605 = vrcp.pop %v604
  %v606 = vmul.f32 %v601, %v605
  %v607 = vpack.c.bf16 %v606, %v606
  %609 = vrot.lane.b32.xlu0 %v498, 96
  %v610 = vpop.permute.xlu0 %609
  %v612 = vsel %vm257, %v607, 0
  %v615 = vsel %vm274, %v610, 0
  %617 = vmatprep.subr.bf16.mxu0 0
  %618 = vmatpush1.bf16.msra.mxu0 %v615
  %619 = vmatprep.subr.bf16.mxu0 0
  %620 = vmatpush1.bf16.msra.mxu0 0
  %621 = vmatprep.subr.bf16.mxu0 0
  %622 = vmatpush1.bf16.msra.mxu0 0
  %623 = vmatprep.subr.bf16.mxu0 0
  %624 = vmatpush1.bf16.msra.mxu0 0
  %625 = vmatprep.subr.bf16.mxu0 0
  %626 = vmatpush1.bf16.msra.mxu0 0
  %627 = vmatprep.subr.bf16.mxu0 0
  %628 = vmatpush1.bf16.msra.mxu0 0
  %629 = vmatprep.subr.bf16.mxu0 0
  %630 = vmatpush1.bf16.msra.mxu0 0
  %631 = vmatprep.subr.bf16.mxu0 0
  %632 = vmatpush1.bf16.msra.mxu0 0
  %633 = vmatprep.subr.bf16.mxu0 0
  %634 = vmatpush1.bf16.msra.mxu0 0
  %635 = vmatprep.subr.bf16.mxu0 0
  %636 = vmatpush1.bf16.msra.mxu0 0
  %637 = vmatprep.subr.bf16.mxu0 0
  %638 = vmatpush1.bf16.msra.mxu0 0
  %639 = vmatprep.subr.bf16.mxu0 0
  %640 = vmatpush1.bf16.msra.mxu0 0
  %641 = vmatprep.subr.bf16.mxu0 0
  %642 = vmatpush1.bf16.msra.mxu0 0
  %643 = vmatprep.subr.bf16.mxu0 0
  %644 = vmatpush1.bf16.msra.mxu0 0
  %645 = vmatprep.subr.bf16.mxu0 0
  %646 = vmatpush1.bf16.msra.mxu0 0
  %647 = vmatprep.subr.bf16.mxu0 0
  %648 = vmatpush1.bf16.msra.mxu0 0
  %649 = vmatprep.mubr.bf16.mxu0 0
  %650 = vmatmul.mubr.bf16.gmra.mrb[0].mxu0 %v612
  %v651 = vpop.f32.mrb[0].mxu0
  %v652 = vadd.f32 0.0, %v651
  %v653 = vpop.f32.mrb[0].mxu0
  %v654 = vpop.f32.mrb[0].mxu0
  %v655 = vpop.f32.mrb[0].mxu0
  %656 = vdwg.mxu0
  %658 = vrot.lane.b32.xlu0 %v652, 32
  %v659 = vpop.permute.xlu0 %658
  %v661 = vsel %vm209, %v540, %v659
  %v662 = vpack.c.bf16 %v661, %v434
  %v663 = vpack.c.bf16 %v56, %v55
  %v664 = vpack.c.bf16 %v58, %v57
  %v665 = vpack.c.bf16 %v60, %v59
  %v666 = vpack.c.bf16 %v62, %v61
  %v668 = vsel %vm114, %v662, 0
  %670 = vmatprep.subr.bf16.mxu0 0
  %671 = vmatpush1.bf16.msra.mxu0 %v663
  %672 = vmatprep.subr.bf16.mxu0 0
  %673 = vmatpush1.bf16.msra.mxu0 %v664
  %674 = vmatprep.subr.bf16.mxu0 0
  %675 = vmatpush1.bf16.msra.mxu0 %v665
  %676 = vmatprep.subr.bf16.mxu0 0
  %677 = vmatpush1.bf16.msra.mxu0 %v666
  %678 = vmatprep.subr.bf16.mxu0 0
  %679 = vmatpush1.bf16.msra.mxu0 0
  %680 = vmatprep.subr.bf16.mxu0 0
  %681 = vmatpush1.bf16.msra.mxu0 0
  %682 = vmatprep.subr.bf16.mxu0 0
  %683 = vmatpush1.bf16.msra.mxu0 0
  %684 = vmatprep.subr.bf16.mxu0 0
  %685 = vmatpush1.bf16.msra.mxu0 0
  %686 = vmatprep.subr.bf16.mxu0 0
  %687 = vmatpush1.bf16.msra.mxu0 0
  %688 = vmatprep.subr.bf16.mxu0 0
  %689 = vmatpush1.bf16.msra.mxu0 0
  %690 = vmatprep.subr.bf16.mxu0 0
  %691 = vmatpush1.bf16.msra.mxu0 0
  %692 = vmatprep.subr.bf16.mxu0 0
  %693 = vmatpush1.bf16.msra.mxu0 0
  %694 = vmatprep.subr.bf16.mxu0 0
  %695 = vmatpush1.bf16.msra.mxu0 0
  %696 = vmatprep.subr.bf16.mxu0 0
  %697 = vmatpush1.bf16.msra.mxu0 0
  %698 = vmatprep.subr.bf16.mxu0 0
  %699 = vmatpush1.bf16.msra.mxu0 0
  %700 = vmatprep.subr.bf16.mxu0 0
  %701 = vmatpush1.bf16.msra.mxu0 0
  %702 = vmatprep.mubr.bf16.mxu0 0
  %703 = vmatmul.mubr.bf16.gmra.mrb[0].mxu0 %v668
  %v704 = vpop.f32.mrb[0].mxu0
  %v705 = vadd.f32 0.0, %v704
  %v706 = vpop.f32.mrb[0].mxu0
  %v707 = vpop.f32.mrb[0].mxu0
  %v708 = vadd.f32 0.0, %v707
  %v709 = vpop.f32.mrb[0].mxu0
  %710 = vdwg.mxu0
  %v711 = vadd.f32 %v36, %v705
  %v712 = vadd.f32 %v37, %v708
  %v713 = vsel %vm114, %v711, 0.0
  %714 = vadd.xlane.f32.xlu0 %v713
  %v715 = vpop.xlane.xlu0 %714
  %v716 = vsel %vm114, %v712, 0.0
  %717 = vadd.xlane.f32.xlu0 %v716
  %v718 = vpop.xlane.xlu0 %717
  %v719 = vmul.f32 %v715, %v121
  %v720 = vmul.f32 %v718, %v121
  %v721 = vsub.f32 %v711, %v719
  %v722 = vsub.f32 %v712, %v720
  %v723 = vmul.f32 %v721, %v721
  %v724 = vmul.f32 %v722, %v722
  %v725 = vsel %vm114, %v723, 0.0
  %726 = vadd.xlane.f32.xlu0 %v725
  %v727 = vpop.xlane.xlu0 %726
  %v728 = vsel %vm114, %v724, 0.0
  %729 = vadd.xlane.f32.xlu0 %v728
  %v730 = vpop.xlane.xlu0 %729
  %v731 = vmul.f32 %v727, %v121
  %v732 = vmul.f32 %v730, %v121
  %v733 = vadd.f32 %v731, 1e-05
  %v734 = vadd.f32 %v732, 1e-05
  %v735 = vrsqrt.pop %v733
  %v736 = vrsqrt.pop %v734
  %v737 = vmul.f32 %v721, %v735
  %v738 = vmul.f32 %v722, %v736
  %v740 = vlaneseq
  %v741 = vshrl.u32 %v740, 7
  %v742 = vsub.s32 0, %v741
  %v743 = vrot.slane %v63, %v742
  %v745 = vmul.f32 %v737, %v743
  %v746 = vmul.f32 %v738, %v743
  %v747 = vpack.c.bf16 %v746, %v745
  %v748 = vpack.c.bf16 %v66, %v64
  %v749 = vpack.c.bf16 %v67, %v65
  %v750 = vpack.c.bf16 %v70, %v68
  %v751 = vpack.c.bf16 %v71, %v69
  %v752 = vpack.c.bf16 %v74, %v72
  %v753 = vpack.c.bf16 %v75, %v73
  %v754 = vpack.c.bf16 %v78, %v76
  %v755 = vpack.c.bf16 %v79, %v77
  %v757 = vlaneseq
  %v758 = vshrl.u32 %v757, 7
  %v759 = vsub.s32 0, %v758
  %v760 = vrot.slane %v80, %v759
  %v761 = vlaneseq
  %v762 = vshrl.u32 %v761, 7
  %v763 = vsub.s32 1, %v762
  %v764 = vrot.slane %v80, %v763
  %v768 = vsel %vm114, %v747, 0
  %770 = vmatprep.subr.bf16.mxu0 %v749
  %771 = vmatpush1.bf16.msra.mxu0 %v748
  %772 = vmatprep.subr.bf16.mxu0 %v751
  %773 = vmatpush1.bf16.msra.mxu0 %v750
  %774 = vmatprep.subr.bf16.mxu0 %v753
  %775 = vmatpush1.bf16.msra.mxu0 %v752
  %776 = vmatprep.subr.bf16.mxu0 %v755
  %777 = vmatpush1.bf16.msra.mxu0 %v754
  %778 = vmatprep.subr.bf16.mxu0 0
  %779 = vmatpush1.bf16.msra.mxu0 0
  %780 = vmatprep.subr.bf16.mxu0 0
  %781 = vmatpush1.bf16.msra.mxu0 0
  %782 = vmatprep.subr.bf16.mxu0 0
  %783 = vmatpush1.bf16.msra.mxu0 0
  %784 = vmatprep.subr.bf16.mxu0 0
  %785 = vmatpush1.bf16.msra.mxu0 0
  %786 = vmatprep.subr.bf16.mxu0 0
  %787 = vmatpush1.bf16.msra.mxu0 0
  %788 = vmatprep.subr.bf16.mxu0 0
  %789 = vmatpush1.bf16.msra.mxu0 0
  %790 = vmatprep.subr.bf16.mxu0 0
  %791 = vmatpush1.bf16.msra.mxu0 0
  %792 = vmatprep.subr.bf16.mxu0 0
  %793 = vmatpush1.bf16.msra.mxu0 0
  %794 = vmatprep.subr.bf16.mxu0 0
  %795 = vmatpush1.bf16.msra.mxu0 0
  %796 = vmatprep.subr.bf16.mxu0 0
  %797 = vmatpush1.bf16.msra.mxu0 0
  %798 = vmatprep.subr.bf16.mxu0 0
  %799 = vmatpush1.bf16.msra.mxu0 0
  %800 = vmatprep.subr.bf16.mxu0 0
  %801 = vmatpush1.bf16.msra.mxu0 0
  %802 = vmatprep.mubr.bf16.mxu0 0
  %803 = vmatmul.mubr.bf16.gmra.mrb[0].mxu0 %v768
  %v804 = vpop.f32.mrb[0].mxu0
  %v805 = vadd.f32 %v760, %v804
  %v806 = vpop.f32.mrb[0].mxu0
  %v807 = vadd.f32 %v764, %v806
  %v808 = vpop.f32.mrb[0].mxu0
  %v809 = vadd.f32 %v760, %v808
  %v810 = vpop.f32.mrb[0].mxu0
  %v811 = vadd.f32 %v764, %v810
  %812 = vdwg.mxu0
  %v813 = vmul.f32 %v805, %v805
  %v814 = vmul.f32 %v807, %v807
  %v815 = vmul.f32 %v809, %v809
  %v816 = vmul.f32 %v811, %v811
  %v817 = vmul.f32 %v805, %v813
  %v818 = vmul.f32 %v807, %v814
  %v819 = vmul.f32 %v809, %v815
  %v820 = vmul.f32 %v811, %v816
  %v821 = vmul.f32 %v817, 0.044715
  %v822 = vmul.f32 %v818, 0.044715
  %v823 = vmul.f32 %v819, 0.044715
  %v824 = vmul.f32 %v820, 0.044715
  %v825 = vadd.f32 %v805, %v821
  %v826 = vadd.f32 %v807, %v822
  %v827 = vadd.f32 %v809, %v823
  %v828 = vadd.f32 %v811, %v824
  %v829 = vmul.f32 %v825, 0.7978846
  %v830 = vmul.f32 %v826, 0.7978846
  %v831 = vmul.f32 %v827, 0.7978846
  %v832 = vmul.f32 %v828, 0.7978846
  %v833 = vtanh.pop %v829
  %v834 = vtanh.pop %v830
  %v835 = vtanh.pop %v831
  %v836 = vtanh.pop %v832
  %v837 = vadd.f32 %v833, 1.0
  %v838 = vadd.f32 %v834, 1.0
  %v839 = vadd.f32 %v835, 1.0
  %v840 = vadd.f32 %v836, 1.0
  %v841 = vmul.f32 %v837, 0.5
  %v842 = vmul.f32 %v838, 0.5
  %v843 = vmul.f32 %v839, 0.5
  %v844 = vmul.f32 %v840, 0.5
  %v845 = vmul.f32 %v805, %v841
  %v846 = vmul.f32 %v807, %v842
  %v847 = vmul.f32 %v809, %v843
  %v848 = vmul.f32 %v811, %v844
  %v849 = vpack.c.bf16 %v847, %v845
  %v850 = vpack.c.bf16 %v848, %v846
  %v851 = vpack.c.bf16 %v82, %v81
  %v852 = vpack.c.bf16 %v84, %v83
  %v853 = vpack.c.bf16 %v86, %v85
  %v854 = vpack.c.bf16 %v88, %v87
  %v855 = vpack.c.bf16 %v90, %v89
  %v856 = vpack.c.bf16 %v92, %v91
  %v857 = vpack.c.bf16 %v94, %v93
  %v858 = vpack.c.bf16 %v96, %v95
  %v859 = vpack.c.bf16 %v98, %v97
  %v860 = vpack.c.bf16 %v100, %v99
  %v861 = vpack.c.bf16 %v102, %v101
  %v862 = vpack.c.bf16 %v104, %v103
  %v863 = vpack.c.bf16 %v106, %v105
  %v864 = vpack.c.bf16 %v108, %v107
  %v865 = vpack.c.bf16 %v110, %v109
  %v866 = vpack.c.bf16 %v112, %v111
  %v868 = vlaneseq
  %v869 = vshrl.u32 %v868, 7
  %v870 = vsub.s32 0, %v869
  %v871 = vrot.slane %v113, %v870
  %873 = vmatprep.subr.bf16.mxu0 0
  %874 = vmatpush1.bf16.msra.mxu0 %v851
  %875 = vmatprep.subr.bf16.mxu0 0
  %876 = vmatpush1.bf16.msra.mxu0 %v852
  %877 = vmatprep.subr.bf16.mxu0 0
  %878 = vmatpush1.bf16.msra.mxu0 %v853
  %879 = vmatprep.subr.bf16.mxu0 0
  %880 = vmatpush1.bf16.msra.mxu0 %v854
  %881 = vmatprep.subr.bf16.mxu0 0
  %882 = vmatpush1.bf16.msra.mxu0 %v855
  %883 = vmatprep.subr.bf16.mxu0 0
  %884 = vmatpush1.bf16.msra.mxu0 %v856
  %885 = vmatprep.subr.bf16.mxu0 0
  %886 = vmatpush1.bf16.msra.mxu0 %v857
  %887 = vmatprep.subr.bf16.mxu0 0
  %888 = vmatpush1.bf16.msra.mxu0 %v858
  %889 = vmatprep.subr.bf16.mxu0 0
  %890 = vmatpush1.bf16.msra.mxu0 %v859
  %891 = vmatprep.subr.bf16.mxu0 0
  %892 = vmatpush1.bf16.msra.mxu0 %v860
  %893 = vmatprep.subr.bf16.mxu0 0
  %894 = vmatpush1.bf16.msra.mxu0 %v861
  %895 = vmatprep.subr.bf16.mxu0 0
  %896 = vmatpush1.bf16.msra.mxu0 %v862
  %897 = vmatprep.subr.bf16.mxu0 0
  %898 = vmatpush1.bf16.msra.mxu0 %v863
  %899 = vmatprep.subr.bf16.mxu0 0
  %900 = vmatpush1.bf16.msra.mxu0 %v864
  %901 = vmatprep.subr.bf16.mxu0 0
  %902 = vmatpush1.bf16.msra.mxu0 %v865
  %903 = vmatprep.subr.bf16.mxu0 0
  %904 = vmatpush1.bf16.msra.mxu0 %v866
  %905 = vmatprep.mubr.bf16.mxu0 %v850
  %906 = vmatmul.mubr.bf16.gmra.mrb[0].mxu0 %v849
  %v907 = vpop.f32.mrb[0].mxu0
  %v908 = vadd.f32 %v871, %v907
  %v909 = vpop.f32.mrb[0].mxu0
  %v910 = vpop.f32.mrb[0].mxu0
  %v911 = vadd.f32 %v871, %v910
  %v912 = vpop.f32.mrb[0].mxu0
  %913 = vdwg.mxu0
  %v914 = vadd.f32 %v711, %v908
  %v915 = vadd.f32 %v712, %v911
  %v916 = vld [vmem:[%s9] sm:$0x1]
  %v917 = vsel %vm114, %v914, 0.0
  %918 = vadd.xlane.f32.xlu0 %v917
  %v919 = vpop.xlane.xlu0 %918
  %v920 = vsel %vm114, %v915, 0.0
  %921 = vadd.xlane.f32.xlu0 %v920
  %v922 = vpop.xlane.xlu0 %921
  %v923 = vmul.f32 %v919, %v121
  %v924 = vmul.f32 %v922, %v121
  %v925 = vsub.f32 %v914, %v923
  %v926 = vsub.f32 %v915, %v924
  %v927 = vmul.f32 %v925, %v925
  %v928 = vmul.f32 %v926, %v926
  %v929 = vsel %vm114, %v927, 0.0
  %930 = vadd.xlane.f32.xlu0 %v929
  %v931 = vpop.xlane.xlu0 %930
  %v932 = vsel %vm114, %v928, 0.0
  %933 = vadd.xlane.f32.xlu0 %v932
  %v934 = vpop.xlane.xlu0 %933
  %v935 = vmul.f32 %v931, %v121
  %v936 = vmul.f32 %v934, %v121
  %v937 = vadd.f32 %v935, 1e-05
  %v938 = vadd.f32 %v936, 1e-05
  %v939 = vrsqrt.pop %v937
  %v940 = vrsqrt.pop %v938
  %v941 = vmul.f32 %v925, %v939
  %v942 = vmul.f32 %v926, %v940
  %v944 = vlaneseq
  %v945 = vshrl.u32 %v944, 7
  %v946 = vsub.s32 0, %v945
  %v947 = vrot.slane %v916, %v946
  %v949 = vmul.f32 %v941, %v947
  %v950 = vmul.f32 %v942, %v947
  %951 = vst.msk [vmem:[%s10] sm:$0xff] %vm114, %v949
  %952 = vst.msk [vmem:[%s10 + $0x8] sm:$0xff] %vm114, %v950
  // Predicated region
  $region42: #{xtransformer_forward.2} parent=0 // pred_check
    _
  $region43: #{xtransformer_forward.2} parent=0 // pred_check_branch
    %954 = sbr.rel (0) target = $region45
  $region44: #{xtransformer_forward.2} parent=0 // pred_region
    _
  $region45: #{xtransformer_forward.2} parent=0 // pred_fallthru
    _
  // Predicated region
  $region46: #{xtransformer_forward.2} parent=0 // pred_check
    _
  $region47: #{xtransformer_forward.2} parent=0 // pred_check_branch
    %956 = sbr.rel (0) target = $region49
  $region48: #{xtransformer_forward.2} parent=0 // pred_region
    _
  $region49: #{xtransformer_forward.2} parent=0 // pred_fallthru
    _

// kernel: xtransformer_forward.3
$region0: #{xtransformer_forward.3}
  #allocation0 [shape = 'u32[]', space=smem, size = 0x4, offset = 0x4, fixed_abs, tag = 'smem constant byte address 0x4 - core index']
  #allocation1 [shape = 'u32[144,128]{1,0:T(1,128)}', space=vmem, size = 0x12000, scoped, tag = 'internal scratch']
  %s0 = inlined_call_operand.vmem [shape: f32[16,64], index: 0, kind: input, shape index: {}]
  %s1 = inlined_call_operand.vmem [shape: f32[16,64], index: 1, kind: input, shape index: {}]
  %s2 = inlined_call_operand.vmem [shape: f32[1,64], index: 2, kind: input, shape index: {}]
  %s3 = inlined_call_operand.vmem [shape: f32[64,192], index: 3, kind: input, shape index: {}]
  %s4 = inlined_call_operand.vmem [shape: f32[64,64], index: 4, kind: input, shape index: {}]
  %s5 = inlined_call_operand.vmem [shape: f32[1,64], index: 5, kind: input, shape index: {}]
  %s6 = inlined_call_operand.vmem [shape: f32[64,64], index: 6, kind: input, shape index: {}]
  %s7 = inlined_call_operand.vmem [shape: f32[64,128], index: 7, kind: input, shape index: {}]
  %s8 = inlined_call_operand.vmem [shape: f32[64,64], index: 8, kind: input, shape index: {}]
  %s9 = inlined_call_operand.vmem [shape: f32[1,64], index: 9, kind: input, shape index: {}]
  %s10 = inlined_call_operand.vmem [shape: f32[64,256], index: 10, kind: input, shape index: {}]
  %s11 = inlined_call_operand.vmem [shape: f32[1,256], index: 11, kind: input, shape index: {}]
  %s12 = inlined_call_operand.vmem [shape: f32[256,64], index: 12, kind: input, shape index: {}]
  %s13 = inlined_call_operand.vmem [shape: f32[1,64], index: 13, kind: input, shape index: {}]
  %s14 = inlined_call_operand.vmem [shape: f32[1,64], index: 14, kind: input, shape index: {}]
  %s15 = inlined_call_operand.vmem [shape: f32[64,256], index: 15, kind: input, shape index: {}]
  %s16 = inlined_call_operand.vmem [shape: f32[16,256], index: 16, kind: output, shape index: {}]
  %s17 = sld [smem:[#allocation0]]
  $region74: #{xtransformer_forward.3} parent=0
    _
  %s19 = ssub.s32 1, %s17
  %s20 = scalar_select 0, %s19, %s17
  // Predicated region
  $region2: #{xtransformer_forward.3} parent=0 // pred_check
    _
  $region3: #{xtransformer_forward.3} parent=0 // pred_check_branch
    %22 = sbr.rel (0) target = $region5
  $region4: #{xtransformer_forward.3} parent=0 // pred_region
    _
  $region5: #{xtransformer_forward.3} parent=0 // pred_fallthru
    _
  // Predicated region
  $region6: #{xtransformer_forward.3} parent=0 // pred_check
    _
  $region7: #{xtransformer_forward.3} parent=0 // pred_check_branch
    %24 = sbr.rel (0) target = $region9
  $region8: #{xtransformer_forward.3} parent=0 // pred_region
    _
  $region9: #{xtransformer_forward.3} parent=0 // pred_fallthru
    _
  // Predicated region
  $region10: #{xtransformer_forward.3} parent=0 // pred_check
    _
  $region11: #{xtransformer_forward.3} parent=0 // pred_check_branch
    %26 = sbr.rel (0) target = $region13
  $region12: #{xtransformer_forward.3} parent=0 // pred_region
    _
  $region13: #{xtransformer_forward.3} parent=0 // pred_fallthru
    _
  // Predicated region
  $region14: #{xtransformer_forward.3} parent=0 // pred_check
    _
  $region15: #{xtransformer_forward.3} parent=0 // pred_check_branch
    %28 = sbr.rel (0) target = $region17
  $region16: #{xtransformer_forward.3} parent=0 // pred_region
    _
  $region17: #{xtransformer_forward.3} parent=0 // pred_fallthru
    _
  // Predicated region
  $region18: #{xtransformer_forward.3} parent=0 // pred_check
    _
  $region19: #{xtransformer_forward.3} parent=0 // pred_check_branch
    %30 = sbr.rel (0) target = $region21
  $region20: #{xtransformer_forward.3} parent=0 // pred_region
    _
  $region21: #{xtransformer_forward.3} parent=0 // pred_fallthru
    _
  // Predicated region
  $region22: #{xtransformer_forward.3} parent=0 // pred_check
    _
  $region23: #{xtransformer_forward.3} parent=0 // pred_check_branch
    %32 = sbr.rel (0) target = $region25
  $region24: #{xtransformer_forward.3} parent=0 // pred_region
    _
  $region25: #{xtransformer_forward.3} parent=0 // pred_fallthru
    _
  // Predicated region
  $region26: #{xtransformer_forward.3} parent=0 // pred_check
    _
  $region27: #{xtransformer_forward.3} parent=0 // pred_check_branch
    %34 = sbr.rel (0) target = $region29
  $region28: #{xtransformer_forward.3} parent=0 // pred_region
    _
  $region29: #{xtransformer_forward.3} parent=0 // pred_fallthru
    _
  // Predicated region
  $region30: #{xtransformer_forward.3} parent=0 // pred_check
    _
  $region31: #{xtransformer_forward.3} parent=0 // pred_check_branch
    %36 = sbr.rel (0) target = $region33
  $region32: #{xtransformer_forward.3} parent=0 // pred_region
    _
  $region33: #{xtransformer_forward.3} parent=0 // pred_fallthru
    _
  // Predicated region
  $region34: #{xtransformer_forward.3} parent=0 // pred_check
    _
  $region35: #{xtransformer_forward.3} parent=0 // pred_check_branch
    %38 = sbr.rel (0) target = $region37
  $region36: #{xtransformer_forward.3} parent=0 // pred_region
    _
  $region37: #{xtransformer_forward.3} parent=0 // pred_fallthru
    _
  // Predicated region
  $region38: #{xtransformer_forward.3} parent=0 // pred_check
    _
  $region39: #{xtransformer_forward.3} parent=0 // pred_check_branch
    %40 = sbr.rel (0) target = $region41
  $region40: #{xtransformer_forward.3} parent=0 // pred_region
    _
  $region41: #{xtransformer_forward.3} parent=0 // pred_fallthru
    _
  // Predicated region
  $region42: #{xtransformer_forward.3} parent=0 // pred_check
    _
  $region43: #{xtransformer_forward.3} parent=0 // pred_check_branch
    %42 = sbr.rel (0) target = $region45
  $region44: #{xtransformer_forward.3} parent=0 // pred_region
    _
  $region45: #{xtransformer_forward.3} parent=0 // pred_fallthru
    _
  // Predicated region
  $region46: #{xtransformer_forward.3} parent=0 // pred_check
    _
  $region47: #{xtransformer_forward.3} parent=0 // pred_check_branch
    %44 = sbr.rel (0) target = $region49
  $region48: #{xtransformer_forward.3} parent=0 // pred_region
    _
  $region49: #{xtransformer_forward.3} parent=0 // pred_fallthru
    _
  // Predicated region
  $region50: #{xtransformer_forward.3} parent=0 // pred_check
    _
  $region51: #{xtransformer_forward.3} parent=0 // pred_check_branch
    %46 = sbr.rel (0) target = $region53
  $region52: #{xtransformer_forward.3} parent=0 // pred_region
    _
  $region53: #{xtransformer_forward.3} parent=0 // pred_fallthru
    _
  // Predicated region
  $region54: #{xtransformer_forward.3} parent=0 // pred_check
    _
  $region55: #{xtransformer_forward.3} parent=0 // pred_check_branch
    %48 = sbr.rel (0) target = $region57
  $region56: #{xtransformer_forward.3} parent=0 // pred_region
    _
  $region57: #{xtransformer_forward.3} parent=0 // pred_fallthru
    _
  // Predicated region
  $region58: #{xtransformer_forward.3} parent=0 // pred_check
    _
  $region59: #{xtransformer_forward.3} parent=0 // pred_check_branch
    %50 = sbr.rel (0) target = $region61
  $region60: #{xtransformer_forward.3} parent=0 // pred_region
    _
  $region61: #{xtransformer_forward.3} parent=0 // pred_fallthru
    _
  // Predicated region
  $region62: #{xtransformer_forward.3} parent=0 // pred_check
    _
  $region63: #{xtransformer_forward.3} parent=0 // pred_check_branch
    %52 = sbr.rel (0) target = $region65
  $region64: #{xtransformer_forward.3} parent=0 // pred_region
    _
  $region65: #{xtransformer_forward.3} parent=0 // pred_fallthru
    _
  %v54 = vld [vmem:[%s0] sm:$0xff]
  %v55 = vld [vmem:[%s0 + $0x8] sm:$0xff]
  %v56 = vld [vmem:[%s1] sm:$0xff]
  %v57 = vld [vmem:[%s1 + $0x8] sm:$0xff]
  %v58 = vld [vmem:[%s2] sm:$0x1]
  %v59 = vld [vmem:[%s3] sm:$0xff]
  %v60 = vld [vmem:[%s3 + $0x8] sm:$0xff]
  %v61 = vld [vmem:[%s3 + $0x10] sm:$0xff]
  %v62 = vld [vmem:[%s3 + $0x18] sm:$0xff]
  %v63 = vld [vmem:[%s3 + $0x20] sm:$0xff]
  %v64 = vld [vmem:[%s3 + $0x28] sm:$0xff]
  %v65 = vld [vmem:[%s3 + $0x30] sm:$0xff]
  %v66 = vld [vmem:[%s3 + $0x38] sm:$0xff]
  %v67 = vld [vmem:[%s3 + $0x40] sm:$0xff]
  %v68 = vld [vmem:[%s3 + $0x48] sm:$0xff]
  %v69 = vld [vmem:[%s3 + $0x50] sm:$0xff]
  %v70 = vld [vmem:[%s3 + $0x58] sm:$0xff]
  %v71 = vld [vmem:[%s3 + $0x60] sm:$0xff]
  %v72 = vld [vmem:[%s3 + $0x68] sm:$0xff]
  %v73 = vld [vmem:[%s3 + $0x70] sm:$0xff]
  %v74 = vld [vmem:[%s3 + $0x78] sm:$0xff]
  %v75 = vld [vmem:[%s4] sm:$0xff]
  %v76 = vld [vmem:[%s4 + $0x8] sm:$0xff]
  %v77 = vld [vmem:[%s4 + $0x10] sm:$0xff]
  %v78 = vld [vmem:[%s4 + $0x18] sm:$0xff]
  %v79 = vld [vmem:[%s4 + $0x20] sm:$0xff]
  %v80 = vld [vmem:[%s4 + $0x28] sm:$0xff]
  %v81 = vld [vmem:[%s4 + $0x30] sm:$0xff]
  %v82 = vld [vmem:[%s4 + $0x38] sm:$0xff]
  %v83 = vld [vmem:[%s5] sm:$0x1]
  %v84 = vld [vmem:[%s6] sm:$0xff]
  %v85 = vld [vmem:[%s6 + $0x8] sm:$0xff]
  %v86 = vld [vmem:[%s6 + $0x10] sm:$0xff]
  %v87 = vld [vmem:[%s6 + $0x18] sm:$0xff]
  %v88 = vld [vmem:[%s6 + $0x20] sm:$0xff]
  %v89 = vld [vmem:[%s6 + $0x28] sm:$0xff]
  %v90 = vld [vmem:[%s6 + $0x30] sm:$0xff]
  %v91 = vld [vmem:[%s6 + $0x38] sm:$0xff]
  %v92 = vld [vmem:[%s7] sm:$0xff]
  %v93 = vld [vmem:[%s7 + $0x8] sm:$0xff]
  %v94 = vld [vmem:[%s7 + $0x10] sm:$0xff]
  %v95 = vld [vmem:[%s7 + $0x18] sm:$0xff]
  %v96 = vld [vmem:[%s7 + $0x20] sm:$0xff]
  %v97 = vld [vmem:[%s7 + $0x28] sm:$0xff]
  %v98 = vld [vmem:[%s7 + $0x30] sm:$0xff]
  %v99 = vld [vmem:[%s7 + $0x38] sm:$0xff]
  %v100 = vld [vmem:[%s8] sm:$0xff]
  %v101 = vld [vmem:[%s8 + $0x8] sm:$0xff]
  %v102 = vld [vmem:[%s8 + $0x10] sm:$0xff]
  %v103 = vld [vmem:[%s8 + $0x18] sm:$0xff]
  %v104 = vld [vmem:[%s8 + $0x20] sm:$0xff]
  %v105 = vld [vmem:[%s8 + $0x28] sm:$0xff]
  %v106 = vld [vmem:[%s8 + $0x30] sm:$0xff]
  %v107 = vld [vmem:[%s8 + $0x38] sm:$0xff]
  %v108 = vld [vmem:[%s9] sm:$0x1]
  %v109 = vld [vmem:[%s10] sm:$0xff]
  %v110 = vld [vmem:[%s10 + $0x8] sm:$0xff]
  %v111 = vld [vmem:[%s10 + $0x10] sm:$0xff]
  %v112 = vld [vmem:[%s10 + $0x18] sm:$0xff]
  %v113 = vld [vmem:[%s10 + $0x20] sm:$0xff]
  %v114 = vld [vmem:[%s10 + $0x28] sm:$0xff]
  %v115 = vld [vmem:[%s10 + $0x30] sm:$0xff]
  %v116 = vld [vmem:[%s10 + $0x38] sm:$0xff]
  %v117 = vld [vmem:[%s10 + $0x40] sm:$0xff]
  %v118 = vld [vmem:[%s10 + $0x48] sm:$0xff]
  %v119 = vld [vmem:[%s10 + $0x50] sm:$0xff]
  %v120 = vld [vmem:[%s10 + $0x58] sm:$0xff]
  %v121 = vld [vmem:[%s10 + $0x60] sm:$0xff]
  %v122 = vld [vmem:[%s10 + $0x68] sm:$0xff]
  %v123 = vld [vmem:[%s10 + $0x70] sm:$0xff]
  %v124 = vld [vmem:[%s10 + $0x78] sm:$0xff]
  %v125 = vld [vmem:[%s11] sm:$0x3]
  %v126 = vld [vmem:[%s12] sm:$0xff]
  %v127 = vld [vmem:[%s12 + $0x8] sm:$0xff]
  %v128 = vld [vmem:[%s12 + $0x10] sm:$0xff]
  %v129 = vld [vmem:[%s12 + $0x18] sm:$0xff]
  %v130 = vld [vmem:[%s12 + $0x20] sm:$0xff]
  %v131 = vld [vmem:[%s12 + $0x28] sm:$0xff]
  %v132 = vld [vmem:[%s12 + $0x30] sm:$0xff]
  %v133 = vld [vmem:[%s12 + $0x38] sm:$0xff]
  %v134 = vld [vmem:[%s12 + $0x40] sm:$0xff]
  %v135 = vld [vmem:[%s12 + $0x48] sm:$0xff]
  %v136 = vld [vmem:[%s12 + $0x50] sm:$0xff]
  %v137 = vld [vmem:[%s12 + $0x58] sm:$0xff]
  %v138 = vld [vmem:[%s12 + $0x60] sm:$0xff]
  %v139 = vld [vmem:[%s12 + $0x68] sm:$0xff]
  %v140 = vld [vmem:[%s12 + $0x70] sm:$0xff]
  %v141 = vld [vmem:[%s12 + $0x78] sm:$0xff]
  %v142 = vld [vmem:[%s12 + $0x80] sm:$0xff]
  %v143 = vld [vmem:[%s12 + $0x88] sm:$0xff]
  %v144 = vld [vmem:[%s12 + $0x90] sm:$0xff]
  %v145 = vld [vmem:[%s12 + $0x98] sm:$0xff]
  %v146 = vld [vmem:[%s12 + $0xa0] sm:$0xff]
  %v147 = vld [vmem:[%s12 + $0xa8] sm:$0xff]
  %v148 = vld [vmem:[%s12 + $0xb0] sm:$0xff]
  %v149 = vld [vmem:[%s12 + $0xb8] sm:$0xff]
  %v150 = vld [vmem:[%s12 + $0xc0] sm:$0xff]
  %v151 = vld [vmem:[%s12 + $0xc8] sm:$0xff]
  %v152 = vld [vmem:[%s12 + $0xd0] sm:$0xff]
  %v153 = vld [vmem:[%s12 + $0xd8] sm:$0xff]
  %v154 = vld [vmem:[%s12 + $0xe0] sm:$0xff]
  %v155 = vld [vmem:[%s12 + $0xe8] sm:$0xff]
  %v156 = vld [vmem:[%s12 + $0xf0] sm:$0xff]
  %v157 = vld [vmem:[%s12 + $0xf8] sm:$0xff]
  %v158 = vld [vmem:[%s13] sm:$0x1]
  %vm159 = vcmask 523264
  %v160 = vsel %vm159, %v54, 0.0
  %161 = vadd.xlane.f32.xlu0 %v160
  %v162 = vpop.xlane.xlu0 %161
  %v163 = vsel %vm159, %v55, 0.0
  %164 = vadd.xlane.f32.xlu0 %v163
  %v165 = vpop.xlane.xlu0 %164
  %v166 = vrcp.pop 64.0
  %v167 = vmul.f32 %v162, %v166
  %v168 = vmul.f32 %v165, %v166
  %v169 = vsub.f32 %v54, %v167
  %v170 = vsub.f32 %v55, %v168
  %v171 = vmul.f32 %v169, %v169
  %v172 = vmul.f32 %v170, %v170
  %v173 = vsel %vm159, %v171, 0.0
  %174 = vadd.xlane.f32.xlu0 %v173
  %v175 = vpop.xlane.xlu0 %174
  %v176 = vsel %vm159, %v172, 0.0
  %177 = vadd.xlane.f32.xlu0 %v176
  %v178 = vpop.xlane.xlu0 %177
  %v179 = vmul.f32 %v175, %v166
  %v180 = vmul.f32 %v178, %v166
  %v181 = vadd.f32 %v179, 1e-05
  %v182 = vadd.f32 %v180, 1e-05
  %v183 = vrsqrt.pop %v181
  %v184 = vrsqrt.pop %v182
  %v185 = vmul.f32 %v169, %v183
  %v186 = vmul.f32 %v170, %v184
  %v188 = vlaneseq
  %v189 = vshrl.u32 %v188, 7
  %v190 = vsub.s32 0, %v189
  %v191 = vrot.slane %v58, %v190
  %v193 = vmul.f32 %v185, %v191
  %v194 = vmul.f32 %v186, %v191
  %v195 = vpack.c.bf16 %v194, %v193
  %v196 = vpack.c.bf16 %v61, %v59
  %v197 = vpack.c.bf16 %v62, %v60
  %v198 = vpack.c.bf16 %v65, %v63
  %v199 = vpack.c.bf16 %v66, %v64
  %v200 = vpack.c.bf16 %v69, %v67
  %v201 = vpack.c.bf16 %v70, %v68
  %v202 = vpack.c.bf16 %v73, %v71
  %v203 = vpack.c.bf16 %v74, %v72
  %v205 = vsel %vm159, %v195, 0
  %207 = vmatprep.subr.bf16.mxu0 %v197
  %208 = vmatpush1.bf16.msra.mxu0 %v196
  %209 = vmatprep.subr.bf16.mxu0 %v199
  %210 = vmatpush1.bf16.msra.mxu0 %v198
  %211 = vmatprep.subr.bf16.mxu0 %v201
  %212 = vmatpush1.bf16.msra.mxu0 %v200
  %213 = vmatprep.subr.bf16.mxu0 %v203
  %214 = vmatpush1.bf16.msra.mxu0 %v202
  %215 = vmatprep.subr.bf16.mxu0 0
  %216 = vmatpush1.bf16.msra.mxu0 0
  %217 = vmatprep.subr.bf16.mxu0 0
  %218 = vmatpush1.bf16.msra.mxu0 0
  %219 = vmatprep.subr.bf16.mxu0 0
  %220 = vmatpush1.bf16.msra.mxu0 0
  %221 = vmatprep.subr.bf16.mxu0 0
  %222 = vmatpush1.bf16.msra.mxu0 0
  %223 = vmatprep.subr.bf16.mxu0 0
  %224 = vmatpush1.bf16.msra.mxu0 0
  %225 = vmatprep.subr.bf16.mxu0 0
  %226 = vmatpush1.bf16.msra.mxu0 0
  %227 = vmatprep.subr.bf16.mxu0 0
  %228 = vmatpush1.bf16.msra.mxu0 0
  %229 = vmatprep.subr.bf16.mxu0 0
  %230 = vmatpush1.bf16.msra.mxu0 0
  %231 = vmatprep.subr.bf16.mxu0 0
  %232 = vmatpush1.bf16.msra.mxu0 0
  %233 = vmatprep.subr.bf16.mxu0 0
  %234 = vmatpush1.bf16.msra.mxu0 0
  %235 = vmatprep.subr.bf16.mxu0 0
  %236 = vmatpush1.bf16.msra.mxu0 0
  %237 = vmatprep.subr.bf16.mxu0 0
  %238 = vmatpush1.bf16.msra.mxu0 0
  %239 = vmatprep.mubr.bf16.mxu0 0
  %240 = vmatmul.mubr.bf16.gmra.mrb[0].mxu0 %v205
  %v241 = vpop.f32.mrb[0].mxu0
  %v242 = vadd.f32 0.0, %v241
  %v243 = vpop.f32.mrb[0].mxu0
  %v244 = vadd.f32 0.0, %v243
  %v245 = vpop.f32.mrb[0].mxu0
  %v246 = vadd.f32 0.0, %v245
  %v247 = vpop.f32.mrb[0].mxu0
  %v248 = vadd.f32 0.0, %v247
  %249 = vdwg.mxu0
  %v250 = vpack.c.bf16 %v242, %v242
  %252 = vrot.lane.b32.xlu0 %v250, 64
  %v253 = vpop.permute.xlu0 %252
  %vm254 = vcmask 261120
  %v256 = vsel %vm254, %v250, 0
  %v259 = vsel %vm254, %v253, 0
  %261 = vmatprep.subr.bf16.mxu0 0
  %262 = vmatpush1.bf16.xpose.msra.mxu0 %v259
  %263 = vmatprep.subr.bf16.mxu0 0
  %264 = vmatpush1.bf16.xpose.msra.mxu0 0
  %265 = vmatprep.subr.bf16.mxu0 0
  %266 = vmatpush1.bf16.xpose.msra.mxu0 0
  %267 = vmatprep.subr.bf16.mxu0 0
  %268 = vmatpush1.bf16.xpose.msra.mxu0 0
  %269 = vmatprep.subr.bf16.mxu0 0
  %270 = vmatpush1.bf16.xpose.msra.mxu0 0
  %271 = vmatprep.subr.bf16.mxu0 0
  %272 = vmatpush1.bf16.xpose.msra.mxu0 0
  %273 = vmatprep.subr.bf16.mxu0 0
  %274 = vmatpush1.bf16.xpose.msra.mxu0 0
  %275 = vmatprep.subr.bf16.mxu0 0
  %276 = vmatpush1.bf16.xpose.msra.mxu0 0
  %277 = vmatprep.subr.bf16.mxu0 0
  %278 = vmatpush1.bf16.xpose.msra.mxu0 0
  %279 = vmatprep.subr.bf16.mxu0 0
  %280 = vmatpush1.bf16.xpose.msra.mxu0 0
  %281 = vmatprep.subr.bf16.mxu0 0
  %282 = vmatpush1.bf16.xpose.msra.mxu0 0
  %283 = vmatprep.subr.bf16.mxu0 0
  %284 = vmatpush1.bf16.xpose.msra.mxu0 0
  %285 = vmatprep.subr.bf16.mxu0 0
  %286 = vmatpush1.bf16.xpose.msra.mxu0 0
  %287 = vmatprep.subr.bf16.mxu0 0
  %288 = vmatpush1.bf16.xpose.msra.mxu0 0
  %289 = vmatprep.subr.bf16.mxu0 0
  %290 = vmatpush1.bf16.xpose.msra.mxu0 0
  %291 = vmatprep.subr.bf16.mxu0 0
  %292 = vmatpush1.bf16.xpose.msra.mxu0 0
  %293 = vmatprep.mubr.bf16.mxu0 0
  %294 = vmatmul.mubr.bf16.gmra.mrb[0].mxu0 %v256
  %v295 = vpop.f32.mrb[0].mxu0
  %v296 = vadd.f32 0.0, %v295
  %v297 = vpop.f32.mrb[0].mxu0
  %v298 = vpop.f32.mrb[0].mxu0
  %v299 = vpop.f32.mrb[0].mxu0
  %300 = vdwg.mxu0
  %v301 = vmul.f32 %v296, 0.17677669
  %v302 = vlaneseq
  %v303 = vshrl.u32 %v302, 7
  %v304 = vlaneseq
  %v305 = vand.u32 %v304, 127
  %vm306 = vcmp.le.s32.totalorder %v305, %v303
  %v307 = vsel %vm306, %v301, -3.4028235e+38
  %vm308 = vcmask 64512
  %v309 = vsel %vm308, %v307, -inf
  %310 = vmax.xlane.f32.xlu0 %v309
  %v311 = vpop.xlane.xlu0 %310
  %v312 = vsub.f32 %v307, %v311
  %v313 = vmul.f32 %v312, 1.442695
  %v314 = vpow.pop %v313
  %v315 = vsel %vm308, %v314, 0.0
  %316 = vadd.xlane.f32.xlu0 %v315
  %v317 = vpop.xlane.xlu0 %316
  %v318 = vrcp.pop %v317
  %v319 = vmul.f32 %v314, %v318
  %v320 = vpack.c.bf16 %v319, %v319
  %v321 = vpack.c.bf16 %v244, %v244
  %v323 = vsel %vm308, %v320, 0
  %vm325 = vcmask 1043456
  %v327 = vsel %vm325, %v321, 0
  %329 = vmatprep.subr.bf16.mxu0 0
  %330 = vmatpush1.bf16.msra.mxu0 %v327
  %331 = vmatprep.subr.bf16.mxu0 0
  %332 = vmatpush1.bf16.msra.mxu0 0
  %333 = vmatprep.subr.bf16.mxu0 0
  %334 = vmatpush1.bf16.msra.mxu0 0
  %335 = vmatprep.subr.bf16.mxu0 0
  %336 = vmatpush1.bf16.msra.mxu0 0
  %337 = vmatprep.subr.bf16.mxu0 0
  %338 = vmatpush1.bf16.msra.mxu0 0
  %339 = vmatprep.subr.bf16.mxu0 0
  %340 = vmatpush1.bf16.msra.mxu0 0
  %341 = vmatprep.subr.bf16.mxu0 0
  %342 = vmatpush1.bf16.msra.mxu0 0
  %343 = vmatprep.subr.bf16.mxu0 0
  %344 = vmatpush1.bf16.msra.mxu0 0
  %345 = vmatprep.subr.bf16.mxu0 0
  %346 = vmatpush1.bf16.msra.mxu0 0
  %347 = vmatprep.subr.bf16.mxu0 0
  %348 = vmatpush1.bf16.msra.mxu0 0
  %349 = vmatprep.subr.bf16.mxu0 0
  %350 = vmatpush1.bf16.msra.mxu0 0
  %351 = vmatprep.subr.bf16.mxu0 0
  %352 = vmatpush1.bf16.msra.mxu0 0
  %353 = vmatprep.subr.bf16.mxu0 0
  %354 = vmatpush1.bf16.msra.mxu0 0
  %355 = vmatprep.subr.bf16.mxu0 0
  %356 = vmatpush1.bf16.msra.mxu0 0
  %357 = vmatprep.subr.bf16.mxu0 0
  %358 = vmatpush1.bf16.msra.mxu0 0
  %359 = vmatprep.subr.bf16.mxu0 0
  %360 = vmatpush1.bf16.msra.mxu0 0
  %361 = vmatprep.mubr.bf16.mxu0 0
  %362 = vmatmul.mubr.bf16.gmra.mrb[0].mxu0 %v323
  %v363 = vpop.f32.mrb[0].mxu0
  %v364 = vadd.f32 0.0, %v363
  %v365 = vpop.f32.mrb[0].mxu0
  %v366 = vpop.f32.mrb[0].mxu0
  %v367 = vpop.f32.mrb[0].mxu0
  %368 = vdwg.mxu0
  %369 = vrot.lane.b32.xlu0 %v250, 96
  %v370 = vpop.permute.xlu0 %369
  %371 = vrot.lane.b32.xlu0 %v250, 32
  %v372 = vpop.permute.xlu0 %371
  %v374 = vsel %vm254, %v370, 0
  %v377 = vsel %vm254, %v372, 0
  %379 = vmatprep.subr.bf16.mxu0 0
  %380 = vmatpush1.bf16.xpose.msra.mxu0 %v377
  %381 = vmatprep.subr.bf16.mxu0 0
  %382 = vmatpush1.bf16.xpose.msra.mxu0 0
  %383 = vmatprep.subr.bf16.mxu0 0
  %384 = vmatpush1.bf16.xpose.msra.mxu0 0
  %385 = vmatprep.subr.bf16.mxu0 0
  %386 = vmatpush1.bf16.xpose.msra.mxu0 0
  %387 = vmatprep.subr.bf16.mxu0 0
  %388 = vmatpush1.bf16.xpose.msra.mxu0 0
  %389 = vmatprep.subr.bf16.mxu0 0
  %390 = vmatpush1.bf16.xpose.msra.mxu0 0
  %391 = vmatprep.subr.bf16.mxu0 0
  %392 = vmatpush1.bf16.xpose.msra.mxu0 0
  %393 = vmatprep.subr.bf16.mxu0 0
  %394 = vmatpush1.bf16.xpose.msra.mxu0 0
  %395 = vmatprep.subr.bf16.mxu0 0
  %396 = vmatpush1.bf16.xpose.msra.mxu0 0
  %397 = vmatprep.subr.bf16.mxu0 0
  %398 = vmatpush1.bf16.xpose.msra.mxu0 0
  %399 = vmatprep.subr.bf16.mxu0 0
  %400 = vmatpush1.bf16.xpose.msra.mxu0 0
  %401 = vmatprep.subr.bf16.mxu0 0
  %402 = vmatpush1.bf16.xpose.msra.mxu0 0
  %403 = vmatprep.subr.bf16.mxu0 0
  %404 = vmatpush1.bf16.xpose.msra.mxu0 0
  %405 = vmatprep.subr.bf16.mxu0 0
  %406 = vmatpush1.bf16.xpose.msra.mxu0 0
  %407 = vmatprep.subr.bf16.mxu0 0
  %408 = vmatpush1.bf16.xpose.msra.mxu0 0
  %409 = vmatprep.subr.bf16.mxu0 0
  %410 = vmatpush1.bf16.xpose.msra.mxu0 0
  %411 = vmatprep.mubr.bf16.mxu0 0
  %412 = vmatmul.mubr.bf16.gmra.mrb[0].mxu0 %v374
  %v413 = vpop.f32.mrb[0].mxu0
  %v414 = vadd.f32 0.0, %v413
  %v415 = vpop.f32.mrb[0].mxu0
  %v416 = vpop.f32.mrb[0].mxu0
  %v417 = vpop.f32.mrb[0].mxu0
  %418 = vdwg.mxu0
  %v419 = vmul.f32 %v414, 0.17677669
  %v420 = vsel %vm306, %v419, -3.4028235e+38
  %v421 = vsel %vm308, %v420, -inf
  %422 = vmax.xlane.f32.xlu0 %v421
  %v423 = vpop.xlane.xlu0 %422
  %v424 = vsub.f32 %v420, %v423
  %v425 = vmul.f32 %v424, 1.442695
  %v426 = vpow.pop %v425
  %v427 = vsel %vm308, %v426, 0.0
  %428 = vadd.xlane.f32.xlu0 %v427
  %v429 = vpop.xlane.xlu0 %428
  %v430 = vrcp.pop %v429
  %v431 = vmul.f32 %v426, %v430
  %v432 = vpack.c.bf16 %v431, %v431
  %434 = vrot.lane.b32.xlu0 %v321, 96
  %v435 = vpop.permute.xlu0 %434
  %v437 = vsel %vm308, %v432, 0
  %v440 = vsel %vm325, %v435, 0
  %442 = vmatprep.subr.bf16.mxu0 0
  %443 = vmatpush1.bf16.msra.mxu0 %v440
  %444 = vmatprep.subr.bf16.mxu0 0
  %445 = vmatpush1.bf16.msra.mxu0 0
  %446 = vmatprep.subr.bf16.mxu0 0
  %447 = vmatpush1.bf16.msra.mxu0 0
  %448 = vmatprep.subr.bf16.mxu0 0
  %449 = vmatpush1.bf16.msra.mxu0 0
  %450 = vmatprep.subr.bf16.mxu0 0
  %451 = vmatpush1.bf16.msra.mxu0 0
  %452 = vmatprep.subr.bf16.mxu0 0
  %453 = vmatpush1.bf16.msra.mxu0 0
  %454 = vmatprep.subr.bf16.mxu0 0
  %455 = vmatpush1.bf16.msra.mxu0 0
  %456 = vmatprep.subr.bf16.mxu0 0
  %457 = vmatpush1.bf16.msra.mxu0 0
  %458 = vmatprep.subr.bf16.mxu0 0
  %459 = vmatpush1.bf16.msra.mxu0 0
  %460 = vmatprep.subr.bf16.mxu0 0
  %461 = vmatpush1.bf16.msra.mxu0 0
  %462 = vmatprep.subr.bf16.mxu0 0
  %463 = vmatpush1.bf16.msra.mxu0 0
  %464 = vmatprep.subr.bf16.mxu0 0
  %465 = vmatpush1.bf16.msra.mxu0 0
  %466 = vmatprep.subr.bf16.mxu0 0
  %467 = vmatpush1.bf16.msra.mxu0 0
  %468 = vmatprep.subr.bf16.mxu0 0
  %469 = vmatpush1.bf16.msra.mxu0 0
  %470 = vmatprep.subr.bf16.mxu0 0
  %471 = vmatpush1.bf16.msra.mxu0 0
  %472 = vmatprep.subr.bf16.mxu0 0
  %473 = vmatpush1.bf16.msra.mxu0 0
  %474 = vmatprep.mubr.bf16.mxu0 0
  %475 = vmatmul.mubr.bf16.gmra.mrb[0].mxu0 %v437
  %v476 = vpop.f32.mrb[0].mxu0
  %v477 = vadd.f32 0.0, %v476
  %v478 = vpop.f32.mrb[0].mxu0
  %v479 = vpop.f32.mrb[0].mxu0
  %v480 = vpop.f32.mrb[0].mxu0
  %481 = vdwg.mxu0
  %483 = vrot.lane.b32.xlu0 %v477, 32
  %v484 = vpop.permute.xlu0 %483
  %v486 = vsel %vm254, %v364, %v484
  %v487 = vpack.c.bf16 %v246, %v246
  %489 = vrot.lane.b32.xlu0 %v487, 64
  %v490 = vpop.permute.xlu0 %489
  %v492 = vsel %vm254, %v487, 0
  %v495 = vsel %vm254, %v490, 0
  %497 = vmatprep.subr.bf16.mxu0 0
  %498 = vmatpush1.bf16.xpose.msra.mxu0 %v495
  %499 = vmatprep.subr.bf16.mxu0 0
  %500 = vmatpush1.bf16.xpose.msra.mxu0 0
  %501 = vmatprep.subr.bf16.mxu0 0
  %502 = vmatpush1.bf16.xpose.msra.mxu0 0
  %503 = vmatprep.subr.bf16.mxu0 0
  %504 = vmatpush1.bf16.xpose.msra.mxu0 0
  %505 = vmatprep.subr.bf16.mxu0 0
  %506 = vmatpush1.bf16.xpose.msra.mxu0 0
  %507 = vmatprep.subr.bf16.mxu0 0
  %508 = vmatpush1.bf16.xpose.msra.mxu0 0
  %509 = vmatprep.subr.bf16.mxu0 0
  %510 = vmatpush1.bf16.xpose.msra.mxu0 0
  %511 = vmatprep.subr.bf16.mxu0 0
  %512 = vmatpush1.bf16.xpose.msra.mxu0 0
  %513 = vmatprep.subr.bf16.mxu0 0
  %514 = vmatpush1.bf16.xpose.msra.mxu0 0
  %515 = vmatprep.subr.bf16.mxu0 0
  %516 = vmatpush1.bf16.xpose.msra.mxu0 0
  %517 = vmatprep.subr.bf16.mxu0 0
  %518 = vmatpush1.bf16.xpose.msra.mxu0 0
  %519 = vmatprep.subr.bf16.mxu0 0
  %520 = vmatpush1.bf16.xpose.msra.mxu0 0
  %521 = vmatprep.subr.bf16.mxu0 0
  %522 = vmatpush1.bf16.xpose.msra.mxu0 0
  %523 = vmatprep.subr.bf16.mxu0 0
  %524 = vmatpush1.bf16.xpose.msra.mxu0 0
  %525 = vmatprep.subr.bf16.mxu0 0
  %526 = vmatpush1.bf16.xpose.msra.mxu0 0
  %527 = vmatprep.subr.bf16.mxu0 0
  %528 = vmatpush1.bf16.xpose.msra.mxu0 0
  %529 = vmatprep.mubr.bf16.mxu0 0
  %530 = vmatmul.mubr.bf16.gmra.mrb[0].mxu0 %v492
  %v531 = vpop.f32.mrb[0].mxu0
  %v532 = vadd.f32 0.0, %v531
  %v533 = vpop.f32.mrb[0].mxu0
  %v534 = vpop.f32.mrb[0].mxu0
  %v535 = vpop.f32.mrb[0].mxu0
  %536 = vdwg.mxu0
  %v537 = vmul.f32 %v532, 0.17677669
  %v538 = vsel %vm306, %v537, -3.4028235e+38
  %v539 = vsel %vm308, %v538, -inf
  %540 = vmax.xlane.f32.xlu0 %v539
  %v541 = vpop.xlane.xlu0 %540
  %v542 = vsub.f32 %v538, %v541
  %v543 = vmul.f32 %v542, 1.442695
  %v544 = vpow.pop %v543
  %v545 = vsel %vm308, %v544, 0.0
  %546 = vadd.xlane.f32.xlu0 %v545
  %v547 = vpop.xlane.xlu0 %546
  %v548 = vrcp.pop %v547
  %v549 = vmul.f32 %v544, %v548
  %v550 = vpack.c.bf16 %v549, %v549
  %v551 = vpack.c.bf16 %v248, %v248
  %v553 = vsel %vm308, %v550, 0
  %v556 = vsel %vm325, %v551, 0
  %558 = vmatprep.subr.bf16.mxu0 0
  %559 = vmatpush1.bf16.msra.mxu0 %v556
  %560 = vmatprep.subr.bf16.mxu0 0
  %561 = vmatpush1.bf16.msra.mxu0 0
  %562 = vmatprep.subr.bf16.mxu0 0
  %563 = vmatpush1.bf16.msra.mxu0 0
  %564 = vmatprep.subr.bf16.mxu0 0
  %565 = vmatpush1.bf16.msra.mxu0 0
  %566 = vmatprep.subr.bf16.mxu0 0
  %567 = vmatpush1.bf16.msra.mxu0 0
  %568 = vmatprep.subr.bf16.mxu0 0
  %569 = vmatpush1.bf16.msra.mxu0 0
  %570 = vmatprep.subr.bf16.mxu0 0
  %571 = vmatpush1.bf16.msra.mxu0 0
  %572 = vmatprep.subr.bf16.mxu0 0
  %573 = vmatpush1.bf16.msra.mxu0 0
  %574 = vmatprep.subr.bf16.mxu0 0
  %575 = vmatpush1.bf16.msra.mxu0 0
  %576 = vmatprep.subr.bf16.mxu0 0
  %577 = vmatpush1.bf16.msra.mxu0 0
  %578 = vmatprep.subr.bf16.mxu0 0
  %579 = vmatpush1.bf16.msra.mxu0 0
  %580 = vmatprep.subr.bf16.mxu0 0
  %581 = vmatpush1.bf16.msra.mxu0 0
  %582 = vmatprep.subr.bf16.mxu0 0
  %583 = vmatpush1.bf16.msra.mxu0 0
  %584 = vmatprep.subr.bf16.mxu0 0
  %585 = vmatpush1.bf16.msra.mxu0 0
  %586 = vmatprep.subr.bf16.mxu0 0
  %587 = vmatpush1.bf16.msra.mxu0 0
  %588 = vmatprep.subr.bf16.mxu0 0
  %589 = vmatpush1.bf16.msra.mxu0 0
  %590 = vmatprep.mubr.bf16.mxu0 0
  %591 = vmatmul.mubr.bf16.gmra.mrb[0].mxu0 %v553
  %v592 = vpop.f32.mrb[0].mxu0
  %v593 = vadd.f32 0.0, %v592
  %v594 = vpop.f32.mrb[0].mxu0
  %v595 = vpop.f32.mrb[0].mxu0
  %v596 = vpop.f32.mrb[0].mxu0
  %597 = vdwg.mxu0
  %598 = vrot.lane.b32.xlu0 %v487, 96
  %v599 = vpop.permute.xlu0 %598
  %600 = vrot.lane.b32.xlu0 %v487, 32
  %v601 = vpop.permute.xlu0 %600
  %v603 = vsel %vm254, %v599, 0
  %v606 = vsel %vm254, %v601, 0
  %608 = vmatprep.subr.bf16.mxu0 0
  %609 = vmatpush1.bf16.xpose.msra.mxu0 %v606
  %610 = vmatprep.subr.bf16.mxu0 0
  %611 = vmatpush1.bf16.xpose.msra.mxu0 0
  %612 = vmatprep.subr.bf16.mxu0 0
  %613 = vmatpush1.bf16.xpose.msra.mxu0 0
  %614 = vmatprep.subr.bf16.mxu0 0
  %615 = vmatpush1.bf16.xpose.msra.mxu0 0
  %616 = vmatprep.subr.bf16.mxu0 0
  %617 = vmatpush1.bf16.xpose.msra.mxu0 0
  %618 = vmatprep.subr.bf16.mxu0 0
  %619 = vmatpush1.bf16.xpose.msra.mxu0 0
  %620 = vmatprep.subr.bf16.mxu0 0
  %621 = vmatpush1.bf16.xpose.msra.mxu0 0
  %622 = vmatprep.subr.bf16.mxu0 0
  %623 = vmatpush1.bf16.xpose.msra.mxu0 0
  %624 = vmatprep.subr.bf16.mxu0 0
  %625 = vmatpush1.bf16.xpose.msra.mxu0 0
  %626 = vmatprep.subr.bf16.mxu0 0
  %627 = vmatpush1.bf16.xpose.msra.mxu0 0
  %628 = vmatprep.subr.bf16.mxu0 0
  %629 = vmatpush1.bf16.xpose.msra.mxu0 0
  %630 = vmatprep.subr.bf16.mxu0 0
  %631 = vmatpush1.bf16.xpose.msra.mxu0 0
  %632 = vmatprep.subr.bf16.mxu0 0
  %633 = vmatpush1.bf16.xpose.msra.mxu0 0
  %634 = vmatprep.subr.bf16.mxu0 0
  %635 = vmatpush1.bf16.xpose.msra.mxu0 0
  %636 = vmatprep.subr.bf16.mxu0 0
  %637 = vmatpush1.bf16.xpose.msra.mxu0 0
  %638 = vmatprep.subr.bf16.mxu0 0
  %639 = vmatpush1.bf16.xpose.msra.mxu0 0
  %640 = vmatprep.mubr.bf16.mxu0 0
  %641 = vmatmul.mubr.bf16.gmra.mrb[0].mxu0 %v603
  %v642 = vpop.f32.mrb[0].mxu0
  %v643 = vadd.f32 0.0, %v642
  %v644 = vpop.f32.mrb[0].mxu0
  %v645 = vpop.f32.mrb[0].mxu0
  %v646 = vpop.f32.mrb[0].mxu0
  %647 = vdwg.mxu0
  %v648 = vmul.f32 %v643, 0.17677669
  %v649 = vsel %vm306, %v648, -3.4028235e+38
  %v650 = vsel %vm308, %v649, -inf
  %651 = vmax.xlane.f32.xlu0 %v650
  %v652 = vpop.xlane.xlu0 %651
  %v653 = vsub.f32 %v649, %v652
  %v654 = vmul.f32 %v653, 1.442695
  %v655 = vpow.pop %v654
  %v656 = vsel %vm308, %v655, 0.0
  %657 = vadd.xlane.f32.xlu0 %v656
  %v658 = vpop.xlane.xlu0 %657
  %v659 = vrcp.pop %v658
  %v660 = vmul.f32 %v655, %v659
  %v661 = vpack.c.bf16 %v660, %v660
  %663 = vrot.lane.b32.xlu0 %v551, 96
  %v664 = vpop.permute.xlu0 %663
  %v666 = vsel %vm308, %v661, 0
  %v669 = vsel %vm325, %v664, 0
  %671 = vmatprep.subr.bf16.mxu0 0
  %672 = vmatpush1.bf16.msra.mxu0 %v669
  %673 = vmatprep.subr.bf16.mxu0 0
  %674 = vmatpush1.bf16.msra.mxu0 0
  %675 = vmatprep.subr.bf16.mxu0 0
  %676 = vmatpush1.bf16.msra.mxu0 0
  %677 = vmatprep.subr.bf16.mxu0 0
  %678 = vmatpush1.bf16.msra.mxu0 0
  %679 = vmatprep.subr.bf16.mxu0 0
  %680 = vmatpush1.bf16.msra.mxu0 0
  %681 = vmatprep.subr.bf16.mxu0 0
  %682 = vmatpush1.bf16.msra.mxu0 0
  %683 = vmatprep.subr.bf16.mxu0 0
  %684 = vmatpush1.bf16.msra.mxu0 0
  %685 = vmatprep.subr.bf16.mxu0 0
  %686 = vmatpush1.bf16.msra.mxu0 0
  %687 = vmatprep.subr.bf16.mxu0 0
  %688 = vmatpush1.bf16.msra.mxu0 0
  %689 = vmatprep.subr.bf16.mxu0 0
  %690 = vmatpush1.bf16.msra.mxu0 0
  %691 = vmatprep.subr.bf16.mxu0 0
  %692 = vmatpush1.bf16.msra.mxu0 0
  %693 = vmatprep.subr.bf16.mxu0 0
  %694 = vmatpush1.bf16.msra.mxu0 0
  %695 = vmatprep.subr.bf16.mxu0 0
  %696 = vmatpush1.bf16.msra.mxu0 0
  %697 = vmatprep.subr.bf16.mxu0 0
  %698 = vmatpush1.bf16.msra.mxu0 0
  %699 = vmatprep.subr.bf16.mxu0 0
  %700 = vmatpush1.bf16.msra.mxu0 0
  %701 = vmatprep.subr.bf16.mxu0 0
  %702 = vmatpush1.bf16.msra.mxu0 0
  %703 = vmatprep.mubr.bf16.mxu0 0
  %704 = vmatmul.mubr.bf16.gmra.mrb[0].mxu0 %v666
  %v705 = vpop.f32.mrb[0].mxu0
  %v706 = vadd.f32 0.0, %v705
  %v707 = vpop.f32.mrb[0].mxu0
  %v708 = vpop.f32.mrb[0].mxu0
  %v709 = vpop.f32.mrb[0].mxu0
  %710 = vdwg.mxu0
  %712 = vrot.lane.b32.xlu0 %v706, 32
  %v713 = vpop.permute.xlu0 %712
  %v715 = vsel %vm254, %v593, %v713
  %v716 = vpack.c.bf16 %v715, %v486
  %v717 = vpack.c.bf16 %v76, %v75
  %v718 = vpack.c.bf16 %v78, %v77
  %v719 = vpack.c.bf16 %v80, %v79
  %v720 = vpack.c.bf16 %v82, %v81
  %v722 = vsel %vm159, %v716, 0
  %724 = vmatprep.subr.bf16.mxu0 0
  %725 = vmatpush1.bf16.msra.mxu0 %v717
  %726 = vmatprep.subr.bf16.mxu0 0
  %727 = vmatpush1.bf16.msra.mxu0 %v718
  %728 = vmatprep.subr.bf16.mxu0 0
  %729 = vmatpush1.bf16.msra.mxu0 %v719
  %730 = vmatprep.subr.bf16.mxu0 0
  %731 = vmatpush1.bf16.msra.mxu0 %v720
  %732 = vmatprep.subr.bf16.mxu0 0
  %733 = vmatpush1.bf16.msra.mxu0 0
  %734 = vmatprep.subr.bf16.mxu0 0
  %735 = vmatpush1.bf16.msra.mxu0 0
  %736 = vmatprep.subr.bf16.mxu0 0
  %737 = vmatpush1.bf16.msra.mxu0 0
  %738 = vmatprep.subr.bf16.mxu0 0
  %739 = vmatpush1.bf16.msra.mxu0 0
  %740 = vmatprep.subr.bf16.mxu0 0
  %741 = vmatpush1.bf16.msra.mxu0 0
  %742 = vmatprep.subr.bf16.mxu0 0
  %743 = vmatpush1.bf16.msra.mxu0 0
  %744 = vmatprep.subr.bf16.mxu0 0
  %745 = vmatpush1.bf16.msra.mxu0 0
  %746 = vmatprep.subr.bf16.mxu0 0
  %747 = vmatpush1.bf16.msra.mxu0 0
  %748 = vmatprep.subr.bf16.mxu0 0
  %749 = vmatpush1.bf16.msra.mxu0 0
  %750 = vmatprep.subr.bf16.mxu0 0
  %751 = vmatpush1.bf16.msra.mxu0 0
  %752 = vmatprep.subr.bf16.mxu0 0
  %753 = vmatpush1.bf16.msra.mxu0 0
  %754 = vmatprep.subr.bf16.mxu0 0
  %755 = vmatpush1.bf16.msra.mxu0 0
  %756 = vmatprep.mubr.bf16.mxu0 0
  %757 = vmatmul.mubr.bf16.gmra.mrb[0].mxu0 %v722
  %v758 = vpop.f32.mrb[0].mxu0
  %v759 = vadd.f32 0.0, %v758
  %v760 = vpop.f32.mrb[0].mxu0
  %v761 = vpop.f32.mrb[0].mxu0
  %v762 = vadd.f32 0.0, %v761
  %v763 = vpop.f32.mrb[0].mxu0
  %764 = vdwg.mxu0
  %v765 = vadd.f32 %v54, %v759
  %v766 = vadd.f32 %v55, %v762
  %v767 = vsel %vm159, %v765, 0.0
  %768 = vadd.xlane.f32.xlu0 %v767
  %v769 = vpop.xlane.xlu0 %768
  %v770 = vsel %vm159, %v766, 0.0
  %771 = vadd.xlane.f32.xlu0 %v770
  %v772 = vpop.xlane.xlu0 %771
  %v773 = vmul.f32 %v769, %v166
  %v774 = vmul.f32 %v772, %v166
  %v775 = vsub.f32 %v765, %v773
  %v776 = vsub.f32 %v766, %v774
  %v777 = vmul.f32 %v775, %v775
  %v778 = vmul.f32 %v776, %v776
  %v779 = vsel %vm159, %v777, 0.0
  %780 = vadd.xlane.f32.xlu0 %v779
  %v781 = vpop.xlane.xlu0 %780
  %v782 = vsel %vm159, %v778, 0.0
  %783 = vadd.xlane.f32.xlu0 %v782
  %v784 = vpop.xlane.xlu0 %783
  %v785 = vmul.f32 %v781, %v166
  %v786 = vmul.f32 %v784, %v166
  %v787 = vadd.f32 %v785, 1e-05
  %v788 = vadd.f32 %v786, 1e-05
  %v789 = vrsqrt.pop %v787
  %v790 = vrsqrt.pop %v788
  %v791 = vmul.f32 %v775, %v789
  %v792 = vmul.f32 %v776, %v790
  %v794 = vlaneseq
  %v795 = vshrl.u32 %v794, 7
  %v796 = vsub.s32 0, %v795
  %v797 = vrot.slane %v83, %v796
  %v799 = vmul.f32 %v791, %v797
  %v800 = vmul.f32 %v792, %v797
  %v801 = vpack.c.bf16 %v800, %v799
  %v802 = vpack.c.bf16 %v85, %v84
  %v803 = vpack.c.bf16 %v87, %v86
  %v804 = vpack.c.bf16 %v89, %v88
  %v805 = vpack.c.bf16 %v91, %v90
  %v807 = vsel %vm159, %v801, 0
  %809 = vmatprep.subr.bf16.mxu0 0
  %810 = vmatpush1.bf16.msra.mxu0 %v802
  %811 = vmatprep.subr.bf16.mxu0 0
  %812 = vmatpush1.bf16.msra.mxu0 %v803
  %813 = vmatprep.subr.bf16.mxu0 0
  %814 = vmatpush1.bf16.msra.mxu0 %v804
  %815 = vmatprep.subr.bf16.mxu0 0
  %816 = vmatpush1.bf16.msra.mxu0 %v805
  %817 = vmatprep.subr.bf16.mxu0 0
  %818 = vmatpush1.bf16.msra.mxu0 0
  %819 = vmatprep.subr.bf16.mxu0 0
  %820 = vmatpush1.bf16.msra.mxu0 0
  %821 = vmatprep.subr.bf16.mxu0 0
  %822 = vmatpush1.bf16.msra.mxu0 0
  %823 = vmatprep.subr.bf16.mxu0 0
  %824 = vmatpush1.bf16.msra.mxu0 0
  %825 = vmatprep.subr.bf16.mxu0 0
  %826 = vmatpush1.bf16.msra.mxu0 0
  %827 = vmatprep.subr.bf16.mxu0 0
  %828 = vmatpush1.bf16.msra.mxu0 0
  %829 = vmatprep.subr.bf16.mxu0 0
  %830 = vmatpush1.bf16.msra.mxu0 0
  %831 = vmatprep.subr.bf16.mxu0 0
  %832 = vmatpush1.bf16.msra.mxu0 0
  %833 = vmatprep.subr.bf16.mxu0 0
  %834 = vmatpush1.bf16.msra.mxu0 0
  %835 = vmatprep.subr.bf16.mxu0 0
  %836 = vmatpush1.bf16.msra.mxu0 0
  %837 = vmatprep.subr.bf16.mxu0 0
  %838 = vmatpush1.bf16.msra.mxu0 0
  %839 = vmatprep.subr.bf16.mxu0 0
  %840 = vmatpush1.bf16.msra.mxu0 0
  %841 = vmatprep.mubr.bf16.mxu0 0
  %842 = vmatmul.mubr.bf16.gmra.mrb[0].mxu0 %v807
  %v843 = vpop.f32.mrb[0].mxu0
  %v844 = vadd.f32 0.0, %v843
  %v845 = vpop.f32.mrb[0].mxu0
  %v846 = vpop.f32.mrb[0].mxu0
  %v847 = vadd.f32 0.0, %v846
  %v848 = vpop.f32.mrb[0].mxu0
  %849 = vdwg.mxu0
  %v850 = vpack.c.bf16 %v57, %v56
  %v851 = vpack.c.bf16 %v93, %v92
  %v852 = vpack.c.bf16 %v95, %v94
  %v853 = vpack.c.bf16 %v97, %v96
  %v854 = vpack.c.bf16 %v99, %v98
  %v856 = vsel %vm159, %v850, 0
  %858 = vmatprep.subr.bf16.mxu0 0
  %859 = vmatpush1.bf16.msra.mxu0 %v851
  %860 = vmatprep.subr.bf16.mxu0 0
  %861 = vmatpush1.bf16.msra.mxu0 %v852
  %862 = vmatprep.subr.bf16.mxu0 0
  %863 = vmatpush1.bf16.msra.mxu0 %v853
  %864 = vmatprep.subr.bf16.mxu0 0
  %865 = vmatpush1.bf16.msra.mxu0 %v854
  %866 = vmatprep.subr.bf16.mxu0 0
  %867 = vmatpush1.bf16.msra.mxu0 0
  %868 = vmatprep.subr.bf16.mxu0 0
  %869 = vmatpush1.bf16.msra.mxu0 0
  %870 = vmatprep.subr.bf16.mxu0 0
  %871 = vmatpush1.bf16.msra.mxu0 0
  %872 = vmatprep.subr.bf16.mxu0 0
  %873 = vmatpush1.bf16.msra.mxu0 0
  %874 = vmatprep.subr.bf16.mxu0 0
  %875 = vmatpush1.bf16.msra.mxu0 0
  %876 = vmatprep.subr.bf16.mxu0 0
  %877 = vmatpush1.bf16.msra.mxu0 0
  %878 = vmatprep.subr.bf16.mxu0 0
  %879 = vmatpush1.bf16.msra.mxu0 0
  %880 = vmatprep.subr.bf16.mxu0 0
  %881 = vmatpush1.bf16.msra.mxu0 0
  %882 = vmatprep.subr.bf16.mxu0 0
  %883 = vmatpush1.bf16.msra.mxu0 0
  %884 = vmatprep.subr.bf16.mxu0 0
  %885 = vmatpush1.bf16.msra.mxu0 0
  %886 = vmatprep.subr.bf16.mxu0 0
  %887 = vmatpush1.bf16.msra.mxu0 0
  %888 = vmatprep.subr.bf16.mxu0 0
  %889 = vmatpush1.bf16.msra.mxu0 0
  %890 = vmatprep.mubr.bf16.mxu0 0
  %891 = vmatmul.mubr.bf16.gmra.mrb[0].mxu0 %v856
  %v892 = vpop.f32.mrb[0].mxu0
  %v893 = vadd.f32 0.0, %v892
  %v894 = vpop.f32.mrb[0].mxu0
  %v895 = vpop.f32.mrb[0].mxu0
  %v896 = vadd.f32 0.0, %v895
  %v897 = vpop.f32.mrb[0].mxu0
  %898 = vdwg.mxu0
  %v899 = vpack.c.bf16 %v844, %v844
  %v900 = vpack.c.bf16 %v893, %v893
  %v902 = vsel %vm254, %v899, 0
  %v905 = vsel %vm254, %v900, 0
  %907 = vmatprep.subr.bf16.mxu0 0
  %908 = vmatpush1.bf16.xpose.msra.mxu0 %v905
  %909 = vmatprep.subr.bf16.mxu0 0
  %910 = vmatpush1.bf16.xpose.msra.mxu0 0
  %911 = vmatprep.subr.bf16.mxu0 0
  %912 = vmatpush1.bf16.xpose.msra.mxu0 0
  %913 = vmatprep.subr.bf16.mxu0 0
  %914 = vmatpush1.bf16.xpose.msra.mxu0 0
  %915 = vmatprep.subr.bf16.mxu0 0
  %916 = vmatpush1.bf16.xpose.msra.mxu0 0
  %917 = vmatprep.subr.bf16.mxu0 0
  %918 = vmatpush1.bf16.xpose.msra.mxu0 0
  %919 = vmatprep.subr.bf16.mxu0 0
  %920 = vmatpush1.bf16.xpose.msra.mxu0 0
  %921 = vmatprep.subr.bf16.mxu0 0
  %922 = vmatpush1.bf16.xpose.msra.mxu0 0
  %923 = vmatprep.subr.bf16.mxu0 0
  %924 = vmatpush1.bf16.xpose.msra.mxu0 0
  %925 = vmatprep.subr.bf16.mxu0 0
  %926 = vmatpush1.bf16.xpose.msra.mxu0 0
  %927 = vmatprep.subr.bf16.mxu0 0
  %928 = vmatpush1.bf16.xpose.msra.mxu0 0
  %929 = vmatprep.subr.bf16.mxu0 0
  %930 = vmatpush1.bf16.xpose.msra.mxu0 0
  %931 = vmatprep.subr.bf16.mxu0 0
  %932 = vmatpush1.bf16.xpose.msra.mxu0 0
  %933 = vmatprep.subr.bf16.mxu0 0
  %934 = vmatpush1.bf16.xpose.msra.mxu0 0
  %935 = vmatprep.subr.bf16.mxu0 0
  %936 = vmatpush1.bf16.xpose.msra.mxu0 0
  %937 = vmatprep.subr.bf16.mxu0 0
  %938 = vmatpush1.bf16.xpose.msra.mxu0 0
  %939 = vmatprep.mubr.bf16.mxu0 0
  %940 = vmatmul.mubr.bf16.gmra.mrb[0].mxu0 %v902
  %v941 = vpop.f32.mrb[0].mxu0
  %v942 = vadd.f32 0.0, %v941
  %v943 = vpop.f32.mrb[0].mxu0
  %v944 = vpop.f32.mrb[0].mxu0
  %v945 = vpop.f32.mrb[0].mxu0
  %946 = vdwg.mxu0
  %v947 = vmul.f32 %v942, 0.17677669
  %v948 = vsel %vm308, %v947, -inf
  %949 = vmax.xlane.f32.xlu0 %v948
  %v950 = vpop.xlane.xlu0 %949
  %v951 = vsub.f32 %v947, %v950
  %v952 = vmul.f32 %v951, 1.442695
  %v953 = vpow.pop %v952
  %v954 = vsel %vm308, %v953, 0.0
  %955 = vadd.xlane.f32.xlu0 %v954
  %v956 = vpop.xlane.xlu0 %955
  %v957 = vrcp.pop %v956
  %v958 = vmul.f32 %v953, %v957
  %v959 = vpack.c.bf16 %v958, %v958
  %961 = vrot.lane.b32.xlu0 %v900, 64
  %v962 = vpop.permute.xlu0 %961
  %v964 = vsel %vm308, %v959, 0
  %v967 = vsel %vm325, %v962, 0
  %969 = vmatprep.subr.bf16.mxu0 0
  %970 = vmatpush1.bf16.msra.mxu0 %v967
  %971 = vmatprep.subr.bf16.mxu0 0
  %972 = vmatpush1.bf16.msra.mxu0 0
  %973 = vmatprep.subr.bf16.mxu0 0
  %974 = vmatpush1.bf16.msra.mxu0 0
  %975 = vmatprep.subr.bf16.mxu0 0
  %976 = vmatpush1.bf16.msra.mxu0 0
  %977 = vmatprep.subr.bf16.mxu0 0
  %978 = vmatpush1.bf16.msra.mxu0 0
  %979 = vmatprep.subr.bf16.mxu0 0
  %980 = vmatpush1.bf16.msra.mxu0 0
  %981 = vmatprep.subr.bf16.mxu0 0
  %982 = vmatpush1.bf16.msra.mxu0 0
  %983 = vmatprep.subr.bf16.mxu0 0
  %984 = vmatpush1.bf16.msra.mxu0 0
  %985 = vmatprep.subr.bf16.mxu0 0
  %986 = vmatpush1.bf16.msra.mxu0 0
  %987 = vmatprep.subr.bf16.mxu0 0
  %988 = vmatpush1.bf16.msra.mxu0 0
  %989 = vmatprep.subr.bf16.mxu0 0
  %990 = vmatpush1.bf16.msra.mxu0 0
  %991 = vmatprep.subr.bf16.mxu0 0
  %992 = vmatpush1.bf16.msra.mxu0 0
  %993 = vmatprep.subr.bf16.mxu0 0
  %994 = vmatpush1.bf16.msra.mxu0 0
  %995 = vmatprep.subr.bf16.mxu0 0
  %996 = vmatpush1.bf16.msra.mxu0 0
  %997 = vmatprep.subr.bf16.mxu0 0
  %998 = vmatpush1.bf16.msra.mxu0 0
  %999 = vmatprep.subr.bf16.mxu0 0
  %1000 = vmatpush1.bf16.msra.mxu0 0
  %1001 = vmatprep.mubr.bf16.mxu0 0
  %1002 = vmatmul.mubr.bf16.gmra.mrb[0].mxu0 %v964
  %v1003 = vpop.f32.mrb[0].mxu0
  %v1004 = vadd.f32 0.0, %v1003
  %v1005 = vpop.f32.mrb[0].mxu0
  %v1006 = vpop.f32.mrb[0].mxu0
  %v1007 = vpop.f32.mrb[0].mxu0
  %1008 = vdwg.mxu0
  %1010 = vrot.lane.b32.xlu0 %v899, 96
  %v1011 = vpop.permute.xlu0 %1010
  %1012 = vrot.lane.b32.xlu0 %v900, 96
  %v1013 = vpop.permute.xlu0 %1012
  %v1015 = vsel %vm254, %v1011, 0
  %v1018 = vsel %vm254, %v1013, 0
  %1020 = vmatprep.subr.bf16.mxu0 0
  %1021 = vmatpush1.bf16.xpose.msra.mxu0 %v1018
  %1022 = vmatprep.subr.bf16.mxu0 0
  %1023 = vmatpush1.bf16.xpose.msra.mxu0 0
  %1024 = vmatprep.subr.bf16.mxu0 0
  %1025 = vmatpush1.bf16.xpose.msra.mxu0 0
  %1026 = vmatprep.subr.bf16.mxu0 0
  %1027 = vmatpush1.bf16.xpose.msra.mxu0 0
  %1028 = vmatprep.subr.bf16.mxu0 0
  %1029 = vmatpush1.bf16.xpose.msra.mxu0 0
  %1030 = vmatprep.subr.bf16.mxu0 0
  %1031 = vmatpush1.bf16.xpose.msra.mxu0 0
  %1032 = vmatprep.subr.bf16.mxu0 0
  %1033 = vmatpush1.bf16.xpose.msra.mxu0 0
  %1034 = vmatprep.subr.bf16.mxu0 0
  %1035 = vmatpush1.bf16.xpose.msra.mxu0 0
  %1036 = vmatprep.subr.bf16.mxu0 0
  %1037 = vmatpush1.bf16.xpose.msra.mxu0 0
  %1038 = vmatprep.subr.bf16.mxu0 0
  %1039 = vmatpush1.bf16.xpose.msra.mxu0 0
  %1040 = vmatprep.subr.bf16.mxu0 0
  %1041 = vmatpush1.bf16.xpose.msra.mxu0 0
  %1042 = vmatprep.subr.bf16.mxu0 0
  %1043 = vmatpush1.bf16.xpose.msra.mxu0 0
  %1044 = vmatprep.subr.bf16.mxu0 0
  %1045 = vmatpush1.bf16.xpose.msra.mxu0 0
  %1046 = vmatprep.subr.bf16.mxu0 0
  %1047 = vmatpush1.bf16.xpose.msra.mxu0 0
  %1048 = vmatprep.subr.bf16.mxu0 0
  %1049 = vmatpush1.bf16.xpose.msra.mxu0 0
  %1050 = vmatprep.subr.bf16.mxu0 0
  %1051 = vmatpush1.bf16.xpose.msra.mxu0 0
  %1052 = vmatprep.mubr.bf16.mxu0 0
  %1053 = vmatmul.mubr.bf16.gmra.mrb[0].mxu0 %v1015
  %v1054 = vpop.f32.mrb[0].mxu0
  %v1055 = vadd.f32 0.0, %v1054
  %v1056 = vpop.f32.mrb[0].mxu0
  %v1057 = vpop.f32.mrb[0].mxu0
  %v1058 = vpop.f32.mrb[0].mxu0
  %1059 = vdwg.mxu0
  %v1060 = vmul.f32 %v1055, 0.17677669
  %v1061 = vsel %vm308, %v1060, -inf
  %1062 = vmax.xlane.f32.xlu0 %v1061
  %v1063 = vpop.xlane.xlu0 %1062
  %v1064 = vsub.f32 %v1060, %v1063
  %v1065 = vmul.f32 %v1064, 1.442695
  %v1066 = vpow.pop %v1065
  %v1067 = vsel %vm308, %v1066, 0.0
  %1068 = vadd.xlane.f32.xlu0 %v1067
  %v1069 = vpop.xlane.xlu0 %1068
  %v1070 = vrcp.pop %v1069
  %v1071 = vmul.f32 %v1066, %v1070
  %v1072 = vpack.c.bf16 %v1071, %v1071
  %1073 = vrot.lane.b32.xlu0 %v900, 32
  %v1074 = vpop.permute.xlu0 %1073
  %v1076 = vsel %vm308, %v1072, 0
  %v1079 = vsel %vm325, %v1074, 0
  %1081 = vmatprep.subr.bf16.mxu0 0
  %1082 = vmatpush1.bf16.msra.mxu0 %v1079
  %1083 = vmatprep.subr.bf16.mxu0 0
  %1084 = vmatpush1.bf16.msra.mxu0 0
  %1085 = vmatprep.subr.bf16.mxu0 0
  %1086 = vmatpush1.bf16.msra.mxu0 0
  %1087 = vmatprep.subr.bf16.mxu0 0
  %1088 = vmatpush1.bf16.msra.mxu0 0
  %1089 = vmatprep.subr.bf16.mxu0 0
  %1090 = vmatpush1.bf16.msra.mxu0 0
  %1091 = vmatprep.subr.bf16.mxu0 0
  %1092 = vmatpush1.bf16.msra.mxu0 0
  %1093 = vmatprep.subr.bf16.mxu0 0
  %1094 = vmatpush1.bf16.msra.mxu0 0
  %1095 = vmatprep.subr.bf16.mxu0 0
  %1096 = vmatpush1.bf16.msra.mxu0 0
  %1097 = vmatprep.subr.bf16.mxu0 0
  %1098 = vmatpush1.bf16.msra.mxu0 0
  %1099 = vmatprep.subr.bf16.mxu0 0
  %1100 = vmatpush1.bf16.msra.mxu0 0
  %1101 = vmatprep.subr.bf16.mxu0 0
  %1102 = vmatpush1.bf16.msra.mxu0 0
  %1103 = vmatprep.subr.bf16.mxu0 0
  %1104 = vmatpush1.bf16.msra.mxu0 0
  %1105 = vmatprep.subr.bf16.mxu0 0
  %1106 = vmatpush1.bf16.msra.mxu0 0
  %1107 = vmatprep.subr.bf16.mxu0 0
  %1108 = vmatpush1.bf16.msra.mxu0 0
  %1109 = vmatprep.subr.bf16.mxu0 0
  %1110 = vmatpush1.bf16.msra.mxu0 0
  %1111 = vmatprep.subr.bf16.mxu0 0
  %1112 = vmatpush1.bf16.msra.mxu0 0
  %1113 = vmatprep.mubr.bf16.mxu0 0
  %1114 = vmatmul.mubr.bf16.gmra.mrb[0].mxu0 %v1076
  %v1115 = vpop.f32.mrb[0].mxu0
  %v1116 = vadd.f32 0.0, %v1115
  %v1117 = vpop.f32.mrb[0].mxu0
  %v1118 = vpop.f32.mrb[0].mxu0
  %v1119 = vpop.f32.mrb[0].mxu0
  %1120 = vdwg.mxu0
  %1122 = vrot.lane.b32.xlu0 %v1116, 32
  %v1123 = vpop.permute.xlu0 %1122
  %v1125 = vsel %vm254, %v1004, %v1123
  %v1126 = vpack.c.bf16 %v847, %v847
  %v1127 = vpack.c.bf16 %v896, %v896
  %v1129 = vsel %vm254, %v1126, 0
  %v1132 = vsel %vm254, %v1127, 0
  %1134 = vmatprep.subr.bf16.mxu0 0
  %1135 = vmatpush1.bf16.xpose.msra.mxu0 %v1132
  %1136 = vmatprep.subr.bf16.mxu0 0
  %1137 = vmatpush1.bf16.xpose.msra.mxu0 0
  %1138 = vmatprep.subr.bf16.mxu0 0
  %1139 = vmatpush1.bf16.xpose.msra.mxu0 0
  %1140 = vmatprep.subr.bf16.mxu0 0
  %1141 = vmatpush1.bf16.xpose.msra.mxu0 0
  %1142 = vmatprep.subr.bf16.mxu0 0
  %1143 = vmatpush1.bf16.xpose.msra.mxu0 0
  %1144 = vmatprep.subr.bf16.mxu0 0
  %1145 = vmatpush1.bf16.xpose.msra.mxu0 0
  %1146 = vmatprep.subr.bf16.mxu0 0
  %1147 = vmatpush1.bf16.xpose.msra.mxu0 0
  %1148 = vmatprep.subr.bf16.mxu0 0
  %1149 = vmatpush1.bf16.xpose.msra.mxu0 0
  %1150 = vmatprep.subr.bf16.mxu0 0
  %1151 = vmatpush1.bf16.xpose.msra.mxu0 0
  %1152 = vmatprep.subr.bf16.mxu0 0
  %1153 = vmatpush1.bf16.xpose.msra.mxu0 0
  %1154 = vmatprep.subr.bf16.mxu0 0
  %1155 = vmatpush1.bf16.xpose.msra.mxu0 0
  %1156 = vmatprep.subr.bf16.mxu0 0
  %1157 = vmatpush1.bf16.xpose.msra.mxu0 0
  %1158 = vmatprep.subr.bf16.mxu0 0
  %1159 = vmatpush1.bf16.xpose.msra.mxu0 0
  %1160 = vmatprep.subr.bf16.mxu0 0
  %1161 = vmatpush1.bf16.xpose.msra.mxu0 0
  %1162 = vmatprep.subr.bf16.mxu0 0
  %1163 = vmatpush1.bf16.xpose.msra.mxu0 0
  %1164 = vmatprep.subr.bf16.mxu0 0
  %1165 = vmatpush1.bf16.xpose.msra.mxu0 0
  %1166 = vmatprep.mubr.bf16.mxu0 0
  %1167 = vmatmul.mubr.bf16.gmra.mrb[0].mxu0 %v1129
  %v1168 = vpop.f32.mrb[0].mxu0
  %v1169 = vadd.f32 0.0, %v1168
  %v1170 = vpop.f32.mrb[0].mxu0
  %v1171 = vpop.f32.mrb[0].mxu0
  %v1172 = vpop.f32.mrb[0].mxu0
  %1173 = vdwg.mxu0
  %v1174 = vmul.f32 %v1169, 0.17677669
  %v1175 = vsel %vm308, %v1174, -inf
  %1176 = vmax.xlane.f32.xlu0 %v1175
  %v1177 = vpop.xlane.xlu0 %1176
  %v1178 = vsub.f32 %v1174, %v1177
  %v1179 = vmul.f32 %v1178, 1.442695
  %v1180 = vpow.pop %v1179
  %v1181 = vsel %vm308, %v1180, 0.0
  %1182 = vadd.xlane.f32.xlu0 %v1181
  %v1183 = vpop.xlane.xlu0 %1182
  %v1184 = vrcp.pop %v1183
  %v1185 = vmul.f32 %v1180, %v1184
  %v1186 = vpack.c.bf16 %v1185, %v1185
  %1188 = vrot.lane.b32.xlu0 %v1127, 64
  %v1189 = vpop.permute.xlu0 %1188
  %v1191 = vsel %vm308, %v1186, 0
  %v1194 = vsel %vm325, %v1189, 0
  %1196 = vmatprep.subr.bf16.mxu0 0
  %1197 = vmatpush1.bf16.msra.mxu0 %v1194
  %1198 = vmatprep.subr.bf16.mxu0 0
  %1199 = vmatpush1.bf16.msra.mxu0 0
  %1200 = vmatprep.subr.bf16.mxu0 0
  %1201 = vmatpush1.bf16.msra.mxu0 0
  %1202 = vmatprep.subr.bf16.mxu0 0
  %1203 = vmatpush1.bf16.msra.mxu0 0
  %1204 = vmatprep.subr.bf16.mxu0 0
  %1205 = vmatpush1.bf16.msra.mxu0 0
  %1206 = vmatprep.subr.bf16.mxu0 0
  %1207 = vmatpush1.bf16.msra.mxu0 0
  %1208 = vmatprep.subr.bf16.mxu0 0
  %1209 = vmatpush1.bf16.msra.mxu0 0
  %1210 = vmatprep.subr.bf16.mxu0 0
  %1211 = vmatpush1.bf16.msra.mxu0 0
  %1212 = vmatprep.subr.bf16.mxu0 0
  %1213 = vmatpush1.bf16.msra.mxu0 0
  %1214 = vmatprep.subr.bf16.mxu0 0
  %1215 = vmatpush1.bf16.msra.mxu0 0
  %1216 = vmatprep.subr.bf16.mxu0 0
  %1217 = vmatpush1.bf16.msra.mxu0 0
  %1218 = vmatprep.subr.bf16.mxu0 0
  %1219 = vmatpush1.bf16.msra.mxu0 0
  %1220 = vmatprep.subr.bf16.mxu0 0
  %1221 = vmatpush1.bf16.msra.mxu0 0
  %1222 = vmatprep.subr.bf16.mxu0 0
  %1223 = vmatpush1.bf16.msra.mxu0 0
  %1224 = vmatprep.subr.bf16.mxu0 0
  %1225 = vmatpush1.bf16.msra.mxu0 0
  %1226 = vmatprep.subr.bf16.mxu0 0
  %1227 = vmatpush1.bf16.msra.mxu0 0
  %1228 = vmatprep.mubr.bf16.mxu0 0
  %1229 = vmatmul.mubr.bf16.gmra.mrb[0].mxu0 %v1191
  %v1230 = vpop.f32.mrb[0].mxu0
  %v1231 = vadd.f32 0.0, %v1230
  %v1232 = vpop.f32.mrb[0].mxu0
  %v1233 = vpop.f32.mrb[0].mxu0
  %v1234 = vpop.f32.mrb[0].mxu0
  %1235 = vdwg.mxu0
  %1237 = vrot.lane.b32.xlu0 %v1126, 96
  %v1238 = vpop.permute.xlu0 %1237
  %1239 = vrot.lane.b32.xlu0 %v1127, 96
  %v1240 = vpop.permute.xlu0 %1239
  %v1242 = vsel %vm254, %v1238, 0
  %v1245 = vsel %vm254, %v1240, 0
  %1247 = vmatprep.subr.bf16.mxu0 0
  %1248 = vmatpush1.bf16.xpose.msra.mxu0 %v1245
  %1249 = vmatprep.subr.bf16.mxu0 0
  %1250 = vmatpush1.bf16.xpose.msra.mxu0 0
  %1251 = vmatprep.subr.bf16.mxu0 0
  %1252 = vmatpush1.bf16.xpose.msra.mxu0 0
  %1253 = vmatprep.subr.bf16.mxu0 0
  %1254 = vmatpush1.bf16.xpose.msra.mxu0 0
  %1255 = vmatprep.subr.bf16.mxu0 0
  %1256 = vmatpush1.bf16.xpose.msra.mxu0 0
  %1257 = vmatprep.subr.bf16.mxu0 0
  %1258 = vmatpush1.bf16.xpose.msra.mxu0 0
  %1259 = vmatprep.subr.bf16.mxu0 0
  %1260 = vmatpush1.bf16.xpose.msra.mxu0 0
  %1261 = vmatprep.subr.bf16.mxu0 0
  %1262 = vmatpush1.bf16.xpose.msra.mxu0 0
  %1263 = vmatprep.subr.bf16.mxu0 0
  %1264 = vmatpush1.bf16.xpose.msra.mxu0 0
  %1265 = vmatprep.subr.bf16.mxu0 0
  %1266 = vmatpush1.bf16.xpose.msra.mxu0 0
  %1267 = vmatprep.subr.bf16.mxu0 0
  %1268 = vmatpush1.bf16.xpose.msra.mxu0 0
  %1269 = vmatprep.subr.bf16.mxu0 0
  %1270 = vmatpush1.bf16.xpose.msra.mxu0 0
  %1271 = vmatprep.subr.bf16.mxu0 0
  %1272 = vmatpush1.bf16.xpose.msra.mxu0 0
  %1273 = vmatprep.subr.bf16.mxu0 0
  %1274 = vmatpush1.bf16.xpose.msra.mxu0 0
  %1275 = vmatprep.subr.bf16.mxu0 0
  %1276 = vmatpush1.bf16.xpose.msra.mxu0 0
  %1277 = vmatprep.subr.bf16.mxu0 0
  %1278 = vmatpush1.bf16.xpose.msra.mxu0 0
  %1279 = vmatprep.mubr.bf16.mxu0 0
  %1280 = vmatmul.mubr.bf16.gmra.mrb[0].mxu0 %v1242
  %v1281 = vpop.f32.mrb[0].mxu0
  %v1282 = vadd.f32 0.0, %v1281
  %v1283 = vpop.f32.mrb[0].mxu0
  %v1284 = vpop.f32.mrb[0].mxu0
  %v1285 = vpop.f32.mrb[0].mxu0
  %1286 = vdwg.mxu0
  %v1287 = vmul.f32 %v1282, 0.17677669
  %v1288 = vsel %vm308, %v1287, -inf
  %1289 = vmax.xlane.f32.xlu0 %v1288
  %v1290 = vpop.xlane.xlu0 %1289
  %v1291 = vsub.f32 %v1287, %v1290
  %v1292 = vmul.f32 %v1291, 1.442695
  %v1293 = vpow.pop %v1292
  %v1294 = vsel %vm308, %v1293, 0.0
  %1295 = vadd.xlane.f32.xlu0 %v1294
  %v1296 = vpop.xlane.xlu0 %1295
  %v1297 = vrcp.pop %v1296
  %v1298 = vmul.f32 %v1293, %v1297
  %v1299 = vpack.c.bf16 %v1298, %v1298
  %1300 = vrot.lane.b32.xlu0 %v1127, 32
  %v1301 = vpop.permute.xlu0 %1300
  %v1303 = vsel %vm308, %v1299, 0
  %v1306 = vsel %vm325, %v1301, 0
  %1308 = vmatprep.subr.bf16.mxu0 0
  %1309 = vmatpush1.bf16.msra.mxu0 %v1306
  %1310 = vmatprep.subr.bf16.mxu0 0
  %1311 = vmatpush1.bf16.msra.mxu0 0
  %1312 = vmatprep.subr.bf16.mxu0 0
  %1313 = vmatpush1.bf16.msra.mxu0 0
  %1314 = vmatprep.subr.bf16.mxu0 0
  %1315 = vmatpush1.bf16.msra.mxu0 0
  %1316 = vmatprep.subr.bf16.mxu0 0
  %1317 = vmatpush1.bf16.msra.mxu0 0
  %1318 = vmatprep.subr.bf16.mxu0 0
  %1319 = vmatpush1.bf16.msra.mxu0 0
  %1320 = vmatprep.subr.bf16.mxu0 0
  %1321 = vmatpush1.bf16.msra.mxu0 0
  %1322 = vmatprep.subr.bf16.mxu0 0
  %1323 = vmatpush1.bf16.msra.mxu0 0
  %1324 = vmatprep.subr.bf16.mxu0 0
  %1325 = vmatpush1.bf16.msra.mxu0 0
  %1326 = vmatprep.subr.bf16.mxu0 0
  %1327 = vmatpush1.bf16.msra.mxu0 0
  %1328 = vmatprep.subr.bf16.mxu0 0
  %1329 = vmatpush1.bf16.msra.mxu0 0
  %1330 = vmatprep.subr.bf16.mxu0 0
  %1331 = vmatpush1.bf16.msra.mxu0 0
  %1332 = vmatprep.subr.bf16.mxu0 0
  %1333 = vmatpush1.bf16.msra.mxu0 0
  %1334 = vmatprep.subr.bf16.mxu0 0
  %1335 = vmatpush1.bf16.msra.mxu0 0
  %1336 = vmatprep.subr.bf16.mxu0 0
  %1337 = vmatpush1.bf16.msra.mxu0 0
  %1338 = vmatprep.subr.bf16.mxu0 0
  %1339 = vmatpush1.bf16.msra.mxu0 0
  %1340 = vmatprep.mubr.bf16.mxu0 0
  %1341 = vmatmul.mubr.bf16.gmra.mrb[0].mxu0 %v1303
  %v1342 = vpop.f32.mrb[0].mxu0
  %v1343 = vadd.f32 0.0, %v1342
  %v1344 = vpop.f32.mrb[0].mxu0
  %v1345 = vpop.f32.mrb[0].mxu0
  %v1346 = vpop.f32.mrb[0].mxu0
  %1347 = vdwg.mxu0
  %1349 = vrot.lane.b32.xlu0 %v1343, 32
  %v1350 = vpop.permute.xlu0 %1349
  %v1352 = vsel %vm254, %v1231, %v1350
  %v1353 = vpack.c.bf16 %v1352, %v1125
  %v1354 = vpack.c.bf16 %v101, %v100
  %v1355 = vpack.c.bf16 %v103, %v102
  %v1356 = vpack.c.bf16 %v105, %v104
  %v1357 = vpack.c.bf16 %v107, %v106
  %v1359 = vsel %vm159, %v1353, 0
  %1361 = vmatprep.subr.bf16.mxu0 0
  %1362 = vmatpush1.bf16.msra.mxu0 %v1354
  %1363 = vmatprep.subr.bf16.mxu0 0
  %1364 = vmatpush1.bf16.msra.mxu0 %v1355
  %1365 = vmatprep.subr.bf16.mxu0 0
  %1366 = vmatpush1.bf16.msra.mxu0 %v1356
  %1367 = vmatprep.subr.bf16.mxu0 0
  %1368 = vmatpush1.bf16.msra.mxu0 %v1357
  %1369 = vmatprep.subr.bf16.mxu0 0
  %1370 = vmatpush1.bf16.msra.mxu0 0
  %1371 = vmatprep.subr.bf16.mxu0 0
  %1372 = vmatpush1.bf16.msra.mxu0 0
  %1373 = vmatprep.subr.bf16.mxu0 0
  %1374 = vmatpush1.bf16.msra.mxu0 0
  %1375 = vmatprep.subr.bf16.mxu0 0
  %1376 = vmatpush1.bf16.msra.mxu0 0
  %1377 = vmatprep.subr.bf16.mxu0 0
  %1378 = vmatpush1.bf16.msra.mxu0 0
  %1379 = vmatprep.subr.bf16.mxu0 0
  %1380 = vmatpush1.bf16.msra.mxu0 0
  %1381 = vmatprep.subr.bf16.mxu0 0
  %1382 = vmatpush1.bf16.msra.mxu0 0
  %1383 = vmatprep.subr.bf16.mxu0 0
  %1384 = vmatpush1.bf16.msra.mxu0 0
  %1385 = vmatprep.subr.bf16.mxu0 0
  %1386 = vmatpush1.bf16.msra.mxu0 0
  %1387 = vmatprep.subr.bf16.mxu0 0
  %1388 = vmatpush1.bf16.msra.mxu0 0
  %1389 = vmatprep.subr.bf16.mxu0 0
  %1390 = vmatpush1.bf16.msra.mxu0 0
  %1391 = vmatprep.subr.bf16.mxu0 0
  %1392 = vmatpush1.bf16.msra.mxu0 0
  %1393 = vmatprep.mubr.bf16.mxu0 0
  %1394 = vmatmul.mubr.bf16.gmra.mrb[0].mxu0 %v1359
  %v1395 = vpop.f32.mrb[0].mxu0
  %v1396 = vadd.f32 0.0, %v1395
  %v1397 = vpop.f32.mrb[0].mxu0
  %v1398 = vpop.f32.mrb[0].mxu0
  %v1399 = vadd.f32 0.0, %v1398
  %v1400 = vpop.f32.mrb[0].mxu0
  %1401 = vdwg.mxu0
  %v1402 = vadd.f32 %v765, %v1396
  %v1403 = vadd.f32 %v766, %v1399
  %v1404 = vsel %vm159, %v1402, 0.0
  %1405 = vadd.xlane.f32.xlu0 %v1404
  %v1406 = vpop.xlane.xlu0 %1405
  %v1407 = vsel %vm159, %v1403, 0.0
  %1408 = vadd.xlane.f32.xlu0 %v1407
  %v1409 = vpop.xlane.xlu0 %1408
  %v1410 = vmul.f32 %v1406, %v166
  %v1411 = vmul.f32 %v1409, %v166
  %v1412 = vsub.f32 %v1402, %v1410
  %v1413 = vsub.f32 %v1403, %v1411
  %v1414 = vmul.f32 %v1412, %v1412
  %v1415 = vmul.f32 %v1413, %v1413
  %v1416 = vsel %vm159, %v1414, 0.0
  %1417 = vadd.xlane.f32.xlu0 %v1416
  %v1418 = vpop.xlane.xlu0 %1417
  %v1419 = vsel %vm159, %v1415, 0.0
  %1420 = vadd.xlane.f32.xlu0 %v1419
  %v1421 = vpop.xlane.xlu0 %1420
  %v1422 = vmul.f32 %v1418, %v166
  %v1423 = vmul.f32 %v1421, %v166
  %v1424 = vadd.f32 %v1422, 1e-05
  %v1425 = vadd.f32 %v1423, 1e-05
  %v1426 = vrsqrt.pop %v1424
  %v1427 = vrsqrt.pop %v1425
  %v1428 = vmul.f32 %v1412, %v1426
  %v1429 = vmul.f32 %v1413, %v1427
  %v1431 = vlaneseq
  %v1432 = vshrl.u32 %v1431, 7
  %v1433 = vsub.s32 0, %v1432
  %v1434 = vrot.slane %v108, %v1433
  %v1436 = vmul.f32 %v1428, %v1434
  %v1437 = vmul.f32 %v1429, %v1434
  %v1438 = vpack.c.bf16 %v1437, %v1436
  %v1439 = vpack.c.bf16 %v111, %v109
  %v1440 = vpack.c.bf16 %v112, %v110
  %v1441 = vpack.c.bf16 %v115, %v113
  %v1442 = vpack.c.bf16 %v116, %v114
  %v1443 = vpack.c.bf16 %v119, %v117
  %v1444 = vpack.c.bf16 %v120, %v118
  %v1445 = vpack.c.bf16 %v123, %v121
  %v1446 = vpack.c.bf16 %v124, %v122
  %v1448 = vlaneseq
  %v1449 = vshrl.u32 %v1448, 7
  %v1450 = vsub.s32 0, %v1449
  %v1451 = vrot.slane %v125, %v1450
  %v1452 = vlaneseq
  %v1453 = vshrl.u32 %v1452, 7
  %v1454 = vsub.s32 1, %v1453
  %v1455 = vrot.slane %v125, %v1454
  %v1459 = vsel %vm159, %v1438, 0
  %1461 = vmatprep.subr.bf16.mxu0 %v1440
  %1462 = vmatpush1.bf16.msra.mxu0 %v1439
  %1463 = vmatprep.subr.bf16.mxu0 %v1442
  %1464 = vmatpush1.bf16.msra.mxu0 %v1441
  %1465 = vmatprep.subr.bf16.mxu0 %v1444
  %1466 = vmatpush1.bf16.msra.mxu0 %v1443
  %1467 = vmatprep.subr.bf16.mxu0 %v1446
  %1468 = vmatpush1.bf16.msra.mxu0 %v1445
  %1469 = vmatprep.subr.bf16.mxu0 0
  %1470 = vmatpush1.bf16.msra.mxu0 0
  %1471 = vmatprep.subr.bf16.mxu0 0
  %1472 = vmatpush1.bf16.msra.mxu0 0
  %1473 = vmatprep.subr.bf16.mxu0 0
  %1474 = vmatpush1.bf16.msra.mxu0 0
  %1475 = vmatprep.subr.bf16.mxu0 0
  %1476 = vmatpush1.bf16.msra.mxu0 0
  %1477 = vmatprep.subr.bf16.mxu0 0
  %1478 = vmatpush1.bf16.msra.mxu0 0
  %1479 = vmatprep.subr.bf16.mxu0 0
  %1480 = vmatpush1.bf16.msra.mxu0 0
  %1481 = vmatprep.subr.bf16.mxu0 0
  %1482 = vmatpush1.bf16.msra.mxu0 0
  %1483 = vmatprep.subr.bf16.mxu0 0
  %1484 = vmatpush1.bf16.msra.mxu0 0
  %1485 = vmatprep.subr.bf16.mxu0 0
  %1486 = vmatpush1.bf16.msra.mxu0 0
  %1487 = vmatprep.subr.bf16.mxu0 0
  %1488 = vmatpush1.bf16.msra.mxu0 0
  %1489 = vmatprep.subr.bf16.mxu0 0
  %1490 = vmatpush1.bf16.msra.mxu0 0
  %1491 = vmatprep.subr.bf16.mxu0 0
  %1492 = vmatpush1.bf16.msra.mxu0 0
  %1493 = vmatprep.mubr.bf16.mxu0 0
  %1494 = vmatmul.mubr.bf16.gmra.mrb[0].mxu0 %v1459
  %v1495 = vpop.f32.mrb[0].mxu0
  %v1496 = vadd.f32 %v1451, %v1495
  %v1497 = vpop.f32.mrb[0].mxu0
  %v1498 = vadd.f32 %v1455, %v1497
  %v1499 = vpop.f32.mrb[0].mxu0
  %v1500 = vadd.f32 %v1451, %v1499
  %v1501 = vpop.f32.mrb[0].mxu0
  %v1502 = vadd.f32 %v1455, %v1501
  %1503 = vdwg.mxu0
  %v1504 = vmul.f32 %v1496, %v1496
  %v1505 = vmul.f32 %v1498, %v1498
  %v1506 = vmul.f32 %v1500, %v1500
  %v1507 = vmul.f32 %v1502, %v1502
  %v1508 = vmul.f32 %v1496, %v1504
  %v1509 = vmul.f32 %v1498, %v1505
  %v1510 = vmul.f32 %v1500, %v1506
  %v1511 = vmul.f32 %v1502, %v1507
  %v1512 = vmul.f32 %v1508, 0.044715
  %v1513 = vmul.f32 %v1509, 0.044715
  %v1514 = vmul.f32 %v1510, 0.044715
  %v1515 = vmul.f32 %v1511, 0.044715
  %v1516 = vadd.f32 %v1496, %v1512
  %v1517 = vadd.f32 %v1498, %v1513
  %v1518 = vadd.f32 %v1500, %v1514
  %v1519 = vadd.f32 %v1502, %v1515
  %v1520 = vmul.f32 %v1516, 0.7978846
  %v1521 = vmul.f32 %v1517, 0.7978846
  %v1522 = vmul.f32 %v1518, 0.7978846
  %v1523 = vmul.f32 %v1519, 0.7978846
  %v1524 = vtanh.pop %v1520
  %v1525 = vtanh.pop %v1521
  %v1526 = vtanh.pop %v1522
  %v1527 = vtanh.pop %v1523
  %v1528 = vadd.f32 %v1524, 1.0
  %v1529 = vadd.f32 %v1525, 1.0
  %v1530 = vadd.f32 %v1526, 1.0
  %v1531 = vadd.f32 %v1527, 1.0
  %v1532 = vmul.f32 %v1528, 0.5
  %v1533 = vmul.f32 %v1529, 0.5
  %v1534 = vmul.f32 %v1530, 0.5
  %v1535 = vmul.f32 %v1531, 0.5
  %v1536 = vmul.f32 %v1496, %v1532
  %v1537 = vmul.f32 %v1498, %v1533
  %v1538 = vmul.f32 %v1500, %v1534
  %v1539 = vmul.f32 %v1502, %v1535
  %v1540 = vpack.c.bf16 %v1538, %v1536
  %v1541 = vpack.c.bf16 %v1539, %v1537
  %v1542 = vpack.c.bf16 %v127, %v126
  %v1543 = vpack.c.bf16 %v129, %v128
  %v1544 = vpack.c.bf16 %v131, %v130
  %v1545 = vpack.c.bf16 %v133, %v132
  %v1546 = vpack.c.bf16 %v135, %v134
  %v1547 = vpack.c.bf16 %v137, %v136
  %v1548 = vpack.c.bf16 %v139, %v138
  %v1549 = vpack.c.bf16 %v141, %v140
  %v1550 = vpack.c.bf16 %v143, %v142
  %v1551 = vpack.c.bf16 %v145, %v144
  %v1552 = vpack.c.bf16 %v147, %v146
  %v1553 = vpack.c.bf16 %v149, %v148
  %v1554 = vpack.c.bf16 %v151, %v150
  %v1555 = vpack.c.bf16 %v153, %v152
  %v1556 = vpack.c.bf16 %v155, %v154
  %v1557 = vpack.c.bf16 %v157, %v156
  %v1559 = vlaneseq
  %v1560 = vshrl.u32 %v1559, 7
  %v1561 = vsub.s32 0, %v1560
  %v1562 = vrot.slane %v158, %v1561
  %1564 = vmatprep.subr.bf16.mxu0 0
  %1565 = vmatpush1.bf16.msra.mxu0 %v1542
  %1566 = vmatprep.subr.bf16.mxu0 0
  %1567 = vmatpush1.bf16.msra.mxu0 %v1543
  %1568 = vmatprep.subr.bf16.mxu0 0
  %1569 = vmatpush1.bf16.msra.mxu0 %v1544
  %1570 = vmatprep.subr.bf16.mxu0 0
  %1571 = vmatpush1.bf16.msra.mxu0 %v1545
  %1572 = vmatprep.subr.bf16.mxu0 0
  %1573 = vmatpush1.bf16.msra.mxu0 %v1546
  %1574 = vmatprep.subr.bf16.mxu0 0
  %1575 = vmatpush1.bf16.msra.mxu0 %v1547
  %1576 = vmatprep.subr.bf16.mxu0 0
  %1577 = vmatpush1.bf16.msra.mxu0 %v1548
  %1578 = vmatprep.subr.bf16.mxu0 0
  %1579 = vmatpush1.bf16.msra.mxu0 %v1549
  %1580 = vmatprep.subr.bf16.mxu0 0
  %1581 = vmatpush1.bf16.msra.mxu0 %v1550
  %1582 = vmatprep.subr.bf16.mxu0 0
  %1583 = vmatpush1.bf16.msra.mxu0 %v1551
  %1584 = vmatprep.subr.bf16.mxu0 0
  %1585 = vmatpush1.bf16.msra.mxu0 %v1552
  %1586 = vmatprep.subr.bf16.mxu0 0
  %1587 = vmatpush1.bf16.msra.mxu0 %v1553
  %1588 = vmatprep.subr.bf16.mxu0 0
  %1589 = vmatpush1.bf16.msra.mxu0 %v1554
  %1590 = vmatprep.subr.bf16.mxu0 0
  %1591 = vmatpush1.bf16.msra.mxu0 %v1555
  %1592 = vmatprep.subr.bf16.mxu0 0
  %1593 = vmatpush1.bf16.msra.mxu0 %v1556
  %1594 = vmatprep.subr.bf16.mxu0 0
  %1595 = vmatpush1.bf16.msra.mxu0 %v1557
  %1596 = vmatprep.mubr.bf16.mxu0 %v1541
  %1597 = vmatmul.mubr.bf16.gmra.mrb[0].mxu0 %v1540
  %v1598 = vpop.f32.mrb[0].mxu0
  %v1599 = vadd.f32 %v1562, %v1598
  %v1600 = vpop.f32.mrb[0].mxu0
  %v1601 = vpop.f32.mrb[0].mxu0
  %v1602 = vadd.f32 %v1562, %v1601
  %v1603 = vpop.f32.mrb[0].mxu0
  %1604 = vdwg.mxu0
  %v1605 = vadd.f32 %v1402, %v1599
  %v1606 = vadd.f32 %v1403, %v1602
  %v1607 = vld [vmem:[%s14] sm:$0x1]
  %v1608 = vld [vmem:[%s15] sm:$0xff]
  %v1609 = vld [vmem:[%s15 + $0x8] sm:$0xff]
  %v1610 = vld [vmem:[%s15 + $0x10] sm:$0xff]
  %v1611 = vld [vmem:[%s15 + $0x18] sm:$0xff]
  %v1612 = vld [vmem:[%s15 + $0x20] sm:$0xff]
  %v1613 = vld [vmem:[%s15 + $0x28] sm:$0xff]
  %v1614 = vld [vmem:[%s15 + $0x30] sm:$0xff]
  %v1615 = vld [vmem:[%s15 + $0x38] sm:$0xff]
  %v1616 = vld [vmem:[%s15 + $0x40] sm:$0xff]
  %v1617 = vld [vmem:[%s15 + $0x48] sm:$0xff]
  %v1618 = vld [vmem:[%s15 + $0x50] sm:$0xff]
  %v1619 = vld [vmem:[%s15 + $0x58] sm:$0xff]
  %v1620 = vld [vmem:[%s15 + $0x60] sm:$0xff]
  %v1621 = vld [vmem:[%s15 + $0x68] sm:$0xff]
  %v1622 = vld [vmem:[%s15 + $0x70] sm:$0xff]
  %v1623 = vld [vmem:[%s15 + $0x78] sm:$0xff]
  %v1624 = vsel %vm159, %v1605, 0.0
  %1625 = vadd.xlane.f32.xlu0 %v1624
  %v1626 = vpop.xlane.xlu0 %1625
  %v1627 = vsel %vm159, %v1606, 0.0
  %1628 = vadd.xlane.f32.xlu0 %v1627
  %v1629 = vpop.xlane.xlu0 %1628
  %v1630 = vmul.f32 %v1626, %v166
  %v1631 = vmul.f32 %v1629, %v166
  %v1632 = vsub.f32 %v1605, %v1630
  %v1633 = vsub.f32 %v1606, %v1631
  %v1634 = vmul.f32 %v1632, %v1632
  %v1635 = vmul.f32 %v1633, %v1633
  %v1636 = vsel %vm159, %v1634, 0.0
  %1637 = vadd.xlane.f32.xlu0 %v1636
  %v1638 = vpop.xlane.xlu0 %1637
  %v1639 = vsel %vm159, %v1635, 0.0
  %1640 = vadd.xlane.f32.xlu0 %v1639
  %v1641 = vpop.xlane.xlu0 %1640
  %v1642 = vmul.f32 %v1638, %v166
  %v1643 = vmul.f32 %v1641, %v166
  %v1644 = vadd.f32 %v1642, 1e-05
  %v1645 = vadd.f32 %v1643, 1e-05
  %v1646 = vrsqrt.pop %v1644
  %v1647 = vrsqrt.pop %v1645
  %v1648 = vmul.f32 %v1632, %v1646
  %v1649 = vmul.f32 %v1633, %v1647
  %v1651 = vlaneseq
  %v1652 = vshrl.u32 %v1651, 7
  %v1653 = vsub.s32 0, %v1652
  %v1654 = vrot.slane %v1607, %v1653
  %v1656 = vmul.f32 %v1648, %v1654
  %v1657 = vmul.f32 %v1649, %v1654
  %v1658 = vpack.c.bf16 %v1657, %v1656
  %v1659 = vpack.c.bf16 %v1610, %v1608
  %v1660 = vpack.c.bf16 %v1611, %v1609
  %v1661 = vpack.c.bf16 %v1614, %v1612
  %v1662 = vpack.c.bf16 %v1615, %v1613
  %v1663 = vpack.c.bf16 %v1618, %v1616
  %v1664 = vpack.c.bf16 %v1619, %v1617
  %v1665 = vpack.c.bf16 %v1622, %v1620
  %v1666 = vpack.c.bf16 %v1623, %v1621
  %v1668 = vsel %vm159, %v1658, 0
  %1670 = vmatprep.subr.bf16.mxu0 %v1660
  %1671 = vmatpush1.bf16.msra.mxu0 %v1659
  %1672 = vmatprep.subr.bf16.mxu0 %v1662
  %1673 = vmatpush1.bf16.msra.mxu0 %v1661
  %1674 = vmatprep.subr.bf16.mxu0 %v1664
  %1675 = vmatpush1.bf16.msra.mxu0 %v1663
  %1676 = vmatprep.subr.bf16.mxu0 %v1666
  %1677 = vmatpush1.bf16.msra.mxu0 %v1665
  %1678 = vmatprep.subr.bf16.mxu0 0
  %1679 = vmatpush1.bf16.msra.mxu0 0
  %1680 = vmatprep.subr.bf16.mxu0 0
  %1681 = vmatpush1.bf16.msra.mxu0 0
  %1682 = vmatprep.subr.bf16.mxu0 0
  %1683 = vmatpush1.bf16.msra.mxu0 0
  %1684 = vmatprep.subr.bf16.mxu0 0
  %1685 = vmatpush1.bf16.msra.mxu0 0
  %1686 = vmatprep.subr.bf16.mxu0 0
  %1687 = vmatpush1.bf16.msra.mxu0 0
  %1688 = vmatprep.subr.bf16.mxu0 0
  %1689 = vmatpush1.bf16.msra.mxu0 0
  %1690 = vmatprep.subr.bf16.mxu0 0
  %1691 = vmatpush1.bf16.msra.mxu0 0
  %1692 = vmatprep.subr.bf16.mxu0 0
  %1693 = vmatpush1.bf16.msra.mxu0 0
  %1694 = vmatprep.subr.bf16.mxu0 0
  %1695 = vmatpush1.bf16.msra.mxu0 0
  %1696 = vmatprep.subr.bf16.mxu0 0
  %1697 = vmatpush1.bf16.msra.mxu0 0
  %1698 = vmatprep.subr.bf16.mxu0 0
  %1699 = vmatpush1.bf16.msra.mxu0 0
  %1700 = vmatprep.subr.bf16.mxu0 0
  %1701 = vmatpush1.bf16.msra.mxu0 0
  %1702 = vmatprep.mubr.bf16.mxu0 0
  %1703 = vmatmul.mubr.bf16.gmra.mrb[0].mxu0 %v1668
  %v1704 = vpop.f32.mrb[0].mxu0
  %v1705 = vadd.f32 0.0, %v1704
  %v1706 = vpop.f32.mrb[0].mxu0
  %v1707 = vadd.f32 0.0, %v1706
  %v1708 = vpop.f32.mrb[0].mxu0
  %v1709 = vadd.f32 0.0, %v1708
  %v1710 = vpop.f32.mrb[0].mxu0
  %v1711 = vadd.f32 0.0, %v1710
  %1712 = vdwg.mxu0
  %1713 = vst [vmem:[%s16] sm:$0xff] %v1705
  %1714 = vst [vmem:[%s16 + $0x8] sm:$0xff] %v1707
  %1715 = vst [vmem:[%s16 + $0x10] sm:$0xff] %v1709
  %1716 = vst [vmem:[%s16 + $0x18] sm:$0xff] %v1711
  // Predicated region
  $region66: #{xtransformer_forward.3} parent=0 // pred_check
    _
  $region67: #{xtransformer_forward.3} parent=0 // pred_check_branch
    %1718 = sbr.rel (0) target = $region69
  $region68: #{xtransformer_forward.3} parent=0 // pred_region
    _
  $region69: #{xtransformer_forward.3} parent=0 // pred_fallthru
    _
  // Predicated region
  $region70: #{xtransformer_forward.3} parent=0 // pred_check
    _
  $region71: #{xtransformer_forward.3} parent=0 // pred_check_branch
    %1720 = sbr.rel (0) target = $region73
  $region72: #{xtransformer_forward.3} parent=0 // pred_region
    _
  $region73: #{xtransformer_forward.3} parent=0 // pred_fallthru
    _

</llo_original>
